<compile_context>
chip_gen: v6e
topology: v6e:2x2x1
jax: 0.10.0
libtpu: 0.0.40
codegen_flags: <defaults>
</compile_context>

<pallas_src>
import jax
import jax.numpy as jnp
import numpy as np
from jax.experimental import pallas as pl
from jax.experimental.pallas import tpu as pltpu

PAD = 8      # zero halo rows above/below each layer's activation (conv needs 2)
KSIZE = 5    # Conv1d kernel size
POOL = 3     # MaxPool1d kernel & stride


def _round_up(x, m):
    return (x + m - 1) // m * m


# ---------------------------------------------------------------------------
# Pallas kernels
# ---------------------------------------------------------------------------
def _conv_relu_pool_layer(src_ref, w_ref, b_ref, conv_ref, lc):
    """One Conv1d(k=5, stride=1, pad=2) + ReLU + MaxPool1d(3, 3) layer.

    src_ref : (lc + 2*PAD, G*c_in)  spatial on sublanes, sample x channel on
              lanes; rows [PAD, PAD+lc) hold data, halo rows are zero.
    w_ref   : (5, G*c_in, G*c_out)  block-diagonal (per sample) weights
    b_ref   : (1, G*c_out)          lane-resident bias, tiled per sample
    conv_ref: (>=lc, G*c_out)       VMEM staging buffer for the pre-pool conv
    returns : (lc // 3, G*c_out)
    """
    # conv: one matmul per tap (default precision), covering all samples
    acc = jnp.dot(src_ref[pl.ds(PAD - 2, lc), :], w_ref[0],
                  preferred_element_type=jnp.float32)
    for k in range(1, KSIZE):
        acc = acc + jnp.dot(src_ref[pl.ds(PAD - 2 + k, lc), :], w_ref[k],
                            preferred_element_type=jnp.float32)
    conv_ref[pl.ds(0, lc), :] = acc                         # stage in VMEM

    # MaxPool1d(3, 3), floor semantics: three strided sublane reads + max
    p_out = lc // POOL
    pooled = jnp.maximum(
        jnp.maximum(conv_ref[pl.ds(0, p_out, stride=POOL), :],
                    conv_ref[pl.ds(1, p_out, stride=POOL), :]),
        conv_ref[pl.ds(2, p_out, stride=POOL), :])

    # bias is shared across the pool window and ReLU is monotonic, so both
    # commute with the max.
    return jnp.maximum(pooled + b_ref[...], 0.0)            # (p_out, G*c_out)


def _zero_halo(ref):
    """Zero only the PAD halo rows (interior rows are rewritten every step)."""
    z = jnp.zeros((PAD, ref.shape[1]), jnp.float32)
    ref[pl.ds(0, PAD), :] = z
    ref[pl.ds(ref.shape[0] - PAD, PAD), :] = z


def conv_stack_kernel(x_ref, w1, b1, w2, b2, w3, b3, w4, b4,
                      o_ref, pad2, pad3, pad4, cbuf_a, cbuf_b):
    """All four conv+ReLU+pool layers fused; intermediates stay in VMEM."""
    # Halo rows must be zero for the conv padding.  Done every step: with a
    # "parallel" grid axis each v7x TensorCore sees a different program_id
    # range, so a program_id==0 one-time init would be unsafe.
    _zero_halo(pad2)
    _zero_halo(pad3)
    _zero_halo(pad4)

    l0 = x_ref.shape[0] - 2 * PAD
    h1 = _conv_relu_pool_layer(x_ref, w1, b1, cbuf_a, l0)
    pad2[pl.ds(PAD, h1.shape[0]), :] = h1
    h2 = _conv_relu_pool_layer(pad2, w2, b2, cbuf_a, h1.shape[0])
    pad3[pl.ds(PAD, h2.shape[0]), :] = h2
    h3 = _conv_relu_pool_layer(pad3, w3, b3, cbuf_b, h2.shape[0])
    pad4[pl.ds(PAD, h3.shape[0]), :] = h3
    o_ref[...] = _conv_relu_pool_layer(pad4, w4, b4, cbuf_b, h3.shape[0])


def fc_kernel(z_ref, w1_ref, b1_ref, w2_ref, b2_ref, o_ref):
    """Fused Linear + ReLU + Linear + ReLU (widths zero-padded, lane-dense)."""
    h = jnp.maximum(
        jnp.dot(z_ref[...], w1_ref[...],
                preferred_element_type=jnp.float32) + b1_ref[...], 0.0)
    o_ref[...] = jnp.maximum(
        jnp.dot(h, w2_ref[...],
                preferred_element_type=jnp.float32) + b2_ref[...], 0.0)


# ---------------------------------------------------------------------------
# Pallas wrappers
# ---------------------------------------------------------------------------
def conv_features(x_all, conv_w, conv_b, group):
    """x_all: (N, 1, L), N a multiple of `group` (zero-padded at the tail).
    Returns (N, 32 * L4) conv features in PyTorch .view(B,-1) channel-major
    order."""
    n, _, L = x_all.shape
    assert n % group == 0
    nb = n // group
    c_out_last = conv_b[-1].shape[1] // group

    # per-layer spatial lengths after each MaxPool1d(3,3) (PyTorch floor)
    lens = [L]
    for _ in range(4):
        lens.append(lens[-1] // POOL)
    assert lens[4] >= 1, "input too short for four MaxPool1d(3,3) stages"

    # layout: spatial on sublanes, sample on lanes; zero halo rows
    xg = jnp.transpose(x_all[:, 0, :].reshape(nb, group, L), (0, 2, 1))
    xg = jnp.pad(xg, ((0, 0), (PAD, PAD), (0, 0)))           # (nb, L+2*PAD, G)

    in_specs = [pl.BlockSpec((None, L + 2 * PAD, group), lambda g: (g, 0, 0))]
    for i in range(4):
        in_specs.append(pl.BlockSpec(conv_w[i].shape, lambda g: (0, 0, 0)))
        in_specs.append(pl.BlockSpec(conv_b[i].shape, lambda g: (0, 0)))

    feats = pl.pallas_call(
        conv_stack_kernel,
        out_shape=jax.ShapeDtypeStruct(
            (nb, lens[4], group * c_out_last), jnp.float32),
        grid=(nb,),
        in_specs=in_specs,
        out_specs=pl.BlockSpec((None, lens[4], group * c_out_last),
                               lambda g: (g, 0, 0)),
        scratch_shapes=[
            # layer-output buffers with zero halos (widths = G*c_out of layer)
            pltpu.VMEM((lens[1] + 2 * PAD, conv_b[0].shape[1]), jnp.float32),
            pltpu.VMEM((lens[2] + 2 * PAD, conv_b[1].shape[1]), jnp.float32),
            pltpu.VMEM((lens[3] + 2 * PAD, conv_b[2].shape[1]), jnp.float32),
            # pre-pool conv staging buffers (layers 1-2 and 3-4)
            pltpu.VMEM((lens[0], conv_b[1].shape[1]), jnp.float32),
            pltpu.VMEM((lens[2], conv_b[3].shape[1]), jnp.float32),
        ],
        compiler_params=pltpu.CompilerParams(
            dimension_semantics=("parallel",)),
    )(xg, conv_w[0], conv_b[0], conv_w[1], conv_b[1],
      conv_w[2], conv_b[2], conv_w[3], conv_b[3])

    # kernel output [block, position, sample*c_out + channel] ->
    # PyTorch .view(B, -1) order (channel-major): feat[b, c*L4 + l]
    f = feats.reshape(nb, lens[4], group, c_out_last)
    f = jnp.transpose(f, (0, 2, 3, 1)).reshape(nb * group, c_out_last * lens[4])
    return f


def fc_forward(z, w1p, b1p, w2p, b2p, out_dim):
    """z: (N, F) -> (N, out_dim); padded weights prepared once outside jit."""
    n, f = z.shape
    hp1 = w1p.shape[1]
    hp2 = w2p.shape[1]
    # split the independent rows into two "parallel" blocks so both v7x
    # TensorCores are busy; on single-TC chips the extra step is ~0.35 us.
    row_blk = max(8, _round_up((n + 1) // 2, 8))
    steps = -(-n // row_blk)
    n_pad = steps * row_blk
    zp = jnp.pad(z, ((0, n_pad - n), (0, 0))) if n_pad > n else z

    out = pl.pallas_call(
        fc_kernel,
        out_shape=jax.ShapeDtypeStruct((n_pad, hp2), jnp.float32),
        grid=(steps,),
        in_specs=[
            pl.BlockSpec((row_blk, f), lambda i: (i, 0)),
            pl.BlockSpec((f, hp1), lambda i: (0, 0)),
            pl.BlockSpec((1, hp1), lambda i: (0, 0)),
            pl.BlockSpec((hp1, hp2), lambda i: (0, 0)),
            pl.BlockSpec((1, hp2), lambda i: (0, 0)),
        ],
        out_specs=pl.BlockSpec((row_blk, hp2), lambda i: (i, 0)),
        compiler_params=pltpu.CompilerParams(
            dimension_semantics=("parallel",)),
    )(zp, w1p, b1p, w2p, b2p)
    return out[:n, :out_dim]


# ---------------------------------------------------------------------------
# One-time parameter preparation (outside jit)
# ---------------------------------------------------------------------------
def choose_group(batch):
    """Lane-packing factor: group*32 == 128 (one MXU/lane tile, lane-dense
    stores); larger batches take more grid steps instead of growing group."""
    total = 3 * batch
    if total > 4:
        return 4
    return max(1, (total + 1) // 2)   # keep a >=2-step grid when possible


def prepare_params(params, group):
    """Block-diagonal conv weights (one matmul per tap covers all `group`
    samples) and lane-padded FC weights.  Done once, outside jit."""
    conv_w, conv_b = [], []
    for (w, b) in params["conv"]:                  # w: (c_out, c_in, 5)
        c_out, c_in, _ = w.shape
        wt = jnp.transpose(w, (2, 1, 0))           # (5, c_in, c_out), tap-major
        eye = jnp.eye(group, dtype=w.dtype)
        wbd = jnp.einsum("ef,kio->keifo", eye, wt)
        conv_w.append(wbd.reshape(KSIZE, group * c_in, group * c_out))
        conv_b.append(jnp.tile(b.reshape(1, c_out), (1, group)))

    h1 = params["w1"].shape[1]
    h2 = params["w2"].shape[1]
    hp1 = _round_up(h1, 128)
    hp2 = _round_up(h2, 128)
    prep = {
        "conv_w": conv_w,
        "conv_b": conv_b,
        "w1": jnp.pad(params["w1"], ((0, 0), (0, hp1 - h1))),
        "b1": jnp.pad(params["b1"].reshape(1, h1), ((0, 0), (0, hp1 - h1))),
        "w2": jnp.pad(params["w2"], ((0, hp1 - h1), (0, hp2 - h2))),
        "b2": jnp.pad(params["b2"].reshape(1, h2), ((0, 0), (0, hp2 - h2))),
    }
    return prep, h2


# ---------------------------------------------------------------------------
# SecureBiometricECGModel / SecureModel forward
# ---------------------------------------------------------------------------
def secure_model_forward(prep, xA, xP, xN, k1, k2, *, group, out_dim):
    B = xA.shape[0]
    total = 3 * B

    # conv features for the three DISTINCT inputs, in one batched kernel call
    x_all = jnp.concatenate([xA, xP, xN], axis=0)            # (3B, 1, L)
    pad_n = _round_up(total, group)
    if pad_n > total:
        x_all = jnp.pad(x_all, ((0, pad_n - total), (0, 0), (0, 0)))
    feats = conv_features(x_all, prep["conv_w"], prep["conv_b"], group)[:total]
    fA, fP, fN = feats[:B], feats[B:2 * B], feats[2 * B:3 * B]

    assert prep["w1"].shape[0] == feats.shape[1] + k1.shape[1], \
        "flattened conv feature size inconsistent with fc1 input size"

    # TODO(synk): nn.Dropout is applied as identity (inference semantics);
    # train-mode random masking is not reproduced.
    z = jnp.concatenate([
        jnp.concatenate([fA, k1], axis=1),
        jnp.concatenate([fP, k1], axis=1),
        jnp.concatenate([fP, k2], axis=1),
        jnp.concatenate([fN, k1], axis=1),
        jnp.concatenate([fN, k2], axis=1),
    ], axis=0)                                               # (5B, feat+key)
    out = fc_forward(z, prep["w1"], prep["b1"], prep["w2"], prep["b2"], out_dim)
    return (out[:B], out[B:2 * B], out[2 * B:3 * B],
            out[3 * B:4 * B], out[4 * B:5 * B])


# ---------------------------------------------------------------------------
# Parameter init (deterministic, mirrors the PyTorch module's shapes)
# ---------------------------------------------------------------------------
def conv_feature_size(input_size):
    L = input_size
    for _ in range(4):
        L = L // 3                            # MaxPool1d(3,3) four times
    return 32 * L                             # final conv has 32 channels


def init_params(rng, input_size, key_size):
    conv_dims = [(1, 16), (16, 16), (16, 32), (32, 32)]
    params = {"conv": []}
    keys = jax.random.split(rng, len(conv_dims) + 2)
    for i, (cin, cout) in enumerate(conv_dims):
        kw, kb = jax.random.split(keys[i])
        bound = 1.0 / np.sqrt(cin * KSIZE)
        # PyTorch Conv1d layout: (C_out, C_in, k)
        w = jax.random.uniform(kw, (cout, cin, KSIZE), jnp.float32, -bound, bound)
        b = jax.random.uniform(kb, (cout,), jnp.float32, -bound, bound)
        params["conv"].append((w, b))
    feat = conv_feature_size(input_size)
    f_in = feat + key_size
    kw1, kb1 = jax.random.split(keys[-2])
    kw2, kb2 = jax.random.split(keys[-1])
    bound1 = 1.0 / np.sqrt(f_in)
    params["w1"] = jax.random.uniform(kw1, (f_in, 100), jnp.float32, -bound1, bound1)
    params["b1"] = jax.random.uniform(kb1, (100,), jnp.float32, -bound1, bound1)
    bound2 = 1.0 / np.sqrt(100)
    params["w2"] = jax.random.uniform(kw2, (100, 100), jnp.float32, -bound2, bound2)
    params["b2"] = jax.random.uniform(kb2, (100,), jnp.float32, -bound2, bound2)
    return params


# ---------------------------------------------------------------------------
# Pure-JAX reference (sanity check; full f32 precision)
# ---------------------------------------------------------------------------
_HIGH = jax.lax.Precision.HIGHEST


def ref_network_forward(params, x, key_vec):
    h = x
    for (w, b) in params["conv"]:
        h = jax.lax.conv_general_dilated(
            h, w, window_strides=(1,), padding=[(2, 2)],
            dimension_numbers=("NCH", "OIH", "NCH"), precision=_HIGH)
        h = jnp.maximum(h + b.reshape(1, -1, 1), 0.0)
        h = jax.lax.reduce_window(h, -jnp.inf, jax.lax.max,
                                  (1, 1, 3), (1, 1, 3), "VALID")
    feat = h.reshape(h.shape[0], -1)
    z = jnp.concatenate([feat, key_vec], axis=1)
    h1 = jnp.maximum(
        jnp.dot(z, params["w1"], precision=_HIGH) + params["b1"][None, :], 0.0)
    return jnp.maximum(
        jnp.dot(h1, params["w2"], precision=_HIGH) + params["b2"][None, :], 0.0)


def ref_model_forward(params, xA, xP, xN, k1, k2):
    return (ref_network_forward(params, xA, k1),
            ref_network_forward(params, xP, k1),
            ref_network_forward(params, xP, k2),
            ref_network_forward(params, xN, k1),
            ref_network_forward(params, xN, k2))


# ---------------------------------------------------------------------------
if __name__ == "__main__":
    INPUT_SIZE = 324     # small ECG length (module default is 1000)
    KEY_SIZE = 32
    BATCH = 2

    rng = jax.random.PRNGKey(0)
    p_rng, d_rng = jax.random.split(rng)
    params = init_params(p_rng, INPUT_SIZE, KEY_SIZE)

    group = choose_group(BATCH)
    prep, out_dim = prepare_params(params, group)

    ka, kp, kn, kk1, kk2 = jax.random.split(d_rng, 5)
    xA = jax.random.normal(ka, (BATCH, 1, INPUT_SIZE), jnp.float32)
    xP = jax.random.normal(kp, (BATCH, 1, INPUT_SIZE), jnp.float32)
    xN = jax.random.normal(kn, (BATCH, 1, INPUT_SIZE), jnp.float32)
    k1 = jax.random.normal(kk1, (BATCH, KEY_SIZE), jnp.float32)
    k2 = jax.random.normal(kk2, (BATCH, KEY_SIZE), jnp.float32)

    fwd = jax.jit(secure_model_forward, static_argnames=("group", "out_dim"))
    outs = jax.block_until_ready(
        fwd(prep, xA, xP, xN, k1, k2, group=group, out_dim=out_dim))

    # kernel matmuls run at default (bf16-pass) MXU precision per the perf
    # review, so compare against the f32 reference with a loosened tolerance.
    refs = ref_model_forward(params, xA, xP, xN, k1, k2)
    for o, r in zip(outs, refs):
        assert o.shape == (BATCH, out_dim)
        np.testing.assert_allclose(np.asarray(o), np.asarray(r),
                                   rtol=3e-2, atol=3e-2)

    print("KERNEL_OK")
</pallas_src>

<mosaic_0001>
module attributes {stable_mosaic.version = 11 : i64} {
  func.func @conv_stack_kernel(%arg0: i32, %arg1: memref<1x340x4xf32, #tpu.memory_space<vmem>>, %arg2: memref<5x4x64xf32, #tpu.memory_space<vmem>>, %arg3: memref<1x64xf32, #tpu.memory_space<vmem>>, %arg4: memref<5x64x64xf32, #tpu.memory_space<vmem>>, %arg5: memref<1x64xf32, #tpu.memory_space<vmem>>, %arg6: memref<5x64x128xf32, #tpu.memory_space<vmem>>, %arg7: memref<1x128xf32, #tpu.memory_space<vmem>>, %arg8: memref<5x128x128xf32, #tpu.memory_space<vmem>>, %arg9: memref<1x128xf32, #tpu.memory_space<vmem>>, %arg10: memref<1x4x128xf32, #tpu.memory_space<vmem>>, %arg11: memref<124x64xf32, #tpu.memory_space<vmem>>, %arg12: memref<52x64xf32, #tpu.memory_space<vmem>>, %arg13: memref<28x128xf32, #tpu.memory_space<vmem>>, %arg14: memref<324x64xf32, #tpu.memory_space<vmem>>, %arg15: memref<36x128xf32, #tpu.memory_space<vmem>>) attributes {dimension_semantics = [#tpu.dimension_semantics<parallel>], iteration_bounds = array<i64: 2>, scalar_prefetch = 0 : i64, scratch_operands = 5 : i64, tpu.core_type = #tpu.core_type<tc>, window_params = [{transform_indices = @transform_0, window_bounds = array<i64: 1, 340, 4>}, {pipeline_mode = #tpu.pipeline_mode<synchronous>, transform_indices = @transform_1, window_bounds = array<i64: 5, 4, 64>}, {pipeline_mode = #tpu.pipeline_mode<synchronous>, transform_indices = @transform_2, window_bounds = array<i64: 1, 64>}, {pipeline_mode = #tpu.pipeline_mode<synchronous>, transform_indices = @transform_3, window_bounds = array<i64: 5, 64, 64>}, {pipeline_mode = #tpu.pipeline_mode<synchronous>, transform_indices = @transform_4, window_bounds = array<i64: 1, 64>}, {pipeline_mode = #tpu.pipeline_mode<synchronous>, transform_indices = @transform_5, window_bounds = array<i64: 5, 64, 128>}, {pipeline_mode = #tpu.pipeline_mode<synchronous>, transform_indices = @transform_6, window_bounds = array<i64: 1, 128>}, {pipeline_mode = #tpu.pipeline_mode<synchronous>, transform_indices = @transform_7, window_bounds = array<i64: 5, 128, 128>}, {pipeline_mode = #tpu.pipeline_mode<synchronous>, transform_indices = @transform_8, window_bounds = array<i64: 1, 128>}, {transform_indices = @transform_9, window_bounds = array<i64: 1, 4, 128>}]} {
    %cst = arith.constant 0.000000e+00 : f32
    %0 = vector.broadcast %cst : f32 to vector<8x64xf32>
    %c0 = arith.constant 0 : index
    %c0_0 = arith.constant 0 : index
    %1 = vector.load %arg11[%c0, %c0_0] : memref<124x64xf32, #tpu.memory_space<vmem>>, vector<8x64xf32>
    tpu.vector_store %arg11[%c0, %c0_0], %0 {strides = array<i32>} : memref<124x64xf32, #tpu.memory_space<vmem>>, vector<8x64xf32>,
    %c116 = arith.constant 116 : index
    %c0_1 = arith.constant 0 : index
    %2 = vector.load %arg11[%c116, %c0_1] : memref<124x64xf32, #tpu.memory_space<vmem>>, vector<8x64xf32>
    tpu.vector_store %arg11[%c116, %c0_1], %0 {strides = array<i32>} : memref<124x64xf32, #tpu.memory_space<vmem>>, vector<8x64xf32>,
    %cst_2 = arith.constant 0.000000e+00 : f32
    %3 = vector.broadcast %cst_2 : f32 to vector<8x64xf32>
    %c0_3 = arith.constant 0 : index
    %c0_4 = arith.constant 0 : index
    %4 = vector.load %arg12[%c0_3, %c0_4] : memref<52x64xf32, #tpu.memory_space<vmem>>, vector<8x64xf32>
    tpu.vector_store %arg12[%c0_3, %c0_4], %3 {strides = array<i32>} : memref<52x64xf32, #tpu.memory_space<vmem>>, vector<8x64xf32>,
    %c44 = arith.constant 44 : index
    %c0_5 = arith.constant 0 : index
    %5 = vector.load %arg12[%c44, %c0_5] : memref<52x64xf32, #tpu.memory_space<vmem>>, vector<8x64xf32>
    tpu.vector_store %arg12[%c44, %c0_5], %3 {strides = array<i32>} : memref<52x64xf32, #tpu.memory_space<vmem>>, vector<8x64xf32>,
    %cst_6 = arith.constant 0.000000e+00 : f32
    %6 = vector.broadcast %cst_6 : f32 to vector<8x128xf32>
    %c0_7 = arith.constant 0 : index
    %c0_8 = arith.constant 0 : index
    %7 = vector.load %arg13[%c0_7, %c0_8] : memref<28x128xf32, #tpu.memory_space<vmem>>, vector<8x128xf32>
    tpu.vector_store %arg13[%c0_7, %c0_8], %6 {strides = array<i32>} : memref<28x128xf32, #tpu.memory_space<vmem>>, vector<8x128xf32>,
    %c20 = arith.constant 20 : index
    %c0_9 = arith.constant 0 : index
    %8 = vector.load %arg13[%c20, %c0_9] : memref<28x128xf32, #tpu.memory_space<vmem>>, vector<8x128xf32>
    tpu.vector_store %arg13[%c20, %c0_9], %6 {strides = array<i32>} : memref<28x128xf32, #tpu.memory_space<vmem>>, vector<8x128xf32>,
    %c0_10 = arith.constant 0 : index
    %c6 = arith.constant 6 : index
    %c0_11 = arith.constant 0 : index
    %9 = vector.load %arg1[%c0_10, %c6, %c0_11] : memref<1x340x4xf32, #tpu.memory_space<vmem>>, vector<1x324x4xf32>
    %10 = vector.shape_cast %9 : vector<1x324x4xf32> to vector<324x4xf32>
    %c0_12 = arith.constant 0 : index
    %c0_13 = arith.constant 0 : index
    %c0_14 = arith.constant 0 : index
    %11 = vector.load %arg2[%c0_12, %c0_13, %c0_14] : memref<5x4x64xf32, #tpu.memory_space<vmem>>, vector<1x4x64xf32>
    %12 = vector.shape_cast %11 : vector<1x4x64xf32> to vector<4x64xf32>
    %cst_15 = arith.constant dense<0.000000e+00> : vector<324x64xf32>
    %13 = tpu.matmul %10, %12, %cst_15 {dimension_numbers = #tpu.dot_dimension_numbers<[1], [0], [0], [1], [0, 0, 1, 1], [], []>} : vector<324x4xf32>, vector<4x64xf32>, vector<324x64xf32> -> vector<324x64xf32>
    %c0_16 = arith.constant 0 : index
    %c7 = arith.constant 7 : index
    %c0_17 = arith.constant 0 : index
    %14 = vector.load %arg1[%c0_16, %c7, %c0_17] : memref<1x340x4xf32, #tpu.memory_space<vmem>>, vector<1x324x4xf32>
    %15 = vector.shape_cast %14 : vector<1x324x4xf32> to vector<324x4xf32>
    %c1 = arith.constant 1 : index
    %c0_18 = arith.constant 0 : index
    %c0_19 = arith.constant 0 : index
    %16 = vector.load %arg2[%c1, %c0_18, %c0_19] : memref<5x4x64xf32, #tpu.memory_space<vmem>>, vector<1x4x64xf32>
    %17 = vector.shape_cast %16 : vector<1x4x64xf32> to vector<4x64xf32>
    %cst_20 = arith.constant dense<0.000000e+00> : vector<324x64xf32>
    %18 = tpu.matmul %15, %17, %cst_20 {dimension_numbers = #tpu.dot_dimension_numbers<[1], [0], [0], [1], [0, 0, 1, 1], [], []>} : vector<324x4xf32>, vector<4x64xf32>, vector<324x64xf32> -> vector<324x64xf32>
    %19 = arith.addf %13, %18 : vector<324x64xf32>
    %c0_21 = arith.constant 0 : index
    %c8 = arith.constant 8 : index
    %c0_22 = arith.constant 0 : index
    %20 = vector.load %arg1[%c0_21, %c8, %c0_22] : memref<1x340x4xf32, #tpu.memory_space<vmem>>, vector<1x324x4xf32>
    %21 = vector.shape_cast %20 : vector<1x324x4xf32> to vector<324x4xf32>
    %c2 = arith.constant 2 : index
    %c0_23 = arith.constant 0 : index
    %c0_24 = arith.constant 0 : index
    %22 = vector.load %arg2[%c2, %c0_23, %c0_24] : memref<5x4x64xf32, #tpu.memory_space<vmem>>, vector<1x4x64xf32>
    %23 = vector.shape_cast %22 : vector<1x4x64xf32> to vector<4x64xf32>
    %cst_25 = arith.constant dense<0.000000e+00> : vector<324x64xf32>
    %24 = tpu.matmul %21, %23, %cst_25 {dimension_numbers = #tpu.dot_dimension_numbers<[1], [0], [0], [1], [0, 0, 1, 1], [], []>} : vector<324x4xf32>, vector<4x64xf32>, vector<324x64xf32> -> vector<324x64xf32>
    %25 = arith.addf %19, %24 : vector<324x64xf32>
    %c0_26 = arith.constant 0 : index
    %c9 = arith.constant 9 : index
    %c0_27 = arith.constant 0 : index
    %26 = vector.load %arg1[%c0_26, %c9, %c0_27] : memref<1x340x4xf32, #tpu.memory_space<vmem>>, vector<1x324x4xf32>
    %27 = vector.shape_cast %26 : vector<1x324x4xf32> to vector<324x4xf32>
    %c3 = arith.constant 3 : index
    %c0_28 = arith.constant 0 : index
    %c0_29 = arith.constant 0 : index
    %28 = vector.load %arg2[%c3, %c0_28, %c0_29] : memref<5x4x64xf32, #tpu.memory_space<vmem>>, vector<1x4x64xf32>
    %29 = vector.shape_cast %28 : vector<1x4x64xf32> to vector<4x64xf32>
    %cst_30 = arith.constant dense<0.000000e+00> : vector<324x64xf32>
    %30 = tpu.matmul %27, %29, %cst_30 {dimension_numbers = #tpu.dot_dimension_numbers<[1], [0], [0], [1], [0, 0, 1, 1], [], []>} : vector<324x4xf32>, vector<4x64xf32>, vector<324x64xf32> -> vector<324x64xf32>
    %31 = arith.addf %25, %30 : vector<324x64xf32>
    %c0_31 = arith.constant 0 : index
    %c10 = arith.constant 10 : index
    %c0_32 = arith.constant 0 : index
    %32 = vector.load %arg1[%c0_31, %c10, %c0_32] : memref<1x340x4xf32, #tpu.memory_space<vmem>>, vector<1x324x4xf32>
    %33 = vector.shape_cast %32 : vector<1x324x4xf32> to vector<324x4xf32>
    %c4 = arith.constant 4 : index
    %c0_33 = arith.constant 0 : index
    %c0_34 = arith.constant 0 : index
    %34 = vector.load %arg2[%c4, %c0_33, %c0_34] : memref<5x4x64xf32, #tpu.memory_space<vmem>>, vector<1x4x64xf32>
    %35 = vector.shape_cast %34 : vector<1x4x64xf32> to vector<4x64xf32>
    %cst_35 = arith.constant dense<0.000000e+00> : vector<324x64xf32>
    %36 = tpu.matmul %33, %35, %cst_35 {dimension_numbers = #tpu.dot_dimension_numbers<[1], [0], [0], [1], [0, 0, 1, 1], [], []>} : vector<324x4xf32>, vector<4x64xf32>, vector<324x64xf32> -> vector<324x64xf32>
    %37 = arith.addf %31, %36 : vector<324x64xf32>
    %c0_36 = arith.constant 0 : index
    %c0_37 = arith.constant 0 : index
    %38 = vector.load %arg14[%c0_36, %c0_37] : memref<324x64xf32, #tpu.memory_space<vmem>>, vector<324x64xf32>
    tpu.vector_store %arg14[%c0_36, %c0_37], %37 {strides = array<i32>} : memref<324x64xf32, #tpu.memory_space<vmem>>, vector<324x64xf32>,
    %c0_38 = arith.constant 0 : index
    %c0_39 = arith.constant 0 : index
    %39 = tpu.strided_load %arg14[%c0_38, %c0_39] {strides = array<i32: 3, 1>} : memref<324x64xf32, #tpu.memory_space<vmem>>, vector<108x64xf32>
    %c1_40 = arith.constant 1 : index
    %c0_41 = arith.constant 0 : index
    %40 = tpu.strided_load %arg14[%c1_40, %c0_41] {strides = array<i32: 3, 1>} : memref<324x64xf32, #tpu.memory_space<vmem>>, vector<108x64xf32>
    %41 = arith.maximumf %39, %40 : vector<108x64xf32>
    %c2_42 = arith.constant 2 : index
    %c0_43 = arith.constant 0 : index
    %42 = tpu.strided_load %arg14[%c2_42, %c0_43] {strides = array<i32: 3, 1>} : memref<324x64xf32, #tpu.memory_space<vmem>>, vector<108x64xf32>
    %43 = arith.maximumf %41, %42 : vector<108x64xf32>
    %c0_44 = arith.constant 0 : index
    %c0_45 = arith.constant 0 : index
    %44 = vector.load %arg3[%c0_44, %c0_45] : memref<1x64xf32, #tpu.memory_space<vmem>>, vector<1x64xf32>
    %45 = vector.broadcast %44 : vector<1x64xf32> to vector<108x64xf32>
    %46 = arith.addf %43, %45 : vector<108x64xf32>
    %cst_46 = arith.constant 0.000000e+00 : f32
    %47 = vector.broadcast %cst_46 : f32 to vector<108x64xf32>
    %48 = arith.maximumf %46, %47 : vector<108x64xf32>
    %c8_47 = arith.constant 8 : index
    %c0_48 = arith.constant 0 : index
    %49 = vector.load %arg11[%c8_47, %c0_48] : memref<124x64xf32, #tpu.memory_space<vmem>>, vector<108x64xf32>
    tpu.vector_store %arg11[%c8_47, %c0_48], %48 {strides = array<i32>} : memref<124x64xf32, #tpu.memory_space<vmem>>, vector<108x64xf32>,
    %c6_49 = arith.constant 6 : index
    %c0_50 = arith.constant 0 : index
    %50 = vector.load %arg11[%c6_49, %c0_50] : memref<124x64xf32, #tpu.memory_space<vmem>>, vector<108x64xf32>
    %c0_51 = arith.constant 0 : index
    %c0_52 = arith.constant 0 : index
    %c0_53 = arith.constant 0 : index
    %51 = vector.load %arg4[%c0_51, %c0_52, %c0_53] : memref<5x64x64xf32, #tpu.memory_space<vmem>>, vector<1x64x64xf32>
    %52 = vector.shape_cast %51 : vector<1x64x64xf32> to vector<64x64xf32>
    %cst_54 = arith.constant dense<0.000000e+00> : vector<108x64xf32>
    %53 = tpu.matmul %50, %52, %cst_54 {dimension_numbers = #tpu.dot_dimension_numbers<[1], [0], [0], [1], [0, 0, 1, 1], [], []>} : vector<108x64xf32>, vector<64x64xf32>, vector<108x64xf32> -> vector<108x64xf32>
    %c7_55 = arith.constant 7 : index
    %c0_56 = arith.constant 0 : index
    %54 = vector.load %arg11[%c7_55, %c0_56] : memref<124x64xf32, #tpu.memory_space<vmem>>, vector<108x64xf32>
    %c1_57 = arith.constant 1 : index
    %c0_58 = arith.constant 0 : index
    %c0_59 = arith.constant 0 : index
    %55 = vector.load %arg4[%c1_57, %c0_58, %c0_59] : memref<5x64x64xf32, #tpu.memory_space<vmem>>, vector<1x64x64xf32>
    %56 = vector.shape_cast %55 : vector<1x64x64xf32> to vector<64x64xf32>
    %cst_60 = arith.constant dense<0.000000e+00> : vector<108x64xf32>
    %57 = tpu.matmul %54, %56, %cst_60 {dimension_numbers = #tpu.dot_dimension_numbers<[1], [0], [0], [1], [0, 0, 1, 1], [], []>} : vector<108x64xf32>, vector<64x64xf32>, vector<108x64xf32> -> vector<108x64xf32>
    %58 = arith.addf %53, %57 : vector<108x64xf32>
    %c8_61 = arith.constant 8 : index
    %c0_62 = arith.constant 0 : index
    %59 = vector.load %arg11[%c8_61, %c0_62] : memref<124x64xf32, #tpu.memory_space<vmem>>, vector<108x64xf32>
    %c2_63 = arith.constant 2 : index
    %c0_64 = arith.constant 0 : index
    %c0_65 = arith.constant 0 : index
    %60 = vector.load %arg4[%c2_63, %c0_64, %c0_65] : memref<5x64x64xf32, #tpu.memory_space<vmem>>, vector<1x64x64xf32>
    %61 = vector.shape_cast %60 : vector<1x64x64xf32> to vector<64x64xf32>
    %cst_66 = arith.constant dense<0.000000e+00> : vector<108x64xf32>
    %62 = tpu.matmul %59, %61, %cst_66 {dimension_numbers = #tpu.dot_dimension_numbers<[1], [0], [0], [1], [0, 0, 1, 1], [], []>} : vector<108x64xf32>, vector<64x64xf32>, vector<108x64xf32> -> vector<108x64xf32>
    %63 = arith.addf %58, %62 : vector<108x64xf32>
    %c9_67 = arith.constant 9 : index
    %c0_68 = arith.constant 0 : index
    %64 = vector.load %arg11[%c9_67, %c0_68] : memref<124x64xf32, #tpu.memory_space<vmem>>, vector<108x64xf32>
    %c3_69 = arith.constant 3 : index
    %c0_70 = arith.constant 0 : index
    %c0_71 = arith.constant 0 : index
    %65 = vector.load %arg4[%c3_69, %c0_70, %c0_71] : memref<5x64x64xf32, #tpu.memory_space<vmem>>, vector<1x64x64xf32>
    %66 = vector.shape_cast %65 : vector<1x64x64xf32> to vector<64x64xf32>
    %cst_72 = arith.constant dense<0.000000e+00> : vector<108x64xf32>
    %67 = tpu.matmul %64, %66, %cst_72 {dimension_numbers = #tpu.dot_dimension_numbers<[1], [0], [0], [1], [0, 0, 1, 1], [], []>} : vector<108x64xf32>, vector<64x64xf32>, vector<108x64xf32> -> vector<108x64xf32>
    %68 = arith.addf %63, %67 : vector<108x64xf32>
    %c10_73 = arith.constant 10 : index
    %c0_74 = arith.constant 0 : index
    %69 = vector.load %arg11[%c10_73, %c0_74] : memref<124x64xf32, #tpu.memory_space<vmem>>, vector<108x64xf32>
    %c4_75 = arith.constant 4 : index
    %c0_76 = arith.constant 0 : index
    %c0_77 = arith.constant 0 : index
    %70 = vector.load %arg4[%c4_75, %c0_76, %c0_77] : memref<5x64x64xf32, #tpu.memory_space<vmem>>, vector<1x64x64xf32>
    %71 = vector.shape_cast %70 : vector<1x64x64xf32> to vector<64x64xf32>
    %cst_78 = arith.constant dense<0.000000e+00> : vector<108x64xf32>
    %72 = tpu.matmul %69, %71, %cst_78 {dimension_numbers = #tpu.dot_dimension_numbers<[1], [0], [0], [1], [0, 0, 1, 1], [], []>} : vector<108x64xf32>, vector<64x64xf32>, vector<108x64xf32> -> vector<108x64xf32>
    %73 = arith.addf %68, %72 : vector<108x64xf32>
    %c0_79 = arith.constant 0 : index
    %c0_80 = arith.constant 0 : index
    %74 = vector.load %arg14[%c0_79, %c0_80] : memref<324x64xf32, #tpu.memory_space<vmem>>, vector<108x64xf32>
    tpu.vector_store %arg14[%c0_79, %c0_80], %73 {strides = array<i32>} : memref<324x64xf32, #tpu.memory_space<vmem>>, vector<108x64xf32>,
    %c0_81 = arith.constant 0 : index
    %c0_82 = arith.constant 0 : index
    %75 = tpu.strided_load %arg14[%c0_81, %c0_82] {strides = array<i32: 3, 1>} : memref<324x64xf32, #tpu.memory_space<vmem>>, vector<36x64xf32>
    %c1_83 = arith.constant 1 : index
    %c0_84 = arith.constant 0 : index
    %76 = tpu.strided_load %arg14[%c1_83, %c0_84] {strides = array<i32: 3, 1>} : memref<324x64xf32, #tpu.memory_space<vmem>>, vector<36x64xf32>
    %77 = arith.maximumf %75, %76 : vector<36x64xf32>
    %c2_85 = arith.constant 2 : index
    %c0_86 = arith.constant 0 : index
    %78 = tpu.strided_load %arg14[%c2_85, %c0_86] {strides = array<i32: 3, 1>} : memref<324x64xf32, #tpu.memory_space<vmem>>, vector<36x64xf32>
    %79 = arith.maximumf %77, %78 : vector<36x64xf32>
    %c0_87 = arith.constant 0 : index
    %c0_88 = arith.constant 0 : index
    %80 = vector.load %arg5[%c0_87, %c0_88] : memref<1x64xf32, #tpu.memory_space<vmem>>, vector<1x64xf32>
    %81 = vector.broadcast %80 : vector<1x64xf32> to vector<36x64xf32>
    %82 = arith.addf %79, %81 : vector<36x64xf32>
    %cst_89 = arith.constant 0.000000e+00 : f32
    %83 = vector.broadcast %cst_89 : f32 to vector<36x64xf32>
    %84 = arith.maximumf %82, %83 : vector<36x64xf32>
    %c8_90 = arith.constant 8 : index
    %c0_91 = arith.constant 0 : index
    %85 = vector.load %arg12[%c8_90, %c0_91] : memref<52x64xf32, #tpu.memory_space<vmem>>, vector<36x64xf32>
    tpu.vector_store %arg12[%c8_90, %c0_91], %84 {strides = array<i32>} : memref<52x64xf32, #tpu.memory_space<vmem>>, vector<36x64xf32>,
    %c6_92 = arith.constant 6 : index
    %c0_93 = arith.constant 0 : index
    %86 = vector.load %arg12[%c6_92, %c0_93] : memref<52x64xf32, #tpu.memory_space<vmem>>, vector<36x64xf32>
    %c0_94 = arith.constant 0 : index
    %c0_95 = arith.constant 0 : index
    %c0_96 = arith.constant 0 : index
    %87 = vector.load %arg6[%c0_94, %c0_95, %c0_96] : memref<5x64x128xf32, #tpu.memory_space<vmem>>, vector<1x64x128xf32>
    %88 = vector.shape_cast %87 : vector<1x64x128xf32> to vector<64x128xf32>
    %cst_97 = arith.constant dense<0.000000e+00> : vector<36x128xf32>
    %89 = tpu.matmul %86, %88, %cst_97 {dimension_numbers = #tpu.dot_dimension_numbers<[1], [0], [0], [1], [0, 0, 1, 1], [], []>} : vector<36x64xf32>, vector<64x128xf32>, vector<36x128xf32> -> vector<36x128xf32>
    %c7_98 = arith.constant 7 : index
    %c0_99 = arith.constant 0 : index
    %90 = vector.load %arg12[%c7_98, %c0_99] : memref<52x64xf32, #tpu.memory_space<vmem>>, vector<36x64xf32>
    %c1_100 = arith.constant 1 : index
    %c0_101 = arith.constant 0 : index
    %c0_102 = arith.constant 0 : index
    %91 = vector.load %arg6[%c1_100, %c0_101, %c0_102] : memref<5x64x128xf32, #tpu.memory_space<vmem>>, vector<1x64x128xf32>
    %92 = vector.shape_cast %91 : vector<1x64x128xf32> to vector<64x128xf32>
    %cst_103 = arith.constant dense<0.000000e+00> : vector<36x128xf32>
    %93 = tpu.matmul %90, %92, %cst_103 {dimension_numbers = #tpu.dot_dimension_numbers<[1], [0], [0], [1], [0, 0, 1, 1], [], []>} : vector<36x64xf32>, vector<64x128xf32>, vector<36x128xf32> -> vector<36x128xf32>
    %94 = arith.addf %89, %93 : vector<36x128xf32>
    %c8_104 = arith.constant 8 : index
    %c0_105 = arith.constant 0 : index
    %95 = vector.load %arg12[%c8_104, %c0_105] : memref<52x64xf32, #tpu.memory_space<vmem>>, vector<36x64xf32>
    %c2_106 = arith.constant 2 : index
    %c0_107 = arith.constant 0 : index
    %c0_108 = arith.constant 0 : index
    %96 = vector.load %arg6[%c2_106, %c0_107, %c0_108] : memref<5x64x128xf32, #tpu.memory_space<vmem>>, vector<1x64x128xf32>
    %97 = vector.shape_cast %96 : vector<1x64x128xf32> to vector<64x128xf32>
    %cst_109 = arith.constant dense<0.000000e+00> : vector<36x128xf32>
    %98 = tpu.matmul %95, %97, %cst_109 {dimension_numbers = #tpu.dot_dimension_numbers<[1], [0], [0], [1], [0, 0, 1, 1], [], []>} : vector<36x64xf32>, vector<64x128xf32>, vector<36x128xf32> -> vector<36x128xf32>
    %99 = arith.addf %94, %98 : vector<36x128xf32>
    %c9_110 = arith.constant 9 : index
    %c0_111 = arith.constant 0 : index
    %100 = vector.load %arg12[%c9_110, %c0_111] : memref<52x64xf32, #tpu.memory_space<vmem>>, vector<36x64xf32>
    %c3_112 = arith.constant 3 : index
    %c0_113 = arith.constant 0 : index
    %c0_114 = arith.constant 0 : index
    %101 = vector.load %arg6[%c3_112, %c0_113, %c0_114] : memref<5x64x128xf32, #tpu.memory_space<vmem>>, vector<1x64x128xf32>
    %102 = vector.shape_cast %101 : vector<1x64x128xf32> to vector<64x128xf32>
    %cst_115 = arith.constant dense<0.000000e+00> : vector<36x128xf32>
    %103 = tpu.matmul %100, %102, %cst_115 {dimension_numbers = #tpu.dot_dimension_numbers<[1], [0], [0], [1], [0, 0, 1, 1], [], []>} : vector<36x64xf32>, vector<64x128xf32>, vector<36x128xf32> -> vector<36x128xf32>
    %104 = arith.addf %99, %103 : vector<36x128xf32>
    %c10_116 = arith.constant 10 : index
    %c0_117 = arith.constant 0 : index
    %105 = vector.load %arg12[%c10_116, %c0_117] : memref<52x64xf32, #tpu.memory_space<vmem>>, vector<36x64xf32>
    %c4_118 = arith.constant 4 : index
    %c0_119 = arith.constant 0 : index
    %c0_120 = arith.constant 0 : index
    %106 = vector.load %arg6[%c4_118, %c0_119, %c0_120] : memref<5x64x128xf32, #tpu.memory_space<vmem>>, vector<1x64x128xf32>
    %107 = vector.shape_cast %106 : vector<1x64x128xf32> to vector<64x128xf32>
    %cst_121 = arith.constant dense<0.000000e+00> : vector<36x128xf32>
    %108 = tpu.matmul %105, %107, %cst_121 {dimension_numbers = #tpu.dot_dimension_numbers<[1], [0], [0], [1], [0, 0, 1, 1], [], []>} : vector<36x64xf32>, vector<64x128xf32>, vector<36x128xf32> -> vector<36x128xf32>
    %109 = arith.addf %104, %108 : vector<36x128xf32>
    %c0_122 = arith.constant 0 : index
    %c0_123 = arith.constant 0 : index
    %110 = vector.load %arg15[%c0_122, %c0_123] : memref<36x128xf32, #tpu.memory_space<vmem>>, vector<36x128xf32>
    tpu.vector_store %arg15[%c0_122, %c0_123], %109 {strides = array<i32>} : memref<36x128xf32, #tpu.memory_space<vmem>>, vector<36x128xf32>,
    %c0_124 = arith.constant 0 : index
    %c0_125 = arith.constant 0 : index
    %111 = tpu.strided_load %arg15[%c0_124, %c0_125] {strides = array<i32: 3, 1>} : memref<36x128xf32, #tpu.memory_space<vmem>>, vector<12x128xf32>
    %c1_126 = arith.constant 1 : index
    %c0_127 = arith.constant 0 : index
    %112 = tpu.strided_load %arg15[%c1_126, %c0_127] {strides = array<i32: 3, 1>} : memref<36x128xf32, #tpu.memory_space<vmem>>, vector<12x128xf32>
    %113 = arith.maximumf %111, %112 : vector<12x128xf32>
    %c2_128 = arith.constant 2 : index
    %c0_129 = arith.constant 0 : index
    %114 = tpu.strided_load %arg15[%c2_128, %c0_129] {strides = array<i32: 3, 1>} : memref<36x128xf32, #tpu.memory_space<vmem>>, vector<12x128xf32>
    %115 = arith.maximumf %113, %114 : vector<12x128xf32>
    %c0_130 = arith.constant 0 : index
    %c0_131 = arith.constant 0 : index
    %116 = vector.load %arg7[%c0_130, %c0_131] : memref<1x128xf32, #tpu.memory_space<vmem>>, vector<1x128xf32>
    %117 = vector.broadcast %116 : vector<1x128xf32> to vector<12x128xf32>
    %118 = arith.addf %115, %117 : vector<12x128xf32>
    %cst_132 = arith.constant 0.000000e+00 : f32
    %119 = vector.broadcast %cst_132 : f32 to vector<12x128xf32>
    %120 = arith.maximumf %118, %119 : vector<12x128xf32>
    %c8_133 = arith.constant 8 : index
    %c0_134 = arith.constant 0 : index
    %121 = vector.load %arg13[%c8_133, %c0_134] : memref<28x128xf32, #tpu.memory_space<vmem>>, vector<12x128xf32>
    tpu.vector_store %arg13[%c8_133, %c0_134], %120 {strides = array<i32>} : memref<28x128xf32, #tpu.memory_space<vmem>>, vector<12x128xf32>,
    %c6_135 = arith.constant 6 : index
    %c0_136 = arith.constant 0 : index
    %122 = vector.load %arg13[%c6_135, %c0_136] : memref<28x128xf32, #tpu.memory_space<vmem>>, vector<12x128xf32>
    %c0_137 = arith.constant 0 : index
    %c0_138 = arith.constant 0 : index
    %c0_139 = arith.constant 0 : index
    %123 = vector.load %arg8[%c0_137, %c0_138, %c0_139] : memref<5x128x128xf32, #tpu.memory_space<vmem>>, vector<1x128x128xf32>
    %124 = vector.shape_cast %123 : vector<1x128x128xf32> to vector<128x128xf32>
    %cst_140 = arith.constant dense<0.000000e+00> : vector<12x128xf32>
    %125 = tpu.matmul %122, %124, %cst_140 {dimension_numbers = #tpu.dot_dimension_numbers<[1], [0], [0], [1], [0, 0, 1, 1], [], []>} : vector<12x128xf32>, vector<128x128xf32>, vector<12x128xf32> -> vector<12x128xf32>
    %c7_141 = arith.constant 7 : index
    %c0_142 = arith.constant 0 : index
    %126 = vector.load %arg13[%c7_141, %c0_142] : memref<28x128xf32, #tpu.memory_space<vmem>>, vector<12x128xf32>
    %c1_143 = arith.constant 1 : index
    %c0_144 = arith.constant 0 : index
    %c0_145 = arith.constant 0 : index
    %127 = vector.load %arg8[%c1_143, %c0_144, %c0_145] : memref<5x128x128xf32, #tpu.memory_space<vmem>>, vector<1x128x128xf32>
    %128 = vector.shape_cast %127 : vector<1x128x128xf32> to vector<128x128xf32>
    %cst_146 = arith.constant dense<0.000000e+00> : vector<12x128xf32>
    %129 = tpu.matmul %126, %128, %cst_146 {dimension_numbers = #tpu.dot_dimension_numbers<[1], [0], [0], [1], [0, 0, 1, 1], [], []>} : vector<12x128xf32>, vector<128x128xf32>, vector<12x128xf32> -> vector<12x128xf32>
    %130 = arith.addf %125, %129 : vector<12x128xf32>
    %c8_147 = arith.constant 8 : index
    %c0_148 = arith.constant 0 : index
    %131 = vector.load %arg13[%c8_147, %c0_148] : memref<28x128xf32, #tpu.memory_space<vmem>>, vector<12x128xf32>
    %c2_149 = arith.constant 2 : index
    %c0_150 = arith.constant 0 : index
    %c0_151 = arith.constant 0 : index
    %132 = vector.load %arg8[%c2_149, %c0_150, %c0_151] : memref<5x128x128xf32, #tpu.memory_space<vmem>>, vector<1x128x128xf32>
    %133 = vector.shape_cast %132 : vector<1x128x128xf32> to vector<128x128xf32>
    %cst_152 = arith.constant dense<0.000000e+00> : vector<12x128xf32>
    %134 = tpu.matmul %131, %133, %cst_152 {dimension_numbers = #tpu.dot_dimension_numbers<[1], [0], [0], [1], [0, 0, 1, 1], [], []>} : vector<12x128xf32>, vector<128x128xf32>, vector<12x128xf32> -> vector<12x128xf32>
    %135 = arith.addf %130, %134 : vector<12x128xf32>
    %c9_153 = arith.constant 9 : index
    %c0_154 = arith.constant 0 : index
    %136 = vector.load %arg13[%c9_153, %c0_154] : memref<28x128xf32, #tpu.memory_space<vmem>>, vector<12x128xf32>
    %c3_155 = arith.constant 3 : index
    %c0_156 = arith.constant 0 : index
    %c0_157 = arith.constant 0 : index
    %137 = vector.load %arg8[%c3_155, %c0_156, %c0_157] : memref<5x128x128xf32, #tpu.memory_space<vmem>>, vector<1x128x128xf32>
    %138 = vector.shape_cast %137 : vector<1x128x128xf32> to vector<128x128xf32>
    %cst_158 = arith.constant dense<0.000000e+00> : vector<12x128xf32>
    %139 = tpu.matmul %136, %138, %cst_158 {dimension_numbers = #tpu.dot_dimension_numbers<[1], [0], [0], [1], [0, 0, 1, 1], [], []>} : vector<12x128xf32>, vector<128x128xf32>, vector<12x128xf32> -> vector<12x128xf32>
    %140 = arith.addf %135, %139 : vector<12x128xf32>
    %c10_159 = arith.constant 10 : index
    %c0_160 = arith.constant 0 : index
    %141 = vector.load %arg13[%c10_159, %c0_160] : memref<28x128xf32, #tpu.memory_space<vmem>>, vector<12x128xf32>
    %c4_161 = arith.constant 4 : index
    %c0_162 = arith.constant 0 : index
    %c0_163 = arith.constant 0 : index
    %142 = vector.load %arg8[%c4_161, %c0_162, %c0_163] : memref<5x128x128xf32, #tpu.memory_space<vmem>>, vector<1x128x128xf32>
    %143 = vector.shape_cast %142 : vector<1x128x128xf32> to vector<128x128xf32>
    %cst_164 = arith.constant dense<0.000000e+00> : vector<12x128xf32>
    %144 = tpu.matmul %141, %143, %cst_164 {dimension_numbers = #tpu.dot_dimension_numbers<[1], [0], [0], [1], [0, 0, 1, 1], [], []>} : vector<12x128xf32>, vector<128x128xf32>, vector<12x128xf32> -> vector<12x128xf32>
    %145 = arith.addf %140, %144 : vector<12x128xf32>
    %c0_165 = arith.constant 0 : index
    %c0_166 = arith.constant 0 : index
    %146 = vector.load %arg15[%c0_165, %c0_166] : memref<36x128xf32, #tpu.memory_space<vmem>>, vector<12x128xf32>
    tpu.vector_store %arg15[%c0_165, %c0_166], %145 {strides = array<i32>} : memref<36x128xf32, #tpu.memory_space<vmem>>, vector<12x128xf32>,
    %c0_167 = arith.constant 0 : index
    %c0_168 = arith.constant 0 : index
    %147 = tpu.strided_load %arg15[%c0_167, %c0_168] {strides = array<i32: 3, 1>} : memref<36x128xf32, #tpu.memory_space<vmem>>, vector<4x128xf32>
    %c1_169 = arith.constant 1 : index
    %c0_170 = arith.constant 0 : index
    %148 = tpu.strided_load %arg15[%c1_169, %c0_170] {strides = array<i32: 3, 1>} : memref<36x128xf32, #tpu.memory_space<vmem>>, vector<4x128xf32>
    %149 = arith.maximumf %147, %148 : vector<4x128xf32>
    %c2_171 = arith.constant 2 : index
    %c0_172 = arith.constant 0 : index
    %150 = tpu.strided_load %arg15[%c2_171, %c0_172] {strides = array<i32: 3, 1>} : memref<36x128xf32, #tpu.memory_space<vmem>>, vector<4x128xf32>
    %151 = arith.maximumf %149, %150 : vector<4x128xf32>
    %c0_173 = arith.constant 0 : index
    %c0_174 = arith.constant 0 : index
    %152 = vector.load %arg9[%c0_173, %c0_174] : memref<1x128xf32, #tpu.memory_space<vmem>>, vector<1x128xf32>
    %153 = vector.broadcast %152 : vector<1x128xf32> to vector<4x128xf32>
    %154 = arith.addf %151, %153 : vector<4x128xf32>
    %cst_175 = arith.constant 0.000000e+00 : f32
    %155 = vector.broadcast %cst_175 : f32 to vector<4x128xf32>
    %156 = arith.maximumf %154, %155 : vector<4x128xf32>
    %c0_176 = arith.constant 0 : index
    %c0_177 = arith.constant 0 : index
    %c0_178 = arith.constant 0 : index
    %157 = vector.load %arg10[%c0_176, %c0_177, %c0_178] : memref<1x4x128xf32, #tpu.memory_space<vmem>>, vector<1x4x128xf32>
    %158 = vector.shape_cast %157 : vector<1x4x128xf32> to vector<4x128xf32>
    %159 = vector.shape_cast %156 : vector<4x128xf32> to vector<1x4x128xf32>
    tpu.vector_store %arg10[%c0_176, %c0_177, %c0_178], %159 {strides = array<i32>} : memref<1x4x128xf32, #tpu.memory_space<vmem>>, vector<1x4x128xf32>,
    return
  }
  func.func @transform_0(%arg0: i32) -> (i32, i32, i32) {
    %c0_i32 = arith.constant 0 : i32
    %c0_i32_0 = arith.constant 0 : i32
    %c0_i32_1 = arith.constant 0 : i32
    return %arg0, %c0_i32, %c0_i32_0 : i32, i32, i32
  }
  func.func @transform_1(%arg0: i32) -> (i32, i32, i32) {
    %c0_i32 = arith.constant 0 : i32
    %c0_i32_0 = arith.constant 0 : i32
    %c0_i32_1 = arith.constant 0 : i32
    %c0_i32_2 = arith.constant 0 : i32
    return %c0_i32, %c0_i32_0, %c0_i32_1 : i32, i32, i32
  }
  func.func @transform_2(%arg0: i32) -> (i32, i32) {
    %c0_i32 = arith.constant 0 : i32
    %c0_i32_0 = arith.constant 0 : i32
    %c0_i32_1 = arith.constant 0 : i32
    return %c0_i32, %c0_i32_0 : i32, i32
  }
  func.func @transform_3(%arg0: i32) -> (i32, i32, i32) {
    %c0_i32 = arith.constant 0 : i32
    %c0_i32_0 = arith.constant 0 : i32
    %c0_i32_1 = arith.constant 0 : i32
    %c0_i32_2 = arith.constant 0 : i32
    return %c0_i32, %c0_i32_0, %c0_i32_1 : i32, i32, i32
  }
  func.func @transform_4(%arg0: i32) -> (i32, i32) {
    %c0_i32 = arith.constant 0 : i32
    %c0_i32_0 = arith.constant 0 : i32
    %c0_i32_1 = arith.constant 0 : i32
    return %c0_i32, %c0_i32_0 : i32, i32
  }
  func.func @transform_5(%arg0: i32) -> (i32, i32, i32) {
    %c0_i32 = arith.constant 0 : i32
    %c0_i32_0 = arith.constant 0 : i32
    %c0_i32_1 = arith.constant 0 : i32
    %c0_i32_2 = arith.constant 0 : i32
    return %c0_i32, %c0_i32_0, %c0_i32_1 : i32, i32, i32
  }
  func.func @transform_6(%arg0: i32) -> (i32, i32) {
    %c0_i32 = arith.constant 0 : i32
    %c0_i32_0 = arith.constant 0 : i32
    %c0_i32_1 = arith.constant 0 : i32
    return %c0_i32, %c0_i32_0 : i32, i32
  }
  func.func @transform_7(%arg0: i32) -> (i32, i32, i32) {
    %c0_i32 = arith.constant 0 : i32
    %c0_i32_0 = arith.constant 0 : i32
    %c0_i32_1 = arith.constant 0 : i32
    %c0_i32_2 = arith.constant 0 : i32
    return %c0_i32, %c0_i32_0, %c0_i32_1 : i32, i32, i32
  }
  func.func @transform_8(%arg0: i32) -> (i32, i32) {
    %c0_i32 = arith.constant 0 : i32
    %c0_i32_0 = arith.constant 0 : i32
    %c0_i32_1 = arith.constant 0 : i32
    return %c0_i32, %c0_i32_0 : i32, i32
  }
  func.func @transform_9(%arg0: i32) -> (i32, i32, i32) {
    %c0_i32 = arith.constant 0 : i32
    %c0_i32_0 = arith.constant 0 : i32
    %c0_i32_1 = arith.constant 0 : i32
    return %arg0, %c0_i32, %c0_i32_0 : i32, i32, i32
  }
}

module attributes {stable_mosaic.version = 11 : i64} {
  func.func @fc_kernel(%arg0: i32, %arg1: memref<8x160xf32, #tpu.memory_space<vmem>>, %arg2: memref<160x128xf32, #tpu.memory_space<vmem>>, %arg3: memref<1x128xf32, #tpu.memory_space<vmem>>, %arg4: memref<128x128xf32, #tpu.memory_space<vmem>>, %arg5: memref<1x128xf32, #tpu.memory_space<vmem>>, %arg6: memref<8x128xf32, #tpu.memory_space<vmem>>) attributes {dimension_semantics = [#tpu.dimension_semantics<parallel>], iteration_bounds = array<i64: 2>, scalar_prefetch = 0 : i64, scratch_operands = 0 : i64, tpu.core_type = #tpu.core_type<tc>, window_params = [{transform_indices = @transform_0, window_bounds = array<i64: 8, 160>}, {pipeline_mode = #tpu.pipeline_mode<synchronous>, transform_indices = @transform_1, window_bounds = array<i64: 160, 128>}, {pipeline_mode = #tpu.pipeline_mode<synchronous>, transform_indices = @transform_2, window_bounds = array<i64: 1, 128>}, {pipeline_mode = #tpu.pipeline_mode<synchronous>, transform_indices = @transform_3, window_bounds = array<i64: 128, 128>}, {pipeline_mode = #tpu.pipeline_mode<synchronous>, transform_indices = @transform_4, window_bounds = array<i64: 1, 128>}, {transform_indices = @transform_5, window_bounds = array<i64: 8, 128>}]} {
    %c0 = arith.constant 0 : index
    %c0_0 = arith.constant 0 : index
    %0 = vector.load %arg1[%c0, %c0_0] : memref<8x160xf32, #tpu.memory_space<vmem>>, vector<8x160xf32>
    %c0_1 = arith.constant 0 : index
    %c0_2 = arith.constant 0 : index
    %1 = vector.load %arg2[%c0_1, %c0_2] : memref<160x128xf32, #tpu.memory_space<vmem>>, vector<160x128xf32>
    %cst = arith.constant dense<0.000000e+00> : vector<8x128xf32>
    %2 = tpu.matmul %0, %1, %cst {dimension_numbers = #tpu.dot_dimension_numbers<[1], [0], [0], [1], [0, 0, 1, 1], [], []>} : vector<8x160xf32>, vector<160x128xf32>, vector<8x128xf32> -> vector<8x128xf32>
    %c0_3 = arith.constant 0 : index
    %c0_4 = arith.constant 0 : index
    %3 = vector.load %arg3[%c0_3, %c0_4] : memref<1x128xf32, #tpu.memory_space<vmem>>, vector<1x128xf32>
    %4 = vector.broadcast %3 : vector<1x128xf32> to vector<8x128xf32>
    %5 = arith.addf %2, %4 : vector<8x128xf32>
    %cst_5 = arith.constant 0.000000e+00 : f32
    %6 = vector.broadcast %cst_5 : f32 to vector<8x128xf32>
    %7 = arith.maximumf %5, %6 : vector<8x128xf32>
    %c0_6 = arith.constant 0 : index
    %c0_7 = arith.constant 0 : index
    %8 = vector.load %arg4[%c0_6, %c0_7] : memref<128x128xf32, #tpu.memory_space<vmem>>, vector<128x128xf32>
    %cst_8 = arith.constant dense<0.000000e+00> : vector<8x128xf32>
    %9 = tpu.matmul %7, %8, %cst_8 {dimension_numbers = #tpu.dot_dimension_numbers<[1], [0], [0], [1], [0, 0, 1, 1], [], []>} : vector<8x128xf32>, vector<128x128xf32>, vector<8x128xf32> -> vector<8x128xf32>
    %c0_9 = arith.constant 0 : index
    %c0_10 = arith.constant 0 : index
    %10 = vector.load %arg5[%c0_9, %c0_10] : memref<1x128xf32, #tpu.memory_space<vmem>>, vector<1x128xf32>
    %11 = vector.broadcast %10 : vector<1x128xf32> to vector<8x128xf32>
    %12 = arith.addf %9, %11 : vector<8x128xf32>
    %cst_11 = arith.constant 0.000000e+00 : f32
    %13 = vector.broadcast %cst_11 : f32 to vector<8x128xf32>
    %14 = arith.maximumf %12, %13 : vector<8x128xf32>
    %c0_12 = arith.constant 0 : index
    %c0_13 = arith.constant 0 : index
    %15 = vector.load %arg6[%c0_12, %c0_13] : memref<8x128xf32, #tpu.memory_space<vmem>>, vector<8x128xf32>
    tpu.vector_store %arg6[%c0_12, %c0_13], %14 {strides = array<i32>} : memref<8x128xf32, #tpu.memory_space<vmem>>, vector<8x128xf32>,
    return
  }
  func.func @transform_0(%arg0: i32) -> (i32, i32) {
    %c0_i32 = arith.constant 0 : i32
    %c0_i32_0 = arith.constant 0 : i32
    return %arg0, %c0_i32 : i32, i32
  }
  func.func @transform_1(%arg0: i32) -> (i32, i32) {
    %c0_i32 = arith.constant 0 : i32
    %c0_i32_0 = arith.constant 0 : i32
    %c0_i32_1 = arith.constant 0 : i32
    return %c0_i32, %c0_i32_0 : i32, i32
  }
  func.func @transform_2(%arg0: i32) -> (i32, i32) {
    %c0_i32 = arith.constant 0 : i32
    %c0_i32_0 = arith.constant 0 : i32
    %c0_i32_1 = arith.constant 0 : i32
    return %c0_i32, %c0_i32_0 : i32, i32
  }
  func.func @transform_3(%arg0: i32) -> (i32, i32) {
    %c0_i32 = arith.constant 0 : i32
    %c0_i32_0 = arith.constant 0 : i32
    %c0_i32_1 = arith.constant 0 : i32
    return %c0_i32, %c0_i32_0 : i32, i32
  }
  func.func @transform_4(%arg0: i32) -> (i32, i32) {
    %c0_i32 = arith.constant 0 : i32
    %c0_i32_0 = arith.constant 0 : i32
    %c0_i32_1 = arith.constant 0 : i32
    return %c0_i32, %c0_i32_0 : i32, i32
  }
  func.func @transform_5(%arg0: i32) -> (i32, i32) {
    %c0_i32 = arith.constant 0 : i32
    %c0_i32_0 = arith.constant 0 : i32
    return %arg0, %c0_i32 : i32, i32
  }
}

</mosaic_0001>

<llo_original>
// kernel: squeeze.1
$region0: #{squeeze.1}
  %s0 = inlined_call_operand.vmem [shape: f32[8,324], index: 0, kind: input, shape index: {}]
  %s1 = inlined_call_operand.vmem [shape: f32[2,4,324], index: 1, kind: output, shape index: {}]
  $region1: #{squeeze.1} parent=0
    #allocation0 [shape = 'u8[24576]{0}', space=vmem, size = 0x6000, scoped, tag = 'scoped mem for output reshape']
    %s2 = scalar_lea.vmem %s0, 16
    %v3 = vld [vmem:[%s2] sm:$0xff]
    %vm4 = vcmask 556032
    %s5 = scalar_lea.vmem [#allocation0], 16
    %6 = vst.msk [vmem:[%s5] sm:$0xf] %vm4, %v3
    %s7 = scalar_lea.vmem [#allocation0], 36
    %8 = vst.msk [vmem:[%s7] sm:$0xf0] %vm4, %v3
    %v9 = vld [vmem:[%s0] sm:$0xff]
    %10 = vst [vmem:[#allocation0] sm:$0xf] %v9
    %s11 = scalar_lea.vmem [#allocation0], 20
    %12 = vst [vmem:[%s11] sm:$0xf0] %v9
    %s13 = scalar_lea.vmem %s0, 8
    %v14 = vld [vmem:[%s13] sm:$0xff]
    %s15 = scalar_lea.vmem [#allocation0], 8
    %16 = vst [vmem:[%s15] sm:$0xf] %v14
    %s17 = scalar_lea.vmem [#allocation0], 28
    %18 = vst [vmem:[%s17] sm:$0xf0] %v14
    %s20 = sshll.u32 1, 4
    %s21 = ssub.s32 %s20, 1
    %v23 = vld [vmem:[#allocation0] sm:%s21]
    %s24 = sshll.u32 1, 4
    %s25 = ssub.s32 %s24, 1
    %26 = vst [vmem:[%s1] sm:%s25] %v23
    %s27 = scalar_lea.vmem [#allocation0], 8
    %v28 = vld [vmem:[%s27] sm:%s21]
    %s29 = sshll.u32 1, 4
    %s30 = ssub.s32 %s29, 1
    %s31 = scalar_lea.vmem %s1, 4
    %32 = vst [vmem:[%s31] sm:%s30] %v28
    %s33 = scalar_lea.vmem [#allocation0], 16
    %v34 = vld [vmem:[%s33] sm:%s21]
    %s35 = sshll.u32 1, 4
    %s36 = ssub.s32 %s35, 1
    %s37 = smul.addr 4, 2
    %s38 = scalar_lea.vmem %s1, %s37
    %39 = vst [vmem:[%s38] sm:%s36] %v34
    %s40 = scalar_lea.vmem [#allocation0], 24
    %v41 = vld [vmem:[%s40] sm:%s21]
    %s42 = sshll.u32 1, 4
    %s43 = ssub.s32 %s42, 1
    %s44 = smul.addr 4, 3
    %s45 = scalar_lea.vmem %s1, %s44
    %46 = vst [vmem:[%s45] sm:%s43] %v41
    %s47 = scalar_lea.vmem [#allocation0], 32
    %v48 = vld [vmem:[%s47] sm:%s21]
    %s49 = sshll.u32 1, 4
    %s50 = ssub.s32 %s49, 1
    %s51 = smul.addr 4, 4
    %s52 = scalar_lea.vmem %s1, %s51
    %53 = vst [vmem:[%s52] sm:%s50] %v48
    %s54 = scalar_lea.vmem [#allocation0], 40
    %v55 = vld [vmem:[%s54] sm:%s21]
    %s56 = sshll.u32 1, 4
    %s57 = ssub.s32 %s56, 1
    %s58 = smul.addr 4, 5
    %s59 = scalar_lea.vmem %s1, %s58
    %60 = vst [vmem:[%s59] sm:%s57] %v55

// kernel: secure_model_forward.3
$region0: #{secure_model_forward.3}
  #allocation0 [shape = 'u32[]', space=smem, size = 0x4, offset = 0x4, fixed_abs, tag = 'smem constant byte address 0x4 - core index']
  #allocation1 [shape = 'u32[144,128]{1,0:T(1,128)}', space=vmem, size = 0x12000, scoped, tag = 'internal scratch']
  %s0 = inlined_call_operand.vmem [shape: f32[16,160], index: 0, kind: input, shape index: {}]
  %s1 = inlined_call_operand.vmem [shape: f32[160,128], index: 1, kind: input, shape index: {}]
  %s2 = inlined_call_operand.vmem [shape: f32[1,128], index: 2, kind: input, shape index: {}]
  %s3 = inlined_call_operand.vmem [shape: f32[128,128], index: 3, kind: input, shape index: {}]
  %s4 = inlined_call_operand.vmem [shape: f32[1,128], index: 4, kind: input, shape index: {}]
  %s5 = inlined_call_operand.vmem [shape: f32[16,128], index: 5, kind: output, shape index: {}]
  %s6 = sld [smem:[#allocation0]]
  $region53: #{secure_model_forward.3} parent=0
    _
  %s8 = ssub.s32 1, %s6
  %s9 = scalar_select 0, %s8, %s6
  loop: start=0, step=1, limit=4
  $region2: #{secure_model_forward.3} parent=0 // loop_pre_header
    _
  $region3: #{secure_model_forward.3} parent=0 // loop_header
    %s11 = sphi 0, %s15
    %p12 = scmp.ge.s32.totalorder %s11, 4
    %s21 = sphi 0, %s23
    %s24 = sphi 0, %s21
    %s25 = sphi 0, %s24
    %s41 = sphi 0, %s25
    %s45 = sphi 0, %s45
    %s47 = sphi 0, %s45
    %s48 = sphi 0, %s47
    %s62 = sphi 0, %s48
    %s66 = sphi 0, %s66
    %s68 = sphi 0, %s66
    %s69 = sphi 0, %s68
    %s83 = sphi 0, %s69
    %s87 = sphi 0, %s87
    %s89 = sphi 0, %s87
    %s90 = sphi 0, %s89
    %s104 = sphi 0, %s90
    %s108 = sphi 0, %s108
    %s110 = sphi 0, %s108
    %s111 = sphi 0, %s110
    %s125 = sphi 0, %s111
    %s131 = sphi 0, %s133
    %s134 = sphi 0, %s131
    %s135 = sphi 0, %s134
    %s151 = sphi 0, %s135
  $region4: #{secure_model_forward.3} parent=0 // loop_header_branch
    %14 = sbr.rel (%p12) target = $region8
  $region5: #{secure_model_forward.3} parent=0 // loop_body
    %s16 = ssub.s32 %s11, 1
    %s17 = ssub.s32 %s11, 2
    %s18 = sadd.s32 %s11, 1
    %s19 = ssub.s32 %s11, %s18
    %p20 = scmp.eq.s32.totalorder %s19, 0
    %s22 = sadd.s32 %s21, 1
    %s23 = scalar_select %p20, %s21, %s22
    %p26 = pneg %p20
    %p27 = scmp.eq.s32.totalorder %s11, 1
    %p28 = por %p26, %p27
    %p29 = scmp.ne.s32.totalorder %s21, %s24
    %p30 = scmp.eq.s32.totalorder %s11, 0
    %p31 = por %p29, %p30
    %p32 = scmp.ne.s32.totalorder %s21, %s24
    %p33 = scmp.eq.s32.totalorder %s16, 1
    %p34 = por %p32, %p33
    %p35 = scmp.ne.s32.totalorder %s24, %s25
    %p36 = scmp.eq.s32.totalorder %s16, 0
    %p37 = por %p35, %p36
    %p38 = scmp.ne.s32.totalorder %s24, %s25
    %p39 = scmp.eq.s32.totalorder %s17, 1
    %p40 = por %p38, %p39
    %p42 = scmp.ne.s32.totalorder %s25, %s41
    %p43 = scmp.eq.s32.totalorder %s17, 0
    %p44 = por %p42, %p43
    %s46 = sadd.s32 %s45, 1
    %p49 = scmp.eq.s32.totalorder %s11, 1
    %p50 = scmp.ne.s32.totalorder %s45, %s47
    %p51 = scmp.eq.s32.totalorder %s11, 0
    %p52 = por %p50, %p51
    %p53 = scmp.ne.s32.totalorder %s45, %s47
    %p54 = scmp.eq.s32.totalorder %s16, 1
    %p55 = por %p53, %p54
    %p56 = scmp.ne.s32.totalorder %s47, %s48
    %p57 = scmp.eq.s32.totalorder %s16, 0
    %p58 = por %p56, %p57
    %p59 = scmp.ne.s32.totalorder %s47, %s48
    %p60 = scmp.eq.s32.totalorder %s17, 1
    %p61 = por %p59, %p60
    %p63 = scmp.ne.s32.totalorder %s48, %s62
    %p64 = scmp.eq.s32.totalorder %s17, 0
    %p65 = por %p63, %p64
    %s67 = sadd.s32 %s66, 1
    %p70 = scmp.eq.s32.totalorder %s11, 1
    %p71 = scmp.ne.s32.totalorder %s66, %s68
    %p72 = scmp.eq.s32.totalorder %s11, 0
    %p73 = por %p71, %p72
    %p74 = scmp.ne.s32.totalorder %s66, %s68
    %p75 = scmp.eq.s32.totalorder %s16, 1
    %p76 = por %p74, %p75
    %p77 = scmp.ne.s32.totalorder %s68, %s69
    %p78 = scmp.eq.s32.totalorder %s16, 0
    %p79 = por %p77, %p78
    %p80 = scmp.ne.s32.totalorder %s68, %s69
    %p81 = scmp.eq.s32.totalorder %s17, 1
    %p82 = por %p80, %p81
    %p84 = scmp.ne.s32.totalorder %s69, %s83
    %p85 = scmp.eq.s32.totalorder %s17, 0
    %p86 = por %p84, %p85
    %s88 = sadd.s32 %s87, 1
    %p91 = scmp.eq.s32.totalorder %s11, 1
    %p92 = scmp.ne.s32.totalorder %s87, %s89
    %p93 = scmp.eq.s32.totalorder %s11, 0
    %p94 = por %p92, %p93
    %p95 = scmp.ne.s32.totalorder %s87, %s89
    %p96 = scmp.eq.s32.totalorder %s16, 1
    %p97 = por %p95, %p96
    %p98 = scmp.ne.s32.totalorder %s89, %s90
    %p99 = scmp.eq.s32.totalorder %s16, 0
    %p100 = por %p98, %p99
    %p101 = scmp.ne.s32.totalorder %s89, %s90
    %p102 = scmp.eq.s32.totalorder %s17, 1
    %p103 = por %p101, %p102
    %p105 = scmp.ne.s32.totalorder %s90, %s104
    %p106 = scmp.eq.s32.totalorder %s17, 0
    %p107 = por %p105, %p106
    %s109 = sadd.s32 %s108, 1
    %p112 = scmp.eq.s32.totalorder %s11, 1
    %p113 = scmp.ne.s32.totalorder %s108, %s110
    %p114 = scmp.eq.s32.totalorder %s11, 0
    %p115 = por %p113, %p114
    %p116 = scmp.ne.s32.totalorder %s108, %s110
    %p117 = scmp.eq.s32.totalorder %s16, 1
    %p118 = por %p116, %p117
    %p119 = scmp.ne.s32.totalorder %s110, %s111
    %p120 = scmp.eq.s32.totalorder %s16, 0
    %p121 = por %p119, %p120
    %p122 = scmp.ne.s32.totalorder %s110, %s111
    %p123 = scmp.eq.s32.totalorder %s17, 1
    %p124 = por %p122, %p123
    %p126 = scmp.ne.s32.totalorder %s111, %s125
    %p127 = scmp.eq.s32.totalorder %s17, 0
    %p128 = por %p126, %p127
    %s129 = ssub.s32 %s11, %s18
    %p130 = scmp.eq.s32.totalorder %s129, 0
    %s132 = sadd.s32 %s131, 1
    %s133 = scalar_select %p130, %s131, %s132
    %p136 = pneg %p130
    %p137 = scmp.eq.s32.totalorder %s11, 1
    %p138 = por %p136, %p137
    %p139 = scmp.ne.s32.totalorder %s131, %s134
    %p140 = scmp.eq.s32.totalorder %s11, 0
    %p141 = por %p139, %p140
    %p142 = scmp.ne.s32.totalorder %s131, %s134
    %p143 = scmp.eq.s32.totalorder %s16, 1
    %p144 = por %p142, %p143
    %p145 = scmp.ne.s32.totalorder %s134, %s135
    %p146 = scmp.eq.s32.totalorder %s16, 0
    %p147 = por %p145, %p146
    %p148 = scmp.ne.s32.totalorder %s134, %s135
    %p149 = scmp.eq.s32.totalorder %s17, 1
    %p150 = por %p148, %p149
    %p152 = scmp.ne.s32.totalorder %s135, %s151
    %p153 = scmp.eq.s32.totalorder %s17, 0
    %p154 = por %p152, %p153
    %p155 = scmp.le.s32.totalorder 1, %s11
    %p156 = scmp.lt.s32.totalorder %s11, 3
    %p157 = pnand %p155, %p156
    %p158 = pneg %p157
    // Predicated region
    $region9: #{secure_model_forward.3} parent=5 // pred_check
      _
    $region10: #{secure_model_forward.3} parent=5 // pred_check_branch
      %160 = sbr.rel (%p157) target = $region12
    $region11: #{secure_model_forward.3} parent=5 // pred_region
      %s161 = ssub.s32 %s11, 1
      // Predicated region
      $region13: #{secure_model_forward.3} parent=11 // pred_check
        %p162 = pneg %p58
      $region14: #{secure_model_forward.3} parent=11 // pred_check_branch
        %164 = sbr.rel (%p162) target = $region16
      $region15: #{secure_model_forward.3} parent=11 // pred_region
        _
      $region16: #{secure_model_forward.3} parent=11 // pred_fallthru
        _
      // Predicated region
      $region17: #{secure_model_forward.3} parent=11 // pred_check
        %p165 = pneg %p79
      $region18: #{secure_model_forward.3} parent=11 // pred_check_branch
        %167 = sbr.rel (%p165) target = $region20
      $region19: #{secure_model_forward.3} parent=11 // pred_region
        _
      $region20: #{secure_model_forward.3} parent=11 // pred_fallthru
        _
      // Predicated region
      $region21: #{secure_model_forward.3} parent=11 // pred_check
        %p168 = pneg %p100
      $region22: #{secure_model_forward.3} parent=11 // pred_check_branch
        %170 = sbr.rel (%p168) target = $region24
      $region23: #{secure_model_forward.3} parent=11 // pred_region
        _
      $region24: #{secure_model_forward.3} parent=11 // pred_fallthru
        _
      // Predicated region
      $region25: #{secure_model_forward.3} parent=11 // pred_check
        %p171 = pneg %p121
      $region26: #{secure_model_forward.3} parent=11 // pred_check_branch
        %173 = sbr.rel (%p171) target = $region28
      $region27: #{secure_model_forward.3} parent=11 // pred_region
        _
      $region28: #{secure_model_forward.3} parent=11 // pred_fallthru
        _
    $region12: #{secure_model_forward.3} parent=5 // pred_fallthru
      _
    %p174 = scmp.lt.s32.totalorder %s11, 2
    // Predicated region
    $region29: #{secure_model_forward.3} parent=5 // pred_check
      %p175 = pneg %p174
    $region30: #{secure_model_forward.3} parent=5 // pred_check_branch
      %177 = sbr.rel (%p175) target = $region32
    $region31: #{secure_model_forward.3} parent=5 // pred_region
      // Predicated region
      $region33: #{secure_model_forward.3} parent=31 // pred_check
        %p178 = pneg %p31
      $region34: #{secure_model_forward.3} parent=31 // pred_check_branch
        %180 = sbr.rel (%p178) target = $region36
      $region35: #{secure_model_forward.3} parent=31 // pred_region
        %p181 = scmp.lt.s32.totalorder %s11, 1
        %s182 = scalar_select %p181, %s11, 1
        %s183 = smul.addr %s182, 2
        %s184 = smul.addr %s183, 8
        %s185 = scalar_lea.vmem %s0, %s184
      $region36: #{secure_model_forward.3} parent=31 // pred_fallthru
        _
    $region32: #{secure_model_forward.3} parent=5 // pred_fallthru
      _
    %p186 = scmp.le.s32.totalorder 1, %s11
    %p187 = scmp.lt.s32.totalorder %s11, 3
    %p188 = pnand %p186, %p187
    %p189 = pneg %p188
    // Predicated region
    $region37: #{secure_model_forward.3} parent=5 // pred_check
      _
    $region38: #{secure_model_forward.3} parent=5 // pred_check_branch
      %191 = sbr.rel (%p188) target = $region40
    $region39: #{secure_model_forward.3} parent=5 // pred_region
      %s192 = ssub.s32 %s11, 1
      %p193 = scmp.lt.s32.totalorder %s16, 1
      %s194 = scalar_select %p193, %s16, 1
      %s195 = smul.addr %s194, 2
      %s196 = smul.addr %s195, 8
      %s197 = scalar_lea.vmem %s0, %s196
      %p198 = pneg %p37
      %p199 = pneg %p34
      %p200 = pneg %p58
      %p201 = pneg %p55
      %p202 = pneg %p79
      %p203 = pneg %p76
      %p204 = pneg %p100
      %p205 = pneg %p97
      %p206 = pneg %p121
      %p207 = pneg %p118
      %p208 = pneg %p147
      %p209 = pneg %p144
      %p210 = scmp.lt.s32.totalorder %s16, 1
      %s211 = scalar_select %p210, %s16, 1
      %s212 = smul.addr %s211, 8
      %s213 = scalar_lea.vmem %s5, %s212
      %p214 = scmp.lt.s32.totalorder %s16, 1
      %s215 = scalar_select %p214, %s16, 1
      %s216 = smul.addr %s215, 2
      %s217 = smul.addr %s216, 8
      %s218 = scalar_lea.vmem %s0, %s217
      %p219 = scmp.lt.s32.totalorder %s16, 1
      %s220 = scalar_select %p219, %s16, 1
      %s221 = smul.addr %s220, 8
      %s222 = scalar_lea.vmem %s5, %s221
      %v223 = vld [vmem:[%s218] sm:$0xff]
      %v224 = vld [vmem:[%s218 + $0x8] sm:$0xff]
      %v225 = vld [vmem:[%s1] sm:$0xff]
      %v226 = vld [vmem:[%s1 + $0x8] sm:$0xff]
      %v227 = vld [vmem:[%s1 + $0x10] sm:$0xff]
      %v228 = vld [vmem:[%s1 + $0x18] sm:$0xff]
      %v229 = vld [vmem:[%s1 + $0x20] sm:$0xff]
      %v230 = vld [vmem:[%s1 + $0x28] sm:$0xff]
      %v231 = vld [vmem:[%s1 + $0x30] sm:$0xff]
      %v232 = vld [vmem:[%s1 + $0x38] sm:$0xff]
      %v233 = vld [vmem:[%s1 + $0x40] sm:$0xff]
      %v234 = vld [vmem:[%s1 + $0x48] sm:$0xff]
      %v235 = vld [vmem:[%s1 + $0x50] sm:$0xff]
      %v236 = vld [vmem:[%s1 + $0x58] sm:$0xff]
      %v237 = vld [vmem:[%s1 + $0x60] sm:$0xff]
      %v238 = vld [vmem:[%s1 + $0x68] sm:$0xff]
      %v239 = vld [vmem:[%s1 + $0x70] sm:$0xff]
      %v240 = vld [vmem:[%s1 + $0x78] sm:$0xff]
      %v241 = vld [vmem:[%s1 + $0x80] sm:$0xff]
      %v242 = vld [vmem:[%s1 + $0x88] sm:$0xff]
      %v243 = vld [vmem:[%s1 + $0x90] sm:$0xff]
      %v244 = vld [vmem:[%s1 + $0x98] sm:$0xff]
      %v245 = vld [vmem:[%s2] sm:$0x1]
      %v247 = vlaneseq
      %v248 = vshrl.u32 %v247, 7
      %v249 = vsub.s32 0, %v248
      %v250 = vrot.slane %v245, %v249
      %vm252 = vcmask 261120
      %v254 = vsel %vm252, %v224, 0
      %256 = vmatprep.subr.mxu0 0.0
      %257 = vmatpush1.msra.mxu0 %v240
      %258 = vmatprep.subr.mxu0 0.0
      %259 = vmatpush1.msra.mxu0 %v239
      %260 = vmatprep.subr.mxu0 0.0
      %261 = vmatpush1.msra.mxu0 %v238
      %262 = vmatprep.subr.mxu0 0.0
      %263 = vmatpush1.msra.mxu0 %v237
      %264 = vmatprep.subr.mxu0 0.0
      %265 = vmatpush1.msra.mxu0 %v236
      %266 = vmatprep.subr.mxu0 0.0
      %267 = vmatpush1.msra.mxu0 %v235
      %268 = vmatprep.subr.mxu0 0.0
      %269 = vmatpush1.msra.mxu0 %v234
      %270 = vmatprep.subr.mxu0 0.0
      %271 = vmatpush1.msra.mxu0 %v233
      %272 = vmatprep.subr.mxu0 0.0
      %273 = vmatpush1.msra.mxu0 %v232
      %274 = vmatprep.subr.mxu0 0.0
      %275 = vmatpush1.msra.mxu0 %v231
      %276 = vmatprep.subr.mxu0 0.0
      %277 = vmatpush1.msra.mxu0 %v230
      %278 = vmatprep.subr.mxu0 0.0
      %279 = vmatpush1.msra.mxu0 %v229
      %280 = vmatprep.subr.mxu0 0.0
      %281 = vmatpush1.msra.mxu0 %v228
      %282 = vmatprep.subr.mxu0 0.0
      %283 = vmatpush1.msra.mxu0 %v227
      %284 = vmatprep.subr.mxu0 0.0
      %285 = vmatpush1.msra.mxu0 %v226
      %286 = vmatprep.subr.mxu0 0.0
      %287 = vmatpush1.msra.mxu0 %v225
      %288 = vmatprep.subr.mxu0 0.0
      %289 = vmatpush2.msra.mxu0 0.0
      %290 = vmatprep.subr.mxu0 0.0
      %291 = vmatpush2.msra.mxu0 0.0
      %292 = vmatprep.subr.mxu0 0.0
      %293 = vmatpush2.msra.mxu0 0.0
      %294 = vmatprep.subr.mxu0 0.0
      %295 = vmatpush2.msra.mxu0 0.0
      %296 = vmatprep.subr.mxu0 0.0
      %297 = vmatpush2.msra.mxu0 0.0
      %298 = vmatprep.subr.mxu0 0.0
      %299 = vmatpush2.msra.mxu0 0.0
      %300 = vmatprep.subr.mxu0 0.0
      %301 = vmatpush2.msra.mxu0 0.0
      %302 = vmatprep.subr.mxu0 0.0
      %303 = vmatpush2.msra.mxu0 0.0
      %304 = vmatprep.subr.mxu0 0.0
      %305 = vmatpush2.msra.mxu0 0.0
      %306 = vmatprep.subr.mxu0 0.0
      %307 = vmatpush2.msra.mxu0 0.0
      %308 = vmatprep.subr.mxu0 0.0
      %309 = vmatpush2.msra.mxu0 0.0
      %310 = vmatprep.subr.mxu0 0.0
      %311 = vmatpush2.msra.mxu0 0.0
      %312 = vmatprep.subr.mxu0 0.0
      %313 = vmatpush2.msra.mxu0 %v244
      %314 = vmatprep.subr.mxu0 0.0
      %315 = vmatpush2.msra.mxu0 %v243
      %316 = vmatprep.subr.mxu0 0.0
      %317 = vmatpush2.msra.mxu0 %v242
      %318 = vmatprep.subr.mxu0 0.0
      %319 = vmatpush2.msra.mxu0 %v241
      %320 = vmatprep.mubr.f32.mxu0 %v254
      %321 = vmatmul.mubr.f32.gmra.mxu0 %v223
      %v322 = vpop.f32.mrf.mxu0
      %v323 = vadd.f32 %v250, %v322
      %v324 = vpop.f32.mrf.mxu0
      %325 = vdwg.mxu0
      %v326 = vmax.f32 %v323, 0.0
      %v327 = vld [vmem:[%s3] sm:$0xff]
      %v328 = vld [vmem:[%s3 + $0x8] sm:$0xff]
      %v329 = vld [vmem:[%s3 + $0x10] sm:$0xff]
      %v330 = vld [vmem:[%s3 + $0x18] sm:$0xff]
      %v331 = vld [vmem:[%s3 + $0x20] sm:$0xff]
      %v332 = vld [vmem:[%s3 + $0x28] sm:$0xff]
      %v333 = vld [vmem:[%s3 + $0x30] sm:$0xff]
      %v334 = vld [vmem:[%s3 + $0x38] sm:$0xff]
      %v335 = vld [vmem:[%s3 + $0x40] sm:$0xff]
      %v336 = vld [vmem:[%s3 + $0x48] sm:$0xff]
      %v337 = vld [vmem:[%s3 + $0x50] sm:$0xff]
      %v338 = vld [vmem:[%s3 + $0x58] sm:$0xff]
      %v339 = vld [vmem:[%s3 + $0x60] sm:$0xff]
      %v340 = vld [vmem:[%s3 + $0x68] sm:$0xff]
      %v341 = vld [vmem:[%s3 + $0x70] sm:$0xff]
      %v342 = vld [vmem:[%s3 + $0x78] sm:$0xff]
      %v343 = vld [vmem:[%s4] sm:$0x1]
      %v345 = vlaneseq
      %v346 = vshrl.u32 %v345, 7
      %v347 = vsub.s32 0, %v346
      %v348 = vrot.slane %v343, %v347
      %350 = vmatprep.subr.mxu0 0.0
      %351 = vmatpush1.msra.mxu0 %v342
      %352 = vmatprep.subr.mxu0 0.0
      %353 = vmatpush1.msra.mxu0 %v341
      %354 = vmatprep.subr.mxu0 0.0
      %355 = vmatpush1.msra.mxu0 %v340
      %356 = vmatprep.subr.mxu0 0.0
      %357 = vmatpush1.msra.mxu0 %v339
      %358 = vmatprep.subr.mxu0 0.0
      %359 = vmatpush1.msra.mxu0 %v338
      %360 = vmatprep.subr.mxu0 0.0
      %361 = vmatpush1.msra.mxu0 %v337
      %362 = vmatprep.subr.mxu0 0.0
      %363 = vmatpush1.msra.mxu0 %v336
      %364 = vmatprep.subr.mxu0 0.0
      %365 = vmatpush1.msra.mxu0 %v335
      %366 = vmatprep.subr.mxu0 0.0
      %367 = vmatpush1.msra.mxu0 %v334
      %368 = vmatprep.subr.mxu0 0.0
      %369 = vmatpush1.msra.mxu0 %v333
      %370 = vmatprep.subr.mxu0 0.0
      %371 = vmatpush1.msra.mxu0 %v332
      %372 = vmatprep.subr.mxu0 0.0
      %373 = vmatpush1.msra.mxu0 %v331
      %374 = vmatprep.subr.mxu0 0.0
      %375 = vmatpush1.msra.mxu0 %v330
      %376 = vmatprep.subr.mxu0 0.0
      %377 = vmatpush1.msra.mxu0 %v329
      %378 = vmatprep.subr.mxu0 0.0
      %379 = vmatpush1.msra.mxu0 %v328
      %380 = vmatprep.subr.mxu0 0.0
      %381 = vmatpush1.msra.mxu0 %v327
      %382 = vmatprep.subr.mxu0 0.0
      %383 = vmatpush2.msra.mxu0 0.0
      %384 = vmatprep.subr.mxu0 0.0
      %385 = vmatpush2.msra.mxu0 0.0
      %386 = vmatprep.subr.mxu0 0.0
      %387 = vmatpush2.msra.mxu0 0.0
      %388 = vmatprep.subr.mxu0 0.0
      %389 = vmatpush2.msra.mxu0 0.0
      %390 = vmatprep.subr.mxu0 0.0
      %391 = vmatpush2.msra.mxu0 0.0
      %392 = vmatprep.subr.mxu0 0.0
      %393 = vmatpush2.msra.mxu0 0.0
      %394 = vmatprep.subr.mxu0 0.0
      %395 = vmatpush2.msra.mxu0 0.0
      %396 = vmatprep.subr.mxu0 0.0
      %397 = vmatpush2.msra.mxu0 0.0
      %398 = vmatprep.subr.mxu0 0.0
      %399 = vmatpush2.msra.mxu0 0.0
      %400 = vmatprep.subr.mxu0 0.0
      %401 = vmatpush2.msra.mxu0 0.0
      %402 = vmatprep.subr.mxu0 0.0
      %403 = vmatpush2.msra.mxu0 0.0
      %404 = vmatprep.subr.mxu0 0.0
      %405 = vmatpush2.msra.mxu0 0.0
      %406 = vmatprep.subr.mxu0 0.0
      %407 = vmatpush2.msra.mxu0 0.0
      %408 = vmatprep.subr.mxu0 0.0
      %409 = vmatpush2.msra.mxu0 0.0
      %410 = vmatprep.subr.mxu0 0.0
      %411 = vmatpush2.msra.mxu0 0.0
      %412 = vmatprep.subr.mxu0 0.0
      %413 = vmatpush2.msra.mxu0 0.0
      %414 = vmatprep.mubr.f32.mxu0 0.0
      %415 = vmatmul.mubr.f32.gmra.mxu0 %v326
      %v416 = vpop.f32.mrf.mxu0
      %v417 = vadd.f32 %v348, %v416
      %v418 = vpop.f32.mrf.mxu0
      %419 = vdwg.mxu0
      %v420 = vmax.f32 %v417, 0.0
      %421 = vst [vmem:[%s222] sm:$0xff] %v420
      %p422 = scmp.lt.s32.totalorder %s16, 1
      %s423 = scalar_select %p422, %s16, 1
      %s424 = smul.addr %s423, 8
      %s425 = scalar_lea.vmem %s5, %s424
      // Predicated region
      $region41: #{secure_model_forward.3} parent=39 // pred_check
        %p426 = pneg %p144
      $region42: #{secure_model_forward.3} parent=39 // pred_check_branch
        %428 = sbr.rel (%p426) target = $region44
      $region43: #{secure_model_forward.3} parent=39 // pred_region
        _
      $region44: #{secure_model_forward.3} parent=39 // pred_fallthru
        _
    $region40: #{secure_model_forward.3} parent=5 // pred_fallthru
      _
    %p429 = scmp.le.s32.totalorder 2, %s11
    // Predicated region
    $region45: #{secure_model_forward.3} parent=5 // pred_check
      %p430 = pneg %p429
    $region46: #{secure_model_forward.3} parent=5 // pred_check_branch
      %432 = sbr.rel (%p430) target = $region48
    $region47: #{secure_model_forward.3} parent=5 // pred_region
      %s433 = ssub.s32 %s11, 2
      // Predicated region
      $region49: #{secure_model_forward.3} parent=47 // pred_check
        %p434 = pneg %p150
      $region50: #{secure_model_forward.3} parent=47 // pred_check_branch
        %436 = sbr.rel (%p434) target = $region52
      $region51: #{secure_model_forward.3} parent=47 // pred_region
        %p437 = scmp.lt.s32.totalorder %s17, 1
        %s438 = scalar_select %p437, %s17, 1
        %s439 = smul.addr %s438, 8
        %s440 = scalar_lea.vmem %s5, %s439
      $region52: #{secure_model_forward.3} parent=47 // pred_fallthru
        _
    $region48: #{secure_model_forward.3} parent=5 // pred_fallthru
      _
  $region6: #{secure_model_forward.3} parent=0 // loop_footer
    %s15 = sadd.s32 1, %s11
  $region7: #{secure_model_forward.3} parent=0 // loop_footer_branch
    %10 = sbr.rel target = $region3
  $region8: #{secure_model_forward.3} parent=0 // loop_exit
    _

// kernel: secure_model_forward.2
$region0: #{secure_model_forward.2}
  #allocation0 [shape = 'u32[]', space=smem, size = 0x4, offset = 0x4, fixed_abs, tag = 'smem constant byte address 0x4 - core index']
  #allocation1 [shape = 'u32[144,128]{1,0:T(1,128)}', space=vmem, size = 0x12000, scoped, tag = 'internal scratch']
  #allocation2 [shape = 'f32[124,64]{1,0:T(8,128)}', space=vmem, size = 0x10000, scoped, tag = 'scratch operand']
  #allocation3 [shape = 'f32[52,64]{1,0:T(8,128)}', space=vmem, size = 0x7000, scoped, tag = 'scratch operand']
  #allocation4 [shape = 'f32[28,128]{1,0:T(8,128)}', space=vmem, size = 0x4000, scoped, tag = 'scratch operand']
  #allocation5 [shape = 'f32[324,64]{1,0:T(8,128)}', space=vmem, size = 0x29000, scoped, tag = 'scratch operand']
  #allocation6 [shape = 'f32[36,128]{1,0:T(8,128)}', space=vmem, size = 0x5000, scoped, tag = 'scratch operand']
  %s0 = inlined_call_operand.vmem [shape: f32[2,340,4], index: 0, kind: input, shape index: {}]
  %s1 = inlined_call_operand.vmem [shape: f32[5,4,64], index: 1, kind: input, shape index: {}]
  %s2 = inlined_call_operand.vmem [shape: f32[1,64], index: 2, kind: input, shape index: {}]
  %s3 = inlined_call_operand.vmem [shape: f32[5,64,64], index: 3, kind: input, shape index: {}]
  %s4 = inlined_call_operand.vmem [shape: f32[1,64], index: 4, kind: input, shape index: {}]
  %s5 = inlined_call_operand.vmem [shape: f32[5,64,128], index: 5, kind: input, shape index: {}]
  %s6 = inlined_call_operand.vmem [shape: f32[1,128], index: 6, kind: input, shape index: {}]
  %s7 = inlined_call_operand.vmem [shape: f32[5,128,128], index: 7, kind: input, shape index: {}]
  %s8 = inlined_call_operand.vmem [shape: f32[1,128], index: 8, kind: input, shape index: {}]
  %s9 = inlined_call_operand.vmem [shape: f32[2,4,128], index: 9, kind: output, shape index: {}]
  %s10 = sld [smem:[#allocation0]]
  $region69: #{secure_model_forward.2} parent=0
    _
  %s12 = ssub.s32 1, %s10
  %s13 = scalar_select 0, %s12, %s10
  loop: start=0, step=1, limit=4
  $region2: #{secure_model_forward.2} parent=0 // loop_pre_header
    _
  $region3: #{secure_model_forward.2} parent=0 // loop_header
    %s15 = sphi 0, %s19
    %p16 = scmp.ge.s32.totalorder %s15, 4
    %s25 = sphi 0, %s27
    %s28 = sphi 0, %s25
    %s29 = sphi 0, %s28
    %s45 = sphi 0, %s29
    %s49 = sphi 0, %s49
    %s51 = sphi 0, %s49
    %s52 = sphi 0, %s51
    %s66 = sphi 0, %s52
    %s70 = sphi 0, %s70
    %s72 = sphi 0, %s70
    %s73 = sphi 0, %s72
    %s87 = sphi 0, %s73
    %s91 = sphi 0, %s91
    %s93 = sphi 0, %s91
    %s94 = sphi 0, %s93
    %s108 = sphi 0, %s94
    %s112 = sphi 0, %s112
    %s114 = sphi 0, %s112
    %s115 = sphi 0, %s114
    %s129 = sphi 0, %s115
    %s133 = sphi 0, %s133
    %s135 = sphi 0, %s133
    %s136 = sphi 0, %s135
    %s150 = sphi 0, %s136
    %s154 = sphi 0, %s154
    %s156 = sphi 0, %s154
    %s157 = sphi 0, %s156
    %s171 = sphi 0, %s157
    %s175 = sphi 0, %s175
    %s177 = sphi 0, %s175
    %s178 = sphi 0, %s177
    %s192 = sphi 0, %s178
    %s196 = sphi 0, %s196
    %s198 = sphi 0, %s196
    %s199 = sphi 0, %s198
    %s213 = sphi 0, %s199
    %s219 = sphi 0, %s221
    %s222 = sphi 0, %s219
    %s223 = sphi 0, %s222
    %s239 = sphi 0, %s223
  $region4: #{secure_model_forward.2} parent=0 // loop_header_branch
    %18 = sbr.rel (%p16) target = $region8
  $region5: #{secure_model_forward.2} parent=0 // loop_body
    %s20 = ssub.s32 %s15, 1
    %s21 = ssub.s32 %s15, 2
    %s22 = sadd.s32 %s15, 1
    %s23 = ssub.s32 %s15, %s22
    %p24 = scmp.eq.s32.totalorder %s23, 0
    %s26 = sadd.s32 %s25, 1
    %s27 = scalar_select %p24, %s25, %s26
    %p30 = pneg %p24
    %p31 = scmp.eq.s32.totalorder %s15, 1
    %p32 = por %p30, %p31
    %p33 = scmp.ne.s32.totalorder %s25, %s28
    %p34 = scmp.eq.s32.totalorder %s15, 0
    %p35 = por %p33, %p34
    %p36 = scmp.ne.s32.totalorder %s25, %s28
    %p37 = scmp.eq.s32.totalorder %s20, 1
    %p38 = por %p36, %p37
    %p39 = scmp.ne.s32.totalorder %s28, %s29
    %p40 = scmp.eq.s32.totalorder %s20, 0
    %p41 = por %p39, %p40
    %p42 = scmp.ne.s32.totalorder %s28, %s29
    %p43 = scmp.eq.s32.totalorder %s21, 1
    %p44 = por %p42, %p43
    %p46 = scmp.ne.s32.totalorder %s29, %s45
    %p47 = scmp.eq.s32.totalorder %s21, 0
    %p48 = por %p46, %p47
    %s50 = sadd.s32 %s49, 1
    %p53 = scmp.eq.s32.totalorder %s15, 1
    %p54 = scmp.ne.s32.totalorder %s49, %s51
    %p55 = scmp.eq.s32.totalorder %s15, 0
    %p56 = por %p54, %p55
    %p57 = scmp.ne.s32.totalorder %s49, %s51
    %p58 = scmp.eq.s32.totalorder %s20, 1
    %p59 = por %p57, %p58
    %p60 = scmp.ne.s32.totalorder %s51, %s52
    %p61 = scmp.eq.s32.totalorder %s20, 0
    %p62 = por %p60, %p61
    %p63 = scmp.ne.s32.totalorder %s51, %s52
    %p64 = scmp.eq.s32.totalorder %s21, 1
    %p65 = por %p63, %p64
    %p67 = scmp.ne.s32.totalorder %s52, %s66
    %p68 = scmp.eq.s32.totalorder %s21, 0
    %p69 = por %p67, %p68
    %s71 = sadd.s32 %s70, 1
    %p74 = scmp.eq.s32.totalorder %s15, 1
    %p75 = scmp.ne.s32.totalorder %s70, %s72
    %p76 = scmp.eq.s32.totalorder %s15, 0
    %p77 = por %p75, %p76
    %p78 = scmp.ne.s32.totalorder %s70, %s72
    %p79 = scmp.eq.s32.totalorder %s20, 1
    %p80 = por %p78, %p79
    %p81 = scmp.ne.s32.totalorder %s72, %s73
    %p82 = scmp.eq.s32.totalorder %s20, 0
    %p83 = por %p81, %p82
    %p84 = scmp.ne.s32.totalorder %s72, %s73
    %p85 = scmp.eq.s32.totalorder %s21, 1
    %p86 = por %p84, %p85
    %p88 = scmp.ne.s32.totalorder %s73, %s87
    %p89 = scmp.eq.s32.totalorder %s21, 0
    %p90 = por %p88, %p89
    %s92 = sadd.s32 %s91, 1
    %p95 = scmp.eq.s32.totalorder %s15, 1
    %p96 = scmp.ne.s32.totalorder %s91, %s93
    %p97 = scmp.eq.s32.totalorder %s15, 0
    %p98 = por %p96, %p97
    %p99 = scmp.ne.s32.totalorder %s91, %s93
    %p100 = scmp.eq.s32.totalorder %s20, 1
    %p101 = por %p99, %p100
    %p102 = scmp.ne.s32.totalorder %s93, %s94
    %p103 = scmp.eq.s32.totalorder %s20, 0
    %p104 = por %p102, %p103
    %p105 = scmp.ne.s32.totalorder %s93, %s94
    %p106 = scmp.eq.s32.totalorder %s21, 1
    %p107 = por %p105, %p106
    %p109 = scmp.ne.s32.totalorder %s94, %s108
    %p110 = scmp.eq.s32.totalorder %s21, 0
    %p111 = por %p109, %p110
    %s113 = sadd.s32 %s112, 1
    %p116 = scmp.eq.s32.totalorder %s15, 1
    %p117 = scmp.ne.s32.totalorder %s112, %s114
    %p118 = scmp.eq.s32.totalorder %s15, 0
    %p119 = por %p117, %p118
    %p120 = scmp.ne.s32.totalorder %s112, %s114
    %p121 = scmp.eq.s32.totalorder %s20, 1
    %p122 = por %p120, %p121
    %p123 = scmp.ne.s32.totalorder %s114, %s115
    %p124 = scmp.eq.s32.totalorder %s20, 0
    %p125 = por %p123, %p124
    %p126 = scmp.ne.s32.totalorder %s114, %s115
    %p127 = scmp.eq.s32.totalorder %s21, 1
    %p128 = por %p126, %p127
    %p130 = scmp.ne.s32.totalorder %s115, %s129
    %p131 = scmp.eq.s32.totalorder %s21, 0
    %p132 = por %p130, %p131
    %s134 = sadd.s32 %s133, 1
    %p137 = scmp.eq.s32.totalorder %s15, 1
    %p138 = scmp.ne.s32.totalorder %s133, %s135
    %p139 = scmp.eq.s32.totalorder %s15, 0
    %p140 = por %p138, %p139
    %p141 = scmp.ne.s32.totalorder %s133, %s135
    %p142 = scmp.eq.s32.totalorder %s20, 1
    %p143 = por %p141, %p142
    %p144 = scmp.ne.s32.totalorder %s135, %s136
    %p145 = scmp.eq.s32.totalorder %s20, 0
    %p146 = por %p144, %p145
    %p147 = scmp.ne.s32.totalorder %s135, %s136
    %p148 = scmp.eq.s32.totalorder %s21, 1
    %p149 = por %p147, %p148
    %p151 = scmp.ne.s32.totalorder %s136, %s150
    %p152 = scmp.eq.s32.totalorder %s21, 0
    %p153 = por %p151, %p152
    %s155 = sadd.s32 %s154, 1
    %p158 = scmp.eq.s32.totalorder %s15, 1
    %p159 = scmp.ne.s32.totalorder %s154, %s156
    %p160 = scmp.eq.s32.totalorder %s15, 0
    %p161 = por %p159, %p160
    %p162 = scmp.ne.s32.totalorder %s154, %s156
    %p163 = scmp.eq.s32.totalorder %s20, 1
    %p164 = por %p162, %p163
    %p165 = scmp.ne.s32.totalorder %s156, %s157
    %p166 = scmp.eq.s32.totalorder %s20, 0
    %p167 = por %p165, %p166
    %p168 = scmp.ne.s32.totalorder %s156, %s157
    %p169 = scmp.eq.s32.totalorder %s21, 1
    %p170 = por %p168, %p169
    %p172 = scmp.ne.s32.totalorder %s157, %s171
    %p173 = scmp.eq.s32.totalorder %s21, 0
    %p174 = por %p172, %p173
    %s176 = sadd.s32 %s175, 1
    %p179 = scmp.eq.s32.totalorder %s15, 1
    %p180 = scmp.ne.s32.totalorder %s175, %s177
    %p181 = scmp.eq.s32.totalorder %s15, 0
    %p182 = por %p180, %p181
    %p183 = scmp.ne.s32.totalorder %s175, %s177
    %p184 = scmp.eq.s32.totalorder %s20, 1
    %p185 = por %p183, %p184
    %p186 = scmp.ne.s32.totalorder %s177, %s178
    %p187 = scmp.eq.s32.totalorder %s20, 0
    %p188 = por %p186, %p187
    %p189 = scmp.ne.s32.totalorder %s177, %s178
    %p190 = scmp.eq.s32.totalorder %s21, 1
    %p191 = por %p189, %p190
    %p193 = scmp.ne.s32.totalorder %s178, %s192
    %p194 = scmp.eq.s32.totalorder %s21, 0
    %p195 = por %p193, %p194
    %s197 = sadd.s32 %s196, 1
    %p200 = scmp.eq.s32.totalorder %s15, 1
    %p201 = scmp.ne.s32.totalorder %s196, %s198
    %p202 = scmp.eq.s32.totalorder %s15, 0
    %p203 = por %p201, %p202
    %p204 = scmp.ne.s32.totalorder %s196, %s198
    %p205 = scmp.eq.s32.totalorder %s20, 1
    %p206 = por %p204, %p205
    %p207 = scmp.ne.s32.totalorder %s198, %s199
    %p208 = scmp.eq.s32.totalorder %s20, 0
    %p209 = por %p207, %p208
    %p210 = scmp.ne.s32.totalorder %s198, %s199
    %p211 = scmp.eq.s32.totalorder %s21, 1
    %p212 = por %p210, %p211
    %p214 = scmp.ne.s32.totalorder %s199, %s213
    %p215 = scmp.eq.s32.totalorder %s21, 0
    %p216 = por %p214, %p215
    %s217 = ssub.s32 %s15, %s22
    %p218 = scmp.eq.s32.totalorder %s217, 0
    %s220 = sadd.s32 %s219, 1
    %s221 = scalar_select %p218, %s219, %s220
    %p224 = pneg %p218
    %p225 = scmp.eq.s32.totalorder %s15, 1
    %p226 = por %p224, %p225
    %p227 = scmp.ne.s32.totalorder %s219, %s222
    %p228 = scmp.eq.s32.totalorder %s15, 0
    %p229 = por %p227, %p228
    %p230 = scmp.ne.s32.totalorder %s219, %s222
    %p231 = scmp.eq.s32.totalorder %s20, 1
    %p232 = por %p230, %p231
    %p233 = scmp.ne.s32.totalorder %s222, %s223
    %p234 = scmp.eq.s32.totalorder %s20, 0
    %p235 = por %p233, %p234
    %p236 = scmp.ne.s32.totalorder %s222, %s223
    %p237 = scmp.eq.s32.totalorder %s21, 1
    %p238 = por %p236, %p237
    %p240 = scmp.ne.s32.totalorder %s223, %s239
    %p241 = scmp.eq.s32.totalorder %s21, 0
    %p242 = por %p240, %p241
    %p243 = scmp.le.s32.totalorder 1, %s15
    %p244 = scmp.lt.s32.totalorder %s15, 3
    %p245 = pnand %p243, %p244
    %p246 = pneg %p245
    // Predicated region
    $region9: #{secure_model_forward.2} parent=5 // pred_check
      _
    $region10: #{secure_model_forward.2} parent=5 // pred_check_branch
      %248 = sbr.rel (%p245) target = $region12
    $region11: #{secure_model_forward.2} parent=5 // pred_region
      %s249 = ssub.s32 %s15, 1
      // Predicated region
      $region13: #{secure_model_forward.2} parent=11 // pred_check
        %p250 = pneg %p62
      $region14: #{secure_model_forward.2} parent=11 // pred_check_branch
        %252 = sbr.rel (%p250) target = $region16
      $region15: #{secure_model_forward.2} parent=11 // pred_region
        _
      $region16: #{secure_model_forward.2} parent=11 // pred_fallthru
        _
      // Predicated region
      $region17: #{secure_model_forward.2} parent=11 // pred_check
        %p253 = pneg %p83
      $region18: #{secure_model_forward.2} parent=11 // pred_check_branch
        %255 = sbr.rel (%p253) target = $region20
      $region19: #{secure_model_forward.2} parent=11 // pred_region
        _
      $region20: #{secure_model_forward.2} parent=11 // pred_fallthru
        _
      // Predicated region
      $region21: #{secure_model_forward.2} parent=11 // pred_check
        %p256 = pneg %p104
      $region22: #{secure_model_forward.2} parent=11 // pred_check_branch
        %258 = sbr.rel (%p256) target = $region24
      $region23: #{secure_model_forward.2} parent=11 // pred_region
        _
      $region24: #{secure_model_forward.2} parent=11 // pred_fallthru
        _
      // Predicated region
      $region25: #{secure_model_forward.2} parent=11 // pred_check
        %p259 = pneg %p125
      $region26: #{secure_model_forward.2} parent=11 // pred_check_branch
        %261 = sbr.rel (%p259) target = $region28
      $region27: #{secure_model_forward.2} parent=11 // pred_region
        _
      $region28: #{secure_model_forward.2} parent=11 // pred_fallthru
        _
      // Predicated region
      $region29: #{secure_model_forward.2} parent=11 // pred_check
        %p262 = pneg %p146
      $region30: #{secure_model_forward.2} parent=11 // pred_check_branch
        %264 = sbr.rel (%p262) target = $region32
      $region31: #{secure_model_forward.2} parent=11 // pred_region
        _
      $region32: #{secure_model_forward.2} parent=11 // pred_fallthru
        _
      // Predicated region
      $region33: #{secure_model_forward.2} parent=11 // pred_check
        %p265 = pneg %p167
      $region34: #{secure_model_forward.2} parent=11 // pred_check_branch
        %267 = sbr.rel (%p265) target = $region36
      $region35: #{secure_model_forward.2} parent=11 // pred_region
        _
      $region36: #{secure_model_forward.2} parent=11 // pred_fallthru
        _
      // Predicated region
      $region37: #{secure_model_forward.2} parent=11 // pred_check
        %p268 = pneg %p188
      $region38: #{secure_model_forward.2} parent=11 // pred_check_branch
        %270 = sbr.rel (%p268) target = $region40
      $region39: #{secure_model_forward.2} parent=11 // pred_region
        _
      $region40: #{secure_model_forward.2} parent=11 // pred_fallthru
        _
      // Predicated region
      $region41: #{secure_model_forward.2} parent=11 // pred_check
        %p271 = pneg %p209
      $region42: #{secure_model_forward.2} parent=11 // pred_check_branch
        %273 = sbr.rel (%p271) target = $region44
      $region43: #{secure_model_forward.2} parent=11 // pred_region
        _
      $region44: #{secure_model_forward.2} parent=11 // pred_fallthru
        _
    $region12: #{secure_model_forward.2} parent=5 // pred_fallthru
      _
    %p274 = scmp.lt.s32.totalorder %s15, 2
    // Predicated region
    $region45: #{secure_model_forward.2} parent=5 // pred_check
      %p275 = pneg %p274
    $region46: #{secure_model_forward.2} parent=5 // pred_check_branch
      %277 = sbr.rel (%p275) target = $region48
    $region47: #{secure_model_forward.2} parent=5 // pred_region
      // Predicated region
      $region49: #{secure_model_forward.2} parent=47 // pred_check
        %p278 = pneg %p35
      $region50: #{secure_model_forward.2} parent=47 // pred_check_branch
        %280 = sbr.rel (%p278) target = $region52
      $region51: #{secure_model_forward.2} parent=47 // pred_region
        %p281 = scmp.lt.s32.totalorder %s15, 1
        %s282 = scalar_select %p281, %s15, 1
        %s283 = smul.addr %s282, 43
        %s284 = smul.addr %s283, 8
        %s285 = scalar_lea.vmem %s0, %s284
      $region52: #{secure_model_forward.2} parent=47 // pred_fallthru
        _
    $region48: #{secure_model_forward.2} parent=5 // pred_fallthru
      _
    %p286 = scmp.le.s32.totalorder 1, %s15
    %p287 = scmp.lt.s32.totalorder %s15, 3
    %p288 = pnand %p286, %p287
    %p289 = pneg %p288
    // Predicated region
    $region53: #{secure_model_forward.2} parent=5 // pred_check
      _
    $region54: #{secure_model_forward.2} parent=5 // pred_check_branch
      %291 = sbr.rel (%p288) target = $region56
    $region55: #{secure_model_forward.2} parent=5 // pred_region
      %s292 = ssub.s32 %s15, 1
      %p293 = scmp.lt.s32.totalorder %s20, 1
      %s294 = scalar_select %p293, %s20, 1
      %s295 = smul.addr %s294, 43
      %s296 = smul.addr %s295, 8
      %s297 = scalar_lea.vmem %s0, %s296
      %p298 = pneg %p41
      %p299 = pneg %p38
      %p300 = pneg %p62
      %p301 = pneg %p59
      %p302 = pneg %p83
      %p303 = pneg %p80
      %p304 = pneg %p104
      %p305 = pneg %p101
      %p306 = pneg %p125
      %p307 = pneg %p122
      %p308 = pneg %p146
      %p309 = pneg %p143
      %p310 = pneg %p167
      %p311 = pneg %p164
      %p312 = pneg %p188
      %p313 = pneg %p185
      %p314 = pneg %p209
      %p315 = pneg %p206
      %p316 = pneg %p235
      %p317 = pneg %p232
      %p318 = scmp.lt.s32.totalorder %s20, 1
      %s319 = scalar_select %p318, %s20, 1
      %s320 = smul.addr %s319, 4
      %s321 = scalar_lea.vmem %s9, %s320
      %p322 = scmp.lt.s32.totalorder %s20, 1
      %s323 = scalar_select %p322, %s20, 1
      %s324 = smul.addr %s323, 43
      %s325 = smul.addr %s324, 8
      %s326 = scalar_lea.vmem %s0, %s325
      %p327 = scmp.lt.s32.totalorder %s20, 1
      %s328 = scalar_select %p327, %s20, 1
      %s329 = smul.addr %s328, 4
      %s330 = scalar_lea.vmem %s9, %s329
      %vm331 = vcmask 523264
      %332 = vst.msk [vmem:[#allocation2] sm:$0xff] %vm331, 0.0
      %333 = vst.msk [vmem:[#allocation2 + $0x74] sm:$0xff] %vm331, 0.0
      %334 = vst.msk [vmem:[#allocation3] sm:$0xff] %vm331, 0.0
      %335 = vst.msk [vmem:[#allocation3 + $0x2c] sm:$0xff] %vm331, 0.0
      %336 = vst [vmem:[#allocation4] sm:$0xff] 0.0
      %337 = vst [vmem:[#allocation4 + $0x14] sm:$0xff] 0.0
      %v338 = vld [vmem:[%s326 + $0x6] sm:$0xff]
      %v339 = vld [vmem:[%s326 + $0xe] sm:$0xff]
      %v340 = vld [vmem:[%s326 + $0x16] sm:$0xff]
      %v341 = vld [vmem:[%s326 + $0x1e] sm:$0xff]
      %v342 = vld [vmem:[%s326 + $0x26] sm:$0xff]
      %v343 = vld [vmem:[%s326 + $0x2e] sm:$0xff]
      %v344 = vld [vmem:[%s326 + $0x36] sm:$0xff]
      %v345 = vld [vmem:[%s326 + $0x3e] sm:$0xff]
      %v346 = vld [vmem:[%s326 + $0x46] sm:$0xff]
      %v347 = vld [vmem:[%s326 + $0x4e] sm:$0xff]
      %v348 = vld [vmem:[%s326 + $0x56] sm:$0xff]
      %v349 = vld [vmem:[%s326 + $0x5e] sm:$0xff]
      %v350 = vld [vmem:[%s326 + $0x66] sm:$0xff]
      %v351 = vld [vmem:[%s326 + $0x6e] sm:$0xff]
      %v352 = vld [vmem:[%s326 + $0x76] sm:$0xff]
      %v353 = vld [vmem:[%s326 + $0x7e] sm:$0xff]
      %v354 = vld [vmem:[%s326 + $0x86] sm:$0xff]
      %v355 = vld [vmem:[%s326 + $0x8e] sm:$0xff]
      %v356 = vld [vmem:[%s326 + $0x96] sm:$0xff]
      %v357 = vld [vmem:[%s326 + $0x9e] sm:$0xff]
      %v358 = vld [vmem:[%s326 + $0xa6] sm:$0xff]
      %v359 = vld [vmem:[%s326 + $0xae] sm:$0xff]
      %v360 = vld [vmem:[%s326 + $0xb6] sm:$0xff]
      %v361 = vld [vmem:[%s326 + $0xbe] sm:$0xff]
      %v362 = vld [vmem:[%s326 + $0xc6] sm:$0xff]
      %v363 = vld [vmem:[%s326 + $0xce] sm:$0xff]
      %v364 = vld [vmem:[%s326 + $0xd6] sm:$0xff]
      %v365 = vld [vmem:[%s326 + $0xde] sm:$0xff]
      %v366 = vld [vmem:[%s326 + $0xe6] sm:$0xff]
      %v367 = vld [vmem:[%s326 + $0xee] sm:$0xff]
      %v368 = vld [vmem:[%s326 + $0xf6] sm:$0xff]
      %v369 = vld [vmem:[%s326 + $0xfe] sm:$0xff]
      %v370 = vld [vmem:[%s326 + $0x106] sm:$0xff]
      %v371 = vld [vmem:[%s326 + $0x10e] sm:$0xff]
      %v372 = vld [vmem:[%s326 + $0x116] sm:$0xff]
      %v373 = vld [vmem:[%s326 + $0x11e] sm:$0xff]
      %v374 = vld [vmem:[%s326 + $0x126] sm:$0xff]
      %v375 = vld [vmem:[%s326 + $0x12e] sm:$0xff]
      %v376 = vld [vmem:[%s326 + $0x136] sm:$0xff]
      %v377 = vld [vmem:[%s326 + $0x13e] sm:$0xff]
      %v378 = vld [vmem:[%s326 + $0x146] sm:$0xf]
      %v379 = vld [vmem:[%s1] sm:$0xf]
      %v380 = vld [vmem:[%s326 + $0x7] sm:$0xff]
      %v381 = vld [vmem:[%s326 + $0xf] sm:$0xff]
      %v382 = vld [vmem:[%s326 + $0x17] sm:$0xff]
      %v383 = vld [vmem:[%s326 + $0x1f] sm:$0xff]
      %v384 = vld [vmem:[%s326 + $0x27] sm:$0xff]
      %v385 = vld [vmem:[%s326 + $0x2f] sm:$0xff]
      %v386 = vld [vmem:[%s326 + $0x37] sm:$0xff]
      %v387 = vld [vmem:[%s326 + $0x3f] sm:$0xff]
      %v388 = vld [vmem:[%s326 + $0x47] sm:$0xff]
      %v389 = vld [vmem:[%s326 + $0x4f] sm:$0xff]
      %v390 = vld [vmem:[%s326 + $0x57] sm:$0xff]
      %v391 = vld [vmem:[%s326 + $0x5f] sm:$0xff]
      %v392 = vld [vmem:[%s326 + $0x67] sm:$0xff]
      %v393 = vld [vmem:[%s326 + $0x6f] sm:$0xff]
      %v394 = vld [vmem:[%s326 + $0x77] sm:$0xff]
      %v395 = vld [vmem:[%s326 + $0x7f] sm:$0xff]
      %v396 = vld [vmem:[%s326 + $0x87] sm:$0xff]
      %v397 = vld [vmem:[%s326 + $0x8f] sm:$0xff]
      %v398 = vld [vmem:[%s326 + $0x97] sm:$0xff]
      %v399 = vld [vmem:[%s326 + $0x9f] sm:$0xff]
      %v400 = vld [vmem:[%s326 + $0xa7] sm:$0xff]
      %v401 = vld [vmem:[%s326 + $0xaf] sm:$0xff]
      %v402 = vld [vmem:[%s326 + $0xb7] sm:$0xff]
      %v403 = vld [vmem:[%s326 + $0xbf] sm:$0xff]
      %v404 = vld [vmem:[%s326 + $0xc7] sm:$0xff]
      %v405 = vld [vmem:[%s326 + $0xcf] sm:$0xff]
      %v406 = vld [vmem:[%s326 + $0xd7] sm:$0xff]
      %v407 = vld [vmem:[%s326 + $0xdf] sm:$0xff]
      %v408 = vld [vmem:[%s326 + $0xe7] sm:$0xff]
      %v409 = vld [vmem:[%s326 + $0xef] sm:$0xff]
      %v410 = vld [vmem:[%s326 + $0xf7] sm:$0xff]
      %v411 = vld [vmem:[%s326 + $0xff] sm:$0xff]
      %v412 = vld [vmem:[%s326 + $0x107] sm:$0xff]
      %v413 = vld [vmem:[%s326 + $0x10f] sm:$0xff]
      %v414 = vld [vmem:[%s326 + $0x117] sm:$0xff]
      %v415 = vld [vmem:[%s326 + $0x11f] sm:$0xff]
      %v416 = vld [vmem:[%s326 + $0x127] sm:$0xff]
      %v417 = vld [vmem:[%s326 + $0x12f] sm:$0xff]
      %v418 = vld [vmem:[%s326 + $0x137] sm:$0xff]
      %v419 = vld [vmem:[%s326 + $0x13f] sm:$0xff]
      %v420 = vld [vmem:[%s326 + $0x147] sm:$0xf]
      %s421 = scalar_lea.vmem %s1, 4
      %v422 = vld [vmem:[%s421] sm:$0xf]
      %vm423 = vcmask 31744
      %v425 = vsel %vm423, %v380, 0
      %v428 = vsel %vm423, %v381, 0
      %v431 = vsel %vm423, %v382, 0
      %v434 = vsel %vm423, %v383, 0
      %v437 = vsel %vm423, %v384, 0
      %v440 = vsel %vm423, %v385, 0
      %v443 = vsel %vm423, %v386, 0
      %v446 = vsel %vm423, %v387, 0
      %v449 = vsel %vm423, %v388, 0
      %v452 = vsel %vm423, %v389, 0
      %v455 = vsel %vm423, %v390, 0
      %v458 = vsel %vm423, %v391, 0
      %v461 = vsel %vm423, %v392, 0
      %v464 = vsel %vm423, %v393, 0
      %v467 = vsel %vm423, %v394, 0
      %v470 = vsel %vm423, %v395, 0
      %v473 = vsel %vm423, %v396, 0
      %v476 = vsel %vm423, %v397, 0
      %v479 = vsel %vm423, %v398, 0
      %v482 = vsel %vm423, %v399, 0
      %v485 = vsel %vm423, %v400, 0
      %v488 = vsel %vm423, %v401, 0
      %v491 = vsel %vm423, %v402, 0
      %v494 = vsel %vm423, %v403, 0
      %v497 = vsel %vm423, %v404, 0
      %v500 = vsel %vm423, %v405, 0
      %v503 = vsel %vm423, %v406, 0
      %v506 = vsel %vm423, %v407, 0
      %v509 = vsel %vm423, %v408, 0
      %v512 = vsel %vm423, %v409, 0
      %v515 = vsel %vm423, %v410, 0
      %v518 = vsel %vm423, %v411, 0
      %v521 = vsel %vm423, %v412, 0
      %v524 = vsel %vm423, %v413, 0
      %v527 = vsel %vm423, %v414, 0
      %v530 = vsel %vm423, %v415, 0
      %v533 = vsel %vm423, %v416, 0
      %v536 = vsel %vm423, %v417, 0
      %v539 = vsel %vm423, %v418, 0
      %v542 = vsel %vm423, %v419, 0
      %v545 = vsel %vm423, %v420, 0
      %vm547 = vcmask 1043456
      %v549 = vsel %vm547, %v422, 0
      %551 = vmatprep.subr.mxu0 0.0
      %552 = vmatpush1.msra.mxu0 0.0
      %553 = vmatprep.subr.mxu0 0.0
      %554 = vmatpush1.msra.mxu0 0.0
      %555 = vmatprep.subr.mxu0 0.0
      %556 = vmatpush1.msra.mxu0 0.0
      %557 = vmatprep.subr.mxu0 0.0
      %558 = vmatpush1.msra.mxu0 0.0
      %559 = vmatprep.subr.mxu0 0.0
      %560 = vmatpush1.msra.mxu0 0.0
      %561 = vmatprep.subr.mxu0 0.0
      %562 = vmatpush1.msra.mxu0 0.0
      %563 = vmatprep.subr.mxu0 0.0
      %564 = vmatpush1.msra.mxu0 0.0
      %565 = vmatprep.subr.mxu0 0.0
      %566 = vmatpush1.msra.mxu0 0.0
      %567 = vmatprep.subr.mxu0 0.0
      %568 = vmatpush1.msra.mxu0 0.0
      %569 = vmatprep.subr.mxu0 0.0
      %570 = vmatpush1.msra.mxu0 0.0
      %571 = vmatprep.subr.mxu0 0.0
      %572 = vmatpush1.msra.mxu0 0.0
      %573 = vmatprep.subr.mxu0 0.0
      %574 = vmatpush1.msra.mxu0 0.0
      %575 = vmatprep.subr.mxu0 0.0
      %576 = vmatpush1.msra.mxu0 0.0
      %577 = vmatprep.subr.mxu0 0.0
      %578 = vmatpush1.msra.mxu0 0.0
      %579 = vmatprep.subr.mxu0 0.0
      %580 = vmatpush1.msra.mxu0 0.0
      %581 = vmatprep.subr.mxu0 0.0
      %582 = vmatpush1.msra.mxu0 %v549
      %583 = vmatprep.subr.mxu0 0.0
      %584 = vmatpush2.msra.mxu0 0.0
      %585 = vmatprep.subr.mxu0 0.0
      %586 = vmatpush2.msra.mxu0 0.0
      %587 = vmatprep.subr.mxu0 0.0
      %588 = vmatpush2.msra.mxu0 0.0
      %589 = vmatprep.subr.mxu0 0.0
      %590 = vmatpush2.msra.mxu0 0.0
      %591 = vmatprep.subr.mxu0 0.0
      %592 = vmatpush2.msra.mxu0 0.0
      %593 = vmatprep.subr.mxu0 0.0
      %594 = vmatpush2.msra.mxu0 0.0
      %595 = vmatprep.subr.mxu0 0.0
      %596 = vmatpush2.msra.mxu0 0.0
      %597 = vmatprep.subr.mxu0 0.0
      %598 = vmatpush2.msra.mxu0 0.0
      %599 = vmatprep.subr.mxu0 0.0
      %600 = vmatpush2.msra.mxu0 0.0
      %601 = vmatprep.subr.mxu0 0.0
      %602 = vmatpush2.msra.mxu0 0.0
      %603 = vmatprep.subr.mxu0 0.0
      %604 = vmatpush2.msra.mxu0 0.0
      %605 = vmatprep.subr.mxu0 0.0
      %606 = vmatpush2.msra.mxu0 0.0
      %607 = vmatprep.subr.mxu0 0.0
      %608 = vmatpush2.msra.mxu0 0.0
      %609 = vmatprep.subr.mxu0 0.0
      %610 = vmatpush2.msra.mxu0 0.0
      %611 = vmatprep.subr.mxu0 0.0
      %612 = vmatpush2.msra.mxu0 0.0
      %613 = vmatprep.subr.mxu0 0.0
      %614 = vmatpush2.msra.mxu0 0.0
      %615 = vmatprep.mubr.f32.mxu0 0.0
      %616 = vmatmul.mubr.f32.gmra.mxu0 %v425
      %v617 = vpop.f32.mrf.mxu0
      %v618 = vadd.f32 0.0, %v617
      %v619 = vpop.f32.mrf.mxu0
      %620 = vmatprep.mubr.f32.mxu0 0.0
      %621 = vmatmul.mubr.f32.gmra.mxu0 %v428
      %v622 = vpop.f32.mrf.mxu0
      %v623 = vadd.f32 0.0, %v622
      %v624 = vpop.f32.mrf.mxu0
      %625 = vmatprep.mubr.f32.mxu0 0.0
      %626 = vmatmul.mubr.f32.gmra.mxu0 %v431
      %v627 = vpop.f32.mrf.mxu0
      %v628 = vadd.f32 0.0, %v627
      %v629 = vpop.f32.mrf.mxu0
      %630 = vmatprep.mubr.f32.mxu0 0.0
      %631 = vmatmul.mubr.f32.gmra.mxu0 %v434
      %v632 = vpop.f32.mrf.mxu0
      %v633 = vadd.f32 0.0, %v632
      %v634 = vpop.f32.mrf.mxu0
      %635 = vmatprep.mubr.f32.mxu0 0.0
      %636 = vmatmul.mubr.f32.gmra.mxu0 %v437
      %v637 = vpop.f32.mrf.mxu0
      %v638 = vadd.f32 0.0, %v637
      %v639 = vpop.f32.mrf.mxu0
      %640 = vmatprep.mubr.f32.mxu0 0.0
      %641 = vmatmul.mubr.f32.gmra.mxu0 %v440
      %v642 = vpop.f32.mrf.mxu0
      %v643 = vadd.f32 0.0, %v642
      %v644 = vpop.f32.mrf.mxu0
      %645 = vmatprep.mubr.f32.mxu0 0.0
      %646 = vmatmul.mubr.f32.gmra.mxu0 %v443
      %v647 = vpop.f32.mrf.mxu0
      %v648 = vadd.f32 0.0, %v647
      %v649 = vpop.f32.mrf.mxu0
      %650 = vmatprep.mubr.f32.mxu0 0.0
      %651 = vmatmul.mubr.f32.gmra.mxu0 %v446
      %v652 = vpop.f32.mrf.mxu0
      %v653 = vadd.f32 0.0, %v652
      %v654 = vpop.f32.mrf.mxu0
      %655 = vmatprep.mubr.f32.mxu0 0.0
      %656 = vmatmul.mubr.f32.gmra.mxu0 %v449
      %v657 = vpop.f32.mrf.mxu0
      %v658 = vadd.f32 0.0, %v657
      %v659 = vpop.f32.mrf.mxu0
      %660 = vmatprep.mubr.f32.mxu0 0.0
      %661 = vmatmul.mubr.f32.gmra.mxu0 %v452
      %v662 = vpop.f32.mrf.mxu0
      %v663 = vadd.f32 0.0, %v662
      %v664 = vpop.f32.mrf.mxu0
      %665 = vmatprep.mubr.f32.mxu0 0.0
      %666 = vmatmul.mubr.f32.gmra.mxu0 %v455
      %v667 = vpop.f32.mrf.mxu0
      %v668 = vadd.f32 0.0, %v667
      %v669 = vpop.f32.mrf.mxu0
      %670 = vmatprep.mubr.f32.mxu0 0.0
      %671 = vmatmul.mubr.f32.gmra.mxu0 %v458
      %v672 = vpop.f32.mrf.mxu0
      %v673 = vadd.f32 0.0, %v672
      %v674 = vpop.f32.mrf.mxu0
      %675 = vmatprep.mubr.f32.mxu0 0.0
      %676 = vmatmul.mubr.f32.gmra.mxu0 %v461
      %v677 = vpop.f32.mrf.mxu0
      %v678 = vadd.f32 0.0, %v677
      %v679 = vpop.f32.mrf.mxu0
      %680 = vmatprep.mubr.f32.mxu0 0.0
      %681 = vmatmul.mubr.f32.gmra.mxu0 %v464
      %v682 = vpop.f32.mrf.mxu0
      %v683 = vadd.f32 0.0, %v682
      %v684 = vpop.f32.mrf.mxu0
      %685 = vmatprep.mubr.f32.mxu0 0.0
      %686 = vmatmul.mubr.f32.gmra.mxu0 %v467
      %v687 = vpop.f32.mrf.mxu0
      %v688 = vadd.f32 0.0, %v687
      %v689 = vpop.f32.mrf.mxu0
      %690 = vmatprep.mubr.f32.mxu0 0.0
      %691 = vmatmul.mubr.f32.gmra.mxu0 %v470
      %v692 = vpop.f32.mrf.mxu0
      %v693 = vadd.f32 0.0, %v692
      %v694 = vpop.f32.mrf.mxu0
      %695 = vmatprep.mubr.f32.mxu0 0.0
      %696 = vmatmul.mubr.f32.gmra.mxu0 %v473
      %v697 = vpop.f32.mrf.mxu0
      %v698 = vadd.f32 0.0, %v697
      %v699 = vpop.f32.mrf.mxu0
      %700 = vmatprep.mubr.f32.mxu0 0.0
      %701 = vmatmul.mubr.f32.gmra.mxu0 %v476
      %v702 = vpop.f32.mrf.mxu0
      %v703 = vadd.f32 0.0, %v702
      %v704 = vpop.f32.mrf.mxu0
      %705 = vmatprep.mubr.f32.mxu0 0.0
      %706 = vmatmul.mubr.f32.gmra.mxu0 %v479
      %v707 = vpop.f32.mrf.mxu0
      %v708 = vadd.f32 0.0, %v707
      %v709 = vpop.f32.mrf.mxu0
      %710 = vmatprep.mubr.f32.mxu0 0.0
      %711 = vmatmul.mubr.f32.gmra.mxu0 %v482
      %v712 = vpop.f32.mrf.mxu0
      %v713 = vadd.f32 0.0, %v712
      %v714 = vpop.f32.mrf.mxu0
      %715 = vmatprep.mubr.f32.mxu0 0.0
      %716 = vmatmul.mubr.f32.gmra.mxu0 %v485
      %v717 = vpop.f32.mrf.mxu0
      %v718 = vadd.f32 0.0, %v717
      %v719 = vpop.f32.mrf.mxu0
      %720 = vmatprep.mubr.f32.mxu0 0.0
      %721 = vmatmul.mubr.f32.gmra.mxu0 %v488
      %v722 = vpop.f32.mrf.mxu0
      %v723 = vadd.f32 0.0, %v722
      %v724 = vpop.f32.mrf.mxu0
      %725 = vmatprep.mubr.f32.mxu0 0.0
      %726 = vmatmul.mubr.f32.gmra.mxu0 %v491
      %v727 = vpop.f32.mrf.mxu0
      %v728 = vadd.f32 0.0, %v727
      %v729 = vpop.f32.mrf.mxu0
      %730 = vmatprep.mubr.f32.mxu0 0.0
      %731 = vmatmul.mubr.f32.gmra.mxu0 %v494
      %v732 = vpop.f32.mrf.mxu0
      %v733 = vadd.f32 0.0, %v732
      %v734 = vpop.f32.mrf.mxu0
      %735 = vmatprep.mubr.f32.mxu0 0.0
      %736 = vmatmul.mubr.f32.gmra.mxu0 %v497
      %v737 = vpop.f32.mrf.mxu0
      %v738 = vadd.f32 0.0, %v737
      %v739 = vpop.f32.mrf.mxu0
      %740 = vmatprep.mubr.f32.mxu0 0.0
      %741 = vmatmul.mubr.f32.gmra.mxu0 %v500
      %v742 = vpop.f32.mrf.mxu0
      %v743 = vadd.f32 0.0, %v742
      %v744 = vpop.f32.mrf.mxu0
      %745 = vmatprep.mubr.f32.mxu0 0.0
      %746 = vmatmul.mubr.f32.gmra.mxu0 %v503
      %v747 = vpop.f32.mrf.mxu0
      %v748 = vadd.f32 0.0, %v747
      %v749 = vpop.f32.mrf.mxu0
      %750 = vmatprep.mubr.f32.mxu0 0.0
      %751 = vmatmul.mubr.f32.gmra.mxu0 %v506
      %v752 = vpop.f32.mrf.mxu0
      %v753 = vadd.f32 0.0, %v752
      %v754 = vpop.f32.mrf.mxu0
      %755 = vmatprep.mubr.f32.mxu0 0.0
      %756 = vmatmul.mubr.f32.gmra.mxu0 %v509
      %v757 = vpop.f32.mrf.mxu0
      %v758 = vadd.f32 0.0, %v757
      %v759 = vpop.f32.mrf.mxu0
      %760 = vmatprep.mubr.f32.mxu0 0.0
      %761 = vmatmul.mubr.f32.gmra.mxu0 %v512
      %v762 = vpop.f32.mrf.mxu0
      %v763 = vadd.f32 0.0, %v762
      %v764 = vpop.f32.mrf.mxu0
      %765 = vmatprep.mubr.f32.mxu0 0.0
      %766 = vmatmul.mubr.f32.gmra.mxu0 %v515
      %v767 = vpop.f32.mrf.mxu0
      %v768 = vadd.f32 0.0, %v767
      %v769 = vpop.f32.mrf.mxu0
      %770 = vmatprep.mubr.f32.mxu0 0.0
      %771 = vmatmul.mubr.f32.gmra.mxu0 %v518
      %v772 = vpop.f32.mrf.mxu0
      %v773 = vadd.f32 0.0, %v772
      %v774 = vpop.f32.mrf.mxu0
      %775 = vmatprep.mubr.f32.mxu0 0.0
      %776 = vmatmul.mubr.f32.gmra.mxu0 %v521
      %v777 = vpop.f32.mrf.mxu0
      %v778 = vadd.f32 0.0, %v777
      %v779 = vpop.f32.mrf.mxu0
      %780 = vmatprep.mubr.f32.mxu0 0.0
      %781 = vmatmul.mubr.f32.gmra.mxu0 %v524
      %v782 = vpop.f32.mrf.mxu0
      %v783 = vadd.f32 0.0, %v782
      %v784 = vpop.f32.mrf.mxu0
      %785 = vmatprep.mubr.f32.mxu0 0.0
      %786 = vmatmul.mubr.f32.gmra.mxu0 %v527
      %v787 = vpop.f32.mrf.mxu0
      %v788 = vadd.f32 0.0, %v787
      %v789 = vpop.f32.mrf.mxu0
      %790 = vmatprep.mubr.f32.mxu0 0.0
      %791 = vmatmul.mubr.f32.gmra.mxu0 %v530
      %v792 = vpop.f32.mrf.mxu0
      %v793 = vadd.f32 0.0, %v792
      %v794 = vpop.f32.mrf.mxu0
      %795 = vmatprep.mubr.f32.mxu0 0.0
      %796 = vmatmul.mubr.f32.gmra.mxu0 %v533
      %v797 = vpop.f32.mrf.mxu0
      %v798 = vadd.f32 0.0, %v797
      %v799 = vpop.f32.mrf.mxu0
      %800 = vmatprep.mubr.f32.mxu0 0.0
      %801 = vmatmul.mubr.f32.gmra.mxu0 %v536
      %v802 = vpop.f32.mrf.mxu0
      %v803 = vadd.f32 0.0, %v802
      %v804 = vpop.f32.mrf.mxu0
      %805 = vmatprep.mubr.f32.mxu0 0.0
      %806 = vmatmul.mubr.f32.gmra.mxu0 %v539
      %v807 = vpop.f32.mrf.mxu0
      %v808 = vadd.f32 0.0, %v807
      %v809 = vpop.f32.mrf.mxu0
      %810 = vmatprep.mubr.f32.mxu0 0.0
      %811 = vmatmul.mubr.f32.gmra.mxu0 %v542
      %v812 = vpop.f32.mrf.mxu0
      %v813 = vadd.f32 0.0, %v812
      %v814 = vpop.f32.mrf.mxu0
      %815 = vmatprep.mubr.f32.mxu0 0.0
      %816 = vmatmul.mubr.f32.gmra.mxu0 %v545
      %v817 = vpop.f32.mrf.mxu0
      %v818 = vadd.f32 0.0, %v817
      %v819 = vpop.f32.mrf.mxu0
      %820 = vdwg.mxu0
      %v822 = vsel %vm423, %v338, 0
      %v825 = vsel %vm423, %v339, 0
      %v828 = vsel %vm423, %v340, 0
      %v831 = vsel %vm423, %v341, 0
      %v834 = vsel %vm423, %v342, 0
      %v837 = vsel %vm423, %v343, 0
      %v840 = vsel %vm423, %v344, 0
      %v843 = vsel %vm423, %v345, 0
      %v846 = vsel %vm423, %v346, 0
      %v849 = vsel %vm423, %v347, 0
      %v852 = vsel %vm423, %v348, 0
      %v855 = vsel %vm423, %v349, 0
      %v858 = vsel %vm423, %v350, 0
      %v861 = vsel %vm423, %v351, 0
      %v864 = vsel %vm423, %v352, 0
      %v867 = vsel %vm423, %v353, 0
      %v870 = vsel %vm423, %v354, 0
      %v873 = vsel %vm423, %v355, 0
      %v876 = vsel %vm423, %v356, 0
      %v879 = vsel %vm423, %v357, 0
      %v882 = vsel %vm423, %v358, 0
      %v885 = vsel %vm423, %v359, 0
      %v888 = vsel %vm423, %v360, 0
      %v891 = vsel %vm423, %v361, 0
      %v894 = vsel %vm423, %v362, 0
      %v897 = vsel %vm423, %v363, 0
      %v900 = vsel %vm423, %v364, 0
      %v903 = vsel %vm423, %v365, 0
      %v906 = vsel %vm423, %v366, 0
      %v909 = vsel %vm423, %v367, 0
      %v912 = vsel %vm423, %v368, 0
      %v915 = vsel %vm423, %v369, 0
      %v918 = vsel %vm423, %v370, 0
      %v921 = vsel %vm423, %v371, 0
      %v924 = vsel %vm423, %v372, 0
      %v927 = vsel %vm423, %v373, 0
      %v930 = vsel %vm423, %v374, 0
      %v933 = vsel %vm423, %v375, 0
      %v936 = vsel %vm423, %v376, 0
      %v939 = vsel %vm423, %v377, 0
      %v942 = vsel %vm423, %v378, 0
      %v945 = vsel %vm547, %v379, 0
      %947 = vmatprep.subr.mxu0 0.0
      %948 = vmatpush1.msra.mxu0 0.0
      %949 = vmatprep.subr.mxu0 0.0
      %950 = vmatpush1.msra.mxu0 0.0
      %951 = vmatprep.subr.mxu0 0.0
      %952 = vmatpush1.msra.mxu0 0.0
      %953 = vmatprep.subr.mxu0 0.0
      %954 = vmatpush1.msra.mxu0 0.0
      %955 = vmatprep.subr.mxu0 0.0
      %956 = vmatpush1.msra.mxu0 0.0
      %957 = vmatprep.subr.mxu0 0.0
      %958 = vmatpush1.msra.mxu0 0.0
      %959 = vmatprep.subr.mxu0 0.0
      %960 = vmatpush1.msra.mxu0 0.0
      %961 = vmatprep.subr.mxu0 0.0
      %962 = vmatpush1.msra.mxu0 0.0
      %963 = vmatprep.subr.mxu0 0.0
      %964 = vmatpush1.msra.mxu0 0.0
      %965 = vmatprep.subr.mxu0 0.0
      %966 = vmatpush1.msra.mxu0 0.0
      %967 = vmatprep.subr.mxu0 0.0
      %968 = vmatpush1.msra.mxu0 0.0
      %969 = vmatprep.subr.mxu0 0.0
      %970 = vmatpush1.msra.mxu0 0.0
      %971 = vmatprep.subr.mxu0 0.0
      %972 = vmatpush1.msra.mxu0 0.0
      %973 = vmatprep.subr.mxu0 0.0
      %974 = vmatpush1.msra.mxu0 0.0
      %975 = vmatprep.subr.mxu0 0.0
      %976 = vmatpush1.msra.mxu0 0.0
      %977 = vmatprep.subr.mxu0 0.0
      %978 = vmatpush1.msra.mxu0 %v945
      %979 = vmatprep.subr.mxu0 0.0
      %980 = vmatpush2.msra.mxu0 0.0
      %981 = vmatprep.subr.mxu0 0.0
      %982 = vmatpush2.msra.mxu0 0.0
      %983 = vmatprep.subr.mxu0 0.0
      %984 = vmatpush2.msra.mxu0 0.0
      %985 = vmatprep.subr.mxu0 0.0
      %986 = vmatpush2.msra.mxu0 0.0
      %987 = vmatprep.subr.mxu0 0.0
      %988 = vmatpush2.msra.mxu0 0.0
      %989 = vmatprep.subr.mxu0 0.0
      %990 = vmatpush2.msra.mxu0 0.0
      %991 = vmatprep.subr.mxu0 0.0
      %992 = vmatpush2.msra.mxu0 0.0
      %993 = vmatprep.subr.mxu0 0.0
      %994 = vmatpush2.msra.mxu0 0.0
      %995 = vmatprep.subr.mxu0 0.0
      %996 = vmatpush2.msra.mxu0 0.0
      %997 = vmatprep.subr.mxu0 0.0
      %998 = vmatpush2.msra.mxu0 0.0
      %999 = vmatprep.subr.mxu0 0.0
      %1000 = vmatpush2.msra.mxu0 0.0
      %1001 = vmatprep.subr.mxu0 0.0
      %1002 = vmatpush2.msra.mxu0 0.0
      %1003 = vmatprep.subr.mxu0 0.0
      %1004 = vmatpush2.msra.mxu0 0.0
      %1005 = vmatprep.subr.mxu0 0.0
      %1006 = vmatpush2.msra.mxu0 0.0
      %1007 = vmatprep.subr.mxu0 0.0
      %1008 = vmatpush2.msra.mxu0 0.0
      %1009 = vmatprep.subr.mxu0 0.0
      %1010 = vmatpush2.msra.mxu0 0.0
      %1011 = vmatprep.mubr.f32.mxu0 0.0
      %1012 = vmatmul.mubr.f32.gmra.mxu0 %v822
      %v1013 = vpop.f32.mrf.mxu0
      %v1014 = vadd.f32 %v618, %v1013
      %v1015 = vpop.f32.mrf.mxu0
      %1016 = vmatprep.mubr.f32.mxu0 0.0
      %1017 = vmatmul.mubr.f32.gmra.mxu0 %v825
      %v1018 = vpop.f32.mrf.mxu0
      %v1019 = vadd.f32 %v623, %v1018
      %v1020 = vpop.f32.mrf.mxu0
      %1021 = vmatprep.mubr.f32.mxu0 0.0
      %1022 = vmatmul.mubr.f32.gmra.mxu0 %v828
      %v1023 = vpop.f32.mrf.mxu0
      %v1024 = vadd.f32 %v628, %v1023
      %v1025 = vpop.f32.mrf.mxu0
      %1026 = vmatprep.mubr.f32.mxu0 0.0
      %1027 = vmatmul.mubr.f32.gmra.mxu0 %v831
      %v1028 = vpop.f32.mrf.mxu0
      %v1029 = vadd.f32 %v633, %v1028
      %v1030 = vpop.f32.mrf.mxu0
      %1031 = vmatprep.mubr.f32.mxu0 0.0
      %1032 = vmatmul.mubr.f32.gmra.mxu0 %v834
      %v1033 = vpop.f32.mrf.mxu0
      %v1034 = vadd.f32 %v638, %v1033
      %v1035 = vpop.f32.mrf.mxu0
      %1036 = vmatprep.mubr.f32.mxu0 0.0
      %1037 = vmatmul.mubr.f32.gmra.mxu0 %v837
      %v1038 = vpop.f32.mrf.mxu0
      %v1039 = vadd.f32 %v643, %v1038
      %v1040 = vpop.f32.mrf.mxu0
      %1041 = vmatprep.mubr.f32.mxu0 0.0
      %1042 = vmatmul.mubr.f32.gmra.mxu0 %v840
      %v1043 = vpop.f32.mrf.mxu0
      %v1044 = vadd.f32 %v648, %v1043
      %v1045 = vpop.f32.mrf.mxu0
      %1046 = vmatprep.mubr.f32.mxu0 0.0
      %1047 = vmatmul.mubr.f32.gmra.mxu0 %v843
      %v1048 = vpop.f32.mrf.mxu0
      %v1049 = vadd.f32 %v653, %v1048
      %v1050 = vpop.f32.mrf.mxu0
      %1051 = vmatprep.mubr.f32.mxu0 0.0
      %1052 = vmatmul.mubr.f32.gmra.mxu0 %v846
      %v1053 = vpop.f32.mrf.mxu0
      %v1054 = vadd.f32 %v658, %v1053
      %v1055 = vpop.f32.mrf.mxu0
      %1056 = vmatprep.mubr.f32.mxu0 0.0
      %1057 = vmatmul.mubr.f32.gmra.mxu0 %v849
      %v1058 = vpop.f32.mrf.mxu0
      %v1059 = vadd.f32 %v663, %v1058
      %v1060 = vpop.f32.mrf.mxu0
      %1061 = vmatprep.mubr.f32.mxu0 0.0
      %1062 = vmatmul.mubr.f32.gmra.mxu0 %v852
      %v1063 = vpop.f32.mrf.mxu0
      %v1064 = vadd.f32 %v668, %v1063
      %v1065 = vpop.f32.mrf.mxu0
      %1066 = vmatprep.mubr.f32.mxu0 0.0
      %1067 = vmatmul.mubr.f32.gmra.mxu0 %v855
      %v1068 = vpop.f32.mrf.mxu0
      %v1069 = vadd.f32 %v673, %v1068
      %v1070 = vpop.f32.mrf.mxu0
      %1071 = vmatprep.mubr.f32.mxu0 0.0
      %1072 = vmatmul.mubr.f32.gmra.mxu0 %v858
      %v1073 = vpop.f32.mrf.mxu0
      %v1074 = vadd.f32 %v678, %v1073
      %v1075 = vpop.f32.mrf.mxu0
      %1076 = vmatprep.mubr.f32.mxu0 0.0
      %1077 = vmatmul.mubr.f32.gmra.mxu0 %v861
      %v1078 = vpop.f32.mrf.mxu0
      %v1079 = vadd.f32 %v683, %v1078
      %v1080 = vpop.f32.mrf.mxu0
      %1081 = vmatprep.mubr.f32.mxu0 0.0
      %1082 = vmatmul.mubr.f32.gmra.mxu0 %v864
      %v1083 = vpop.f32.mrf.mxu0
      %v1084 = vadd.f32 %v688, %v1083
      %v1085 = vpop.f32.mrf.mxu0
      %1086 = vmatprep.mubr.f32.mxu0 0.0
      %1087 = vmatmul.mubr.f32.gmra.mxu0 %v867
      %v1088 = vpop.f32.mrf.mxu0
      %v1089 = vadd.f32 %v693, %v1088
      %v1090 = vpop.f32.mrf.mxu0
      %1091 = vmatprep.mubr.f32.mxu0 0.0
      %1092 = vmatmul.mubr.f32.gmra.mxu0 %v870
      %v1093 = vpop.f32.mrf.mxu0
      %v1094 = vadd.f32 %v698, %v1093
      %v1095 = vpop.f32.mrf.mxu0
      %1096 = vmatprep.mubr.f32.mxu0 0.0
      %1097 = vmatmul.mubr.f32.gmra.mxu0 %v873
      %v1098 = vpop.f32.mrf.mxu0
      %v1099 = vadd.f32 %v703, %v1098
      %v1100 = vpop.f32.mrf.mxu0
      %1101 = vmatprep.mubr.f32.mxu0 0.0
      %1102 = vmatmul.mubr.f32.gmra.mxu0 %v876
      %v1103 = vpop.f32.mrf.mxu0
      %v1104 = vadd.f32 %v708, %v1103
      %v1105 = vpop.f32.mrf.mxu0
      %1106 = vmatprep.mubr.f32.mxu0 0.0
      %1107 = vmatmul.mubr.f32.gmra.mxu0 %v879
      %v1108 = vpop.f32.mrf.mxu0
      %v1109 = vadd.f32 %v713, %v1108
      %v1110 = vpop.f32.mrf.mxu0
      %1111 = vmatprep.mubr.f32.mxu0 0.0
      %1112 = vmatmul.mubr.f32.gmra.mxu0 %v882
      %v1113 = vpop.f32.mrf.mxu0
      %v1114 = vadd.f32 %v718, %v1113
      %v1115 = vpop.f32.mrf.mxu0
      %1116 = vmatprep.mubr.f32.mxu0 0.0
      %1117 = vmatmul.mubr.f32.gmra.mxu0 %v885
      %v1118 = vpop.f32.mrf.mxu0
      %v1119 = vadd.f32 %v723, %v1118
      %v1120 = vpop.f32.mrf.mxu0
      %1121 = vmatprep.mubr.f32.mxu0 0.0
      %1122 = vmatmul.mubr.f32.gmra.mxu0 %v888
      %v1123 = vpop.f32.mrf.mxu0
      %v1124 = vadd.f32 %v728, %v1123
      %v1125 = vpop.f32.mrf.mxu0
      %1126 = vmatprep.mubr.f32.mxu0 0.0
      %1127 = vmatmul.mubr.f32.gmra.mxu0 %v891
      %v1128 = vpop.f32.mrf.mxu0
      %v1129 = vadd.f32 %v733, %v1128
      %v1130 = vpop.f32.mrf.mxu0
      %1131 = vmatprep.mubr.f32.mxu0 0.0
      %1132 = vmatmul.mubr.f32.gmra.mxu0 %v894
      %v1133 = vpop.f32.mrf.mxu0
      %v1134 = vadd.f32 %v738, %v1133
      %v1135 = vpop.f32.mrf.mxu0
      %1136 = vmatprep.mubr.f32.mxu0 0.0
      %1137 = vmatmul.mubr.f32.gmra.mxu0 %v897
      %v1138 = vpop.f32.mrf.mxu0
      %v1139 = vadd.f32 %v743, %v1138
      %v1140 = vpop.f32.mrf.mxu0
      %1141 = vmatprep.mubr.f32.mxu0 0.0
      %1142 = vmatmul.mubr.f32.gmra.mxu0 %v900
      %v1143 = vpop.f32.mrf.mxu0
      %v1144 = vadd.f32 %v748, %v1143
      %v1145 = vpop.f32.mrf.mxu0
      %1146 = vmatprep.mubr.f32.mxu0 0.0
      %1147 = vmatmul.mubr.f32.gmra.mxu0 %v903
      %v1148 = vpop.f32.mrf.mxu0
      %v1149 = vadd.f32 %v753, %v1148
      %v1150 = vpop.f32.mrf.mxu0
      %1151 = vmatprep.mubr.f32.mxu0 0.0
      %1152 = vmatmul.mubr.f32.gmra.mxu0 %v906
      %v1153 = vpop.f32.mrf.mxu0
      %v1154 = vadd.f32 %v758, %v1153
      %v1155 = vpop.f32.mrf.mxu0
      %1156 = vmatprep.mubr.f32.mxu0 0.0
      %1157 = vmatmul.mubr.f32.gmra.mxu0 %v909
      %v1158 = vpop.f32.mrf.mxu0
      %v1159 = vadd.f32 %v763, %v1158
      %v1160 = vpop.f32.mrf.mxu0
      %1161 = vmatprep.mubr.f32.mxu0 0.0
      %1162 = vmatmul.mubr.f32.gmra.mxu0 %v912
      %v1163 = vpop.f32.mrf.mxu0
      %v1164 = vadd.f32 %v768, %v1163
      %v1165 = vpop.f32.mrf.mxu0
      %1166 = vmatprep.mubr.f32.mxu0 0.0
      %1167 = vmatmul.mubr.f32.gmra.mxu0 %v915
      %v1168 = vpop.f32.mrf.mxu0
      %v1169 = vadd.f32 %v773, %v1168
      %v1170 = vpop.f32.mrf.mxu0
      %1171 = vmatprep.mubr.f32.mxu0 0.0
      %1172 = vmatmul.mubr.f32.gmra.mxu0 %v918
      %v1173 = vpop.f32.mrf.mxu0
      %v1174 = vadd.f32 %v778, %v1173
      %v1175 = vpop.f32.mrf.mxu0
      %1176 = vmatprep.mubr.f32.mxu0 0.0
      %1177 = vmatmul.mubr.f32.gmra.mxu0 %v921
      %v1178 = vpop.f32.mrf.mxu0
      %v1179 = vadd.f32 %v783, %v1178
      %v1180 = vpop.f32.mrf.mxu0
      %1181 = vmatprep.mubr.f32.mxu0 0.0
      %1182 = vmatmul.mubr.f32.gmra.mxu0 %v924
      %v1183 = vpop.f32.mrf.mxu0
      %v1184 = vadd.f32 %v788, %v1183
      %v1185 = vpop.f32.mrf.mxu0
      %1186 = vmatprep.mubr.f32.mxu0 0.0
      %1187 = vmatmul.mubr.f32.gmra.mxu0 %v927
      %v1188 = vpop.f32.mrf.mxu0
      %v1189 = vadd.f32 %v793, %v1188
      %v1190 = vpop.f32.mrf.mxu0
      %1191 = vmatprep.mubr.f32.mxu0 0.0
      %1192 = vmatmul.mubr.f32.gmra.mxu0 %v930
      %v1193 = vpop.f32.mrf.mxu0
      %v1194 = vadd.f32 %v798, %v1193
      %v1195 = vpop.f32.mrf.mxu0
      %1196 = vmatprep.mubr.f32.mxu0 0.0
      %1197 = vmatmul.mubr.f32.gmra.mxu0 %v933
      %v1198 = vpop.f32.mrf.mxu0
      %v1199 = vadd.f32 %v803, %v1198
      %v1200 = vpop.f32.mrf.mxu0
      %1201 = vmatprep.mubr.f32.mxu0 0.0
      %1202 = vmatmul.mubr.f32.gmra.mxu0 %v936
      %v1203 = vpop.f32.mrf.mxu0
      %v1204 = vadd.f32 %v808, %v1203
      %v1205 = vpop.f32.mrf.mxu0
      %1206 = vmatprep.mubr.f32.mxu0 0.0
      %1207 = vmatmul.mubr.f32.gmra.mxu0 %v939
      %v1208 = vpop.f32.mrf.mxu0
      %v1209 = vadd.f32 %v813, %v1208
      %v1210 = vpop.f32.mrf.mxu0
      %1211 = vmatprep.mubr.f32.mxu0 0.0
      %1212 = vmatmul.mubr.f32.gmra.mxu0 %v942
      %v1213 = vpop.f32.mrf.mxu0
      %v1214 = vadd.f32 %v818, %v1213
      %v1215 = vpop.f32.mrf.mxu0
      %1216 = vdwg.mxu0
      %v1217 = vld [vmem:[%s326 + $0x8] sm:$0xff]
      %v1218 = vld [vmem:[%s326 + $0x10] sm:$0xff]
      %v1219 = vld [vmem:[%s326 + $0x18] sm:$0xff]
      %v1220 = vld [vmem:[%s326 + $0x20] sm:$0xff]
      %v1221 = vld [vmem:[%s326 + $0x28] sm:$0xff]
      %v1222 = vld [vmem:[%s326 + $0x30] sm:$0xff]
      %v1223 = vld [vmem:[%s326 + $0x38] sm:$0xff]
      %v1224 = vld [vmem:[%s326 + $0x40] sm:$0xff]
      %v1225 = vld [vmem:[%s326 + $0x48] sm:$0xff]
      %v1226 = vld [vmem:[%s326 + $0x50] sm:$0xff]
      %v1227 = vld [vmem:[%s326 + $0x58] sm:$0xff]
      %v1228 = vld [vmem:[%s326 + $0x60] sm:$0xff]
      %v1229 = vld [vmem:[%s326 + $0x68] sm:$0xff]
      %v1230 = vld [vmem:[%s326 + $0x70] sm:$0xff]
      %v1231 = vld [vmem:[%s326 + $0x78] sm:$0xff]
      %v1232 = vld [vmem:[%s326 + $0x80] sm:$0xff]
      %v1233 = vld [vmem:[%s326 + $0x88] sm:$0xff]
      %v1234 = vld [vmem:[%s326 + $0x90] sm:$0xff]
      %v1235 = vld [vmem:[%s326 + $0x98] sm:$0xff]
      %v1236 = vld [vmem:[%s326 + $0xa0] sm:$0xff]
      %v1237 = vld [vmem:[%s326 + $0xa8] sm:$0xff]
      %v1238 = vld [vmem:[%s326 + $0xb0] sm:$0xff]
      %v1239 = vld [vmem:[%s326 + $0xb8] sm:$0xff]
      %v1240 = vld [vmem:[%s326 + $0xc0] sm:$0xff]
      %v1241 = vld [vmem:[%s326 + $0xc8] sm:$0xff]
      %v1242 = vld [vmem:[%s326 + $0xd0] sm:$0xff]
      %v1243 = vld [vmem:[%s326 + $0xd8] sm:$0xff]
      %v1244 = vld [vmem:[%s326 + $0xe0] sm:$0xff]
      %v1245 = vld [vmem:[%s326 + $0xe8] sm:$0xff]
      %v1246 = vld [vmem:[%s326 + $0xf0] sm:$0xff]
      %v1247 = vld [vmem:[%s326 + $0xf8] sm:$0xff]
      %v1248 = vld [vmem:[%s326 + $0x100] sm:$0xff]
      %v1249 = vld [vmem:[%s326 + $0x108] sm:$0xff]
      %v1250 = vld [vmem:[%s326 + $0x110] sm:$0xff]
      %v1251 = vld [vmem:[%s326 + $0x118] sm:$0xff]
      %v1252 = vld [vmem:[%s326 + $0x120] sm:$0xff]
      %v1253 = vld [vmem:[%s326 + $0x128] sm:$0xff]
      %v1254 = vld [vmem:[%s326 + $0x130] sm:$0xff]
      %v1255 = vld [vmem:[%s326 + $0x138] sm:$0xff]
      %v1256 = vld [vmem:[%s326 + $0x140] sm:$0xff]
      %v1257 = vld [vmem:[%s326 + $0x148] sm:$0xf]
      %s1258 = scalar_lea.vmem %s1, 8
      %v1259 = vld [vmem:[%s1258] sm:$0xf]
      %v1261 = vsel %vm423, %v1217, 0
      %v1264 = vsel %vm423, %v1218, 0
      %v1267 = vsel %vm423, %v1219, 0
      %v1270 = vsel %vm423, %v1220, 0
      %v1273 = vsel %vm423, %v1221, 0
      %v1276 = vsel %vm423, %v1222, 0
      %v1279 = vsel %vm423, %v1223, 0
      %v1282 = vsel %vm423, %v1224, 0
      %v1285 = vsel %vm423, %v1225, 0
      %v1288 = vsel %vm423, %v1226, 0
      %v1291 = vsel %vm423, %v1227, 0
      %v1294 = vsel %vm423, %v1228, 0
      %v1297 = vsel %vm423, %v1229, 0
      %v1300 = vsel %vm423, %v1230, 0
      %v1303 = vsel %vm423, %v1231, 0
      %v1306 = vsel %vm423, %v1232, 0
      %v1309 = vsel %vm423, %v1233, 0
      %v1312 = vsel %vm423, %v1234, 0
      %v1315 = vsel %vm423, %v1235, 0
      %v1318 = vsel %vm423, %v1236, 0
      %v1321 = vsel %vm423, %v1237, 0
      %v1324 = vsel %vm423, %v1238, 0
      %v1327 = vsel %vm423, %v1239, 0
      %v1330 = vsel %vm423, %v1240, 0
      %v1333 = vsel %vm423, %v1241, 0
      %v1336 = vsel %vm423, %v1242, 0
      %v1339 = vsel %vm423, %v1243, 0
      %v1342 = vsel %vm423, %v1244, 0
      %v1345 = vsel %vm423, %v1245, 0
      %v1348 = vsel %vm423, %v1246, 0
      %v1351 = vsel %vm423, %v1247, 0
      %v1354 = vsel %vm423, %v1248, 0
      %v1357 = vsel %vm423, %v1249, 0
      %v1360 = vsel %vm423, %v1250, 0
      %v1363 = vsel %vm423, %v1251, 0
      %v1366 = vsel %vm423, %v1252, 0
      %v1369 = vsel %vm423, %v1253, 0
      %v1372 = vsel %vm423, %v1254, 0
      %v1375 = vsel %vm423, %v1255, 0
      %v1378 = vsel %vm423, %v1256, 0
      %v1381 = vsel %vm423, %v1257, 0
      %v1384 = vsel %vm547, %v1259, 0
      %1386 = vmatprep.subr.mxu0 0.0
      %1387 = vmatpush1.msra.mxu0 0.0
      %1388 = vmatprep.subr.mxu0 0.0
      %1389 = vmatpush1.msra.mxu0 0.0
      %1390 = vmatprep.subr.mxu0 0.0
      %1391 = vmatpush1.msra.mxu0 0.0
      %1392 = vmatprep.subr.mxu0 0.0
      %1393 = vmatpush1.msra.mxu0 0.0
      %1394 = vmatprep.subr.mxu0 0.0
      %1395 = vmatpush1.msra.mxu0 0.0
      %1396 = vmatprep.subr.mxu0 0.0
      %1397 = vmatpush1.msra.mxu0 0.0
      %1398 = vmatprep.subr.mxu0 0.0
      %1399 = vmatpush1.msra.mxu0 0.0
      %1400 = vmatprep.subr.mxu0 0.0
      %1401 = vmatpush1.msra.mxu0 0.0
      %1402 = vmatprep.subr.mxu0 0.0
      %1403 = vmatpush1.msra.mxu0 0.0
      %1404 = vmatprep.subr.mxu0 0.0
      %1405 = vmatpush1.msra.mxu0 0.0
      %1406 = vmatprep.subr.mxu0 0.0
      %1407 = vmatpush1.msra.mxu0 0.0
      %1408 = vmatprep.subr.mxu0 0.0
      %1409 = vmatpush1.msra.mxu0 0.0
      %1410 = vmatprep.subr.mxu0 0.0
      %1411 = vmatpush1.msra.mxu0 0.0
      %1412 = vmatprep.subr.mxu0 0.0
      %1413 = vmatpush1.msra.mxu0 0.0
      %1414 = vmatprep.subr.mxu0 0.0
      %1415 = vmatpush1.msra.mxu0 0.0
      %1416 = vmatprep.subr.mxu0 0.0
      %1417 = vmatpush1.msra.mxu0 %v1384
      %1418 = vmatprep.subr.mxu0 0.0
      %1419 = vmatpush2.msra.mxu0 0.0
      %1420 = vmatprep.subr.mxu0 0.0
      %1421 = vmatpush2.msra.mxu0 0.0
      %1422 = vmatprep.subr.mxu0 0.0
      %1423 = vmatpush2.msra.mxu0 0.0
      %1424 = vmatprep.subr.mxu0 0.0
      %1425 = vmatpush2.msra.mxu0 0.0
      %1426 = vmatprep.subr.mxu0 0.0
      %1427 = vmatpush2.msra.mxu0 0.0
      %1428 = vmatprep.subr.mxu0 0.0
      %1429 = vmatpush2.msra.mxu0 0.0
      %1430 = vmatprep.subr.mxu0 0.0
      %1431 = vmatpush2.msra.mxu0 0.0
      %1432 = vmatprep.subr.mxu0 0.0
      %1433 = vmatpush2.msra.mxu0 0.0
      %1434 = vmatprep.subr.mxu0 0.0
      %1435 = vmatpush2.msra.mxu0 0.0
      %1436 = vmatprep.subr.mxu0 0.0
      %1437 = vmatpush2.msra.mxu0 0.0
      %1438 = vmatprep.subr.mxu0 0.0
      %1439 = vmatpush2.msra.mxu0 0.0
      %1440 = vmatprep.subr.mxu0 0.0
      %1441 = vmatpush2.msra.mxu0 0.0
      %1442 = vmatprep.subr.mxu0 0.0
      %1443 = vmatpush2.msra.mxu0 0.0
      %1444 = vmatprep.subr.mxu0 0.0
      %1445 = vmatpush2.msra.mxu0 0.0
      %1446 = vmatprep.subr.mxu0 0.0
      %1447 = vmatpush2.msra.mxu0 0.0
      %1448 = vmatprep.subr.mxu0 0.0
      %1449 = vmatpush2.msra.mxu0 0.0
      %1450 = vmatprep.mubr.f32.mxu0 0.0
      %1451 = vmatmul.mubr.f32.gmra.mxu0 %v1261
      %v1452 = vpop.f32.mrf.mxu0
      %v1453 = vadd.f32 0.0, %v1452
      %v1454 = vpop.f32.mrf.mxu0
      %1455 = vmatprep.mubr.f32.mxu0 0.0
      %1456 = vmatmul.mubr.f32.gmra.mxu0 %v1264
      %v1457 = vpop.f32.mrf.mxu0
      %v1458 = vadd.f32 0.0, %v1457
      %v1459 = vpop.f32.mrf.mxu0
      %1460 = vmatprep.mubr.f32.mxu0 0.0
      %1461 = vmatmul.mubr.f32.gmra.mxu0 %v1267
      %v1462 = vpop.f32.mrf.mxu0
      %v1463 = vadd.f32 0.0, %v1462
      %v1464 = vpop.f32.mrf.mxu0
      %1465 = vmatprep.mubr.f32.mxu0 0.0
      %1466 = vmatmul.mubr.f32.gmra.mxu0 %v1270
      %v1467 = vpop.f32.mrf.mxu0
      %v1468 = vadd.f32 0.0, %v1467
      %v1469 = vpop.f32.mrf.mxu0
      %1470 = vmatprep.mubr.f32.mxu0 0.0
      %1471 = vmatmul.mubr.f32.gmra.mxu0 %v1273
      %v1472 = vpop.f32.mrf.mxu0
      %v1473 = vadd.f32 0.0, %v1472
      %v1474 = vpop.f32.mrf.mxu0
      %1475 = vmatprep.mubr.f32.mxu0 0.0
      %1476 = vmatmul.mubr.f32.gmra.mxu0 %v1276
      %v1477 = vpop.f32.mrf.mxu0
      %v1478 = vadd.f32 0.0, %v1477
      %v1479 = vpop.f32.mrf.mxu0
      %1480 = vmatprep.mubr.f32.mxu0 0.0
      %1481 = vmatmul.mubr.f32.gmra.mxu0 %v1279
      %v1482 = vpop.f32.mrf.mxu0
      %v1483 = vadd.f32 0.0, %v1482
      %v1484 = vpop.f32.mrf.mxu0
      %1485 = vmatprep.mubr.f32.mxu0 0.0
      %1486 = vmatmul.mubr.f32.gmra.mxu0 %v1282
      %v1487 = vpop.f32.mrf.mxu0
      %v1488 = vadd.f32 0.0, %v1487
      %v1489 = vpop.f32.mrf.mxu0
      %1490 = vmatprep.mubr.f32.mxu0 0.0
      %1491 = vmatmul.mubr.f32.gmra.mxu0 %v1285
      %v1492 = vpop.f32.mrf.mxu0
      %v1493 = vadd.f32 0.0, %v1492
      %v1494 = vpop.f32.mrf.mxu0
      %1495 = vmatprep.mubr.f32.mxu0 0.0
      %1496 = vmatmul.mubr.f32.gmra.mxu0 %v1288
      %v1497 = vpop.f32.mrf.mxu0
      %v1498 = vadd.f32 0.0, %v1497
      %v1499 = vpop.f32.mrf.mxu0
      %1500 = vmatprep.mubr.f32.mxu0 0.0
      %1501 = vmatmul.mubr.f32.gmra.mxu0 %v1291
      %v1502 = vpop.f32.mrf.mxu0
      %v1503 = vadd.f32 0.0, %v1502
      %v1504 = vpop.f32.mrf.mxu0
      %1505 = vmatprep.mubr.f32.mxu0 0.0
      %1506 = vmatmul.mubr.f32.gmra.mxu0 %v1294
      %v1507 = vpop.f32.mrf.mxu0
      %v1508 = vadd.f32 0.0, %v1507
      %v1509 = vpop.f32.mrf.mxu0
      %1510 = vmatprep.mubr.f32.mxu0 0.0
      %1511 = vmatmul.mubr.f32.gmra.mxu0 %v1297
      %v1512 = vpop.f32.mrf.mxu0
      %v1513 = vadd.f32 0.0, %v1512
      %v1514 = vpop.f32.mrf.mxu0
      %1515 = vmatprep.mubr.f32.mxu0 0.0
      %1516 = vmatmul.mubr.f32.gmra.mxu0 %v1300
      %v1517 = vpop.f32.mrf.mxu0
      %v1518 = vadd.f32 0.0, %v1517
      %v1519 = vpop.f32.mrf.mxu0
      %1520 = vmatprep.mubr.f32.mxu0 0.0
      %1521 = vmatmul.mubr.f32.gmra.mxu0 %v1303
      %v1522 = vpop.f32.mrf.mxu0
      %v1523 = vadd.f32 0.0, %v1522
      %v1524 = vpop.f32.mrf.mxu0
      %1525 = vmatprep.mubr.f32.mxu0 0.0
      %1526 = vmatmul.mubr.f32.gmra.mxu0 %v1306
      %v1527 = vpop.f32.mrf.mxu0
      %v1528 = vadd.f32 0.0, %v1527
      %v1529 = vpop.f32.mrf.mxu0
      %1530 = vmatprep.mubr.f32.mxu0 0.0
      %1531 = vmatmul.mubr.f32.gmra.mxu0 %v1309
      %v1532 = vpop.f32.mrf.mxu0
      %v1533 = vadd.f32 0.0, %v1532
      %v1534 = vpop.f32.mrf.mxu0
      %1535 = vmatprep.mubr.f32.mxu0 0.0
      %1536 = vmatmul.mubr.f32.gmra.mxu0 %v1312
      %v1537 = vpop.f32.mrf.mxu0
      %v1538 = vadd.f32 0.0, %v1537
      %v1539 = vpop.f32.mrf.mxu0
      %1540 = vmatprep.mubr.f32.mxu0 0.0
      %1541 = vmatmul.mubr.f32.gmra.mxu0 %v1315
      %v1542 = vpop.f32.mrf.mxu0
      %v1543 = vadd.f32 0.0, %v1542
      %v1544 = vpop.f32.mrf.mxu0
      %1545 = vmatprep.mubr.f32.mxu0 0.0
      %1546 = vmatmul.mubr.f32.gmra.mxu0 %v1318
      %v1547 = vpop.f32.mrf.mxu0
      %v1548 = vadd.f32 0.0, %v1547
      %v1549 = vpop.f32.mrf.mxu0
      %1550 = vmatprep.mubr.f32.mxu0 0.0
      %1551 = vmatmul.mubr.f32.gmra.mxu0 %v1321
      %v1552 = vpop.f32.mrf.mxu0
      %v1553 = vadd.f32 0.0, %v1552
      %v1554 = vpop.f32.mrf.mxu0
      %1555 = vmatprep.mubr.f32.mxu0 0.0
      %1556 = vmatmul.mubr.f32.gmra.mxu0 %v1324
      %v1557 = vpop.f32.mrf.mxu0
      %v1558 = vadd.f32 0.0, %v1557
      %v1559 = vpop.f32.mrf.mxu0
      %1560 = vmatprep.mubr.f32.mxu0 0.0
      %1561 = vmatmul.mubr.f32.gmra.mxu0 %v1327
      %v1562 = vpop.f32.mrf.mxu0
      %v1563 = vadd.f32 0.0, %v1562
      %v1564 = vpop.f32.mrf.mxu0
      %1565 = vmatprep.mubr.f32.mxu0 0.0
      %1566 = vmatmul.mubr.f32.gmra.mxu0 %v1330
      %v1567 = vpop.f32.mrf.mxu0
      %v1568 = vadd.f32 0.0, %v1567
      %v1569 = vpop.f32.mrf.mxu0
      %1570 = vmatprep.mubr.f32.mxu0 0.0
      %1571 = vmatmul.mubr.f32.gmra.mxu0 %v1333
      %v1572 = vpop.f32.mrf.mxu0
      %v1573 = vadd.f32 0.0, %v1572
      %v1574 = vpop.f32.mrf.mxu0
      %1575 = vmatprep.mubr.f32.mxu0 0.0
      %1576 = vmatmul.mubr.f32.gmra.mxu0 %v1336
      %v1577 = vpop.f32.mrf.mxu0
      %v1578 = vadd.f32 0.0, %v1577
      %v1579 = vpop.f32.mrf.mxu0
      %1580 = vmatprep.mubr.f32.mxu0 0.0
      %1581 = vmatmul.mubr.f32.gmra.mxu0 %v1339
      %v1582 = vpop.f32.mrf.mxu0
      %v1583 = vadd.f32 0.0, %v1582
      %v1584 = vpop.f32.mrf.mxu0
      %1585 = vmatprep.mubr.f32.mxu0 0.0
      %1586 = vmatmul.mubr.f32.gmra.mxu0 %v1342
      %v1587 = vpop.f32.mrf.mxu0
      %v1588 = vadd.f32 0.0, %v1587
      %v1589 = vpop.f32.mrf.mxu0
      %1590 = vmatprep.mubr.f32.mxu0 0.0
      %1591 = vmatmul.mubr.f32.gmra.mxu0 %v1345
      %v1592 = vpop.f32.mrf.mxu0
      %v1593 = vadd.f32 0.0, %v1592
      %v1594 = vpop.f32.mrf.mxu0
      %1595 = vmatprep.mubr.f32.mxu0 0.0
      %1596 = vmatmul.mubr.f32.gmra.mxu0 %v1348
      %v1597 = vpop.f32.mrf.mxu0
      %v1598 = vadd.f32 0.0, %v1597
      %v1599 = vpop.f32.mrf.mxu0
      %1600 = vmatprep.mubr.f32.mxu0 0.0
      %1601 = vmatmul.mubr.f32.gmra.mxu0 %v1351
      %v1602 = vpop.f32.mrf.mxu0
      %v1603 = vadd.f32 0.0, %v1602
      %v1604 = vpop.f32.mrf.mxu0
      %1605 = vmatprep.mubr.f32.mxu0 0.0
      %1606 = vmatmul.mubr.f32.gmra.mxu0 %v1354
      %v1607 = vpop.f32.mrf.mxu0
      %v1608 = vadd.f32 0.0, %v1607
      %v1609 = vpop.f32.mrf.mxu0
      %1610 = vmatprep.mubr.f32.mxu0 0.0
      %1611 = vmatmul.mubr.f32.gmra.mxu0 %v1357
      %v1612 = vpop.f32.mrf.mxu0
      %v1613 = vadd.f32 0.0, %v1612
      %v1614 = vpop.f32.mrf.mxu0
      %1615 = vmatprep.mubr.f32.mxu0 0.0
      %1616 = vmatmul.mubr.f32.gmra.mxu0 %v1360
      %v1617 = vpop.f32.mrf.mxu0
      %v1618 = vadd.f32 0.0, %v1617
      %v1619 = vpop.f32.mrf.mxu0
      %1620 = vmatprep.mubr.f32.mxu0 0.0
      %1621 = vmatmul.mubr.f32.gmra.mxu0 %v1363
      %v1622 = vpop.f32.mrf.mxu0
      %v1623 = vadd.f32 0.0, %v1622
      %v1624 = vpop.f32.mrf.mxu0
      %1625 = vmatprep.mubr.f32.mxu0 0.0
      %1626 = vmatmul.mubr.f32.gmra.mxu0 %v1366
      %v1627 = vpop.f32.mrf.mxu0
      %v1628 = vadd.f32 0.0, %v1627
      %v1629 = vpop.f32.mrf.mxu0
      %1630 = vmatprep.mubr.f32.mxu0 0.0
      %1631 = vmatmul.mubr.f32.gmra.mxu0 %v1369
      %v1632 = vpop.f32.mrf.mxu0
      %v1633 = vadd.f32 0.0, %v1632
      %v1634 = vpop.f32.mrf.mxu0
      %1635 = vmatprep.mubr.f32.mxu0 0.0
      %1636 = vmatmul.mubr.f32.gmra.mxu0 %v1372
      %v1637 = vpop.f32.mrf.mxu0
      %v1638 = vadd.f32 0.0, %v1637
      %v1639 = vpop.f32.mrf.mxu0
      %1640 = vmatprep.mubr.f32.mxu0 0.0
      %1641 = vmatmul.mubr.f32.gmra.mxu0 %v1375
      %v1642 = vpop.f32.mrf.mxu0
      %v1643 = vadd.f32 0.0, %v1642
      %v1644 = vpop.f32.mrf.mxu0
      %1645 = vmatprep.mubr.f32.mxu0 0.0
      %1646 = vmatmul.mubr.f32.gmra.mxu0 %v1378
      %v1647 = vpop.f32.mrf.mxu0
      %v1648 = vadd.f32 0.0, %v1647
      %v1649 = vpop.f32.mrf.mxu0
      %1650 = vmatprep.mubr.f32.mxu0 0.0
      %1651 = vmatmul.mubr.f32.gmra.mxu0 %v1381
      %v1652 = vpop.f32.mrf.mxu0
      %v1653 = vadd.f32 0.0, %v1652
      %v1654 = vpop.f32.mrf.mxu0
      %1655 = vdwg.mxu0
      %v1656 = vadd.f32 %v1014, %v1453
      %v1657 = vadd.f32 %v1019, %v1458
      %v1658 = vadd.f32 %v1024, %v1463
      %v1659 = vadd.f32 %v1029, %v1468
      %v1660 = vadd.f32 %v1034, %v1473
      %v1661 = vadd.f32 %v1039, %v1478
      %v1662 = vadd.f32 %v1044, %v1483
      %v1663 = vadd.f32 %v1049, %v1488
      %v1664 = vadd.f32 %v1054, %v1493
      %v1665 = vadd.f32 %v1059, %v1498
      %v1666 = vadd.f32 %v1064, %v1503
      %v1667 = vadd.f32 %v1069, %v1508
      %v1668 = vadd.f32 %v1074, %v1513
      %v1669 = vadd.f32 %v1079, %v1518
      %v1670 = vadd.f32 %v1084, %v1523
      %v1671 = vadd.f32 %v1089, %v1528
      %v1672 = vadd.f32 %v1094, %v1533
      %v1673 = vadd.f32 %v1099, %v1538
      %v1674 = vadd.f32 %v1104, %v1543
      %v1675 = vadd.f32 %v1109, %v1548
      %v1676 = vadd.f32 %v1114, %v1553
      %v1677 = vadd.f32 %v1119, %v1558
      %v1678 = vadd.f32 %v1124, %v1563
      %v1679 = vadd.f32 %v1129, %v1568
      %v1680 = vadd.f32 %v1134, %v1573
      %v1681 = vadd.f32 %v1139, %v1578
      %v1682 = vadd.f32 %v1144, %v1583
      %v1683 = vadd.f32 %v1149, %v1588
      %v1684 = vadd.f32 %v1154, %v1593
      %v1685 = vadd.f32 %v1159, %v1598
      %v1686 = vadd.f32 %v1164, %v1603
      %v1687 = vadd.f32 %v1169, %v1608
      %v1688 = vadd.f32 %v1174, %v1613
      %v1689 = vadd.f32 %v1179, %v1618
      %v1690 = vadd.f32 %v1184, %v1623
      %v1691 = vadd.f32 %v1189, %v1628
      %v1692 = vadd.f32 %v1194, %v1633
      %v1693 = vadd.f32 %v1199, %v1638
      %v1694 = vadd.f32 %v1204, %v1643
      %v1695 = vadd.f32 %v1209, %v1648
      %v1696 = vadd.f32 %v1214, %v1653
      %v1697 = vld [vmem:[%s326 + $0x9] sm:$0xff]
      %v1698 = vld [vmem:[%s326 + $0x11] sm:$0xff]
      %v1699 = vld [vmem:[%s326 + $0x19] sm:$0xff]
      %v1700 = vld [vmem:[%s326 + $0x21] sm:$0xff]
      %v1701 = vld [vmem:[%s326 + $0x29] sm:$0xff]
      %v1702 = vld [vmem:[%s326 + $0x31] sm:$0xff]
      %v1703 = vld [vmem:[%s326 + $0x39] sm:$0xff]
      %v1704 = vld [vmem:[%s326 + $0x41] sm:$0xff]
      %v1705 = vld [vmem:[%s326 + $0x49] sm:$0xff]
      %v1706 = vld [vmem:[%s326 + $0x51] sm:$0xff]
      %v1707 = vld [vmem:[%s326 + $0x59] sm:$0xff]
      %v1708 = vld [vmem:[%s326 + $0x61] sm:$0xff]
      %v1709 = vld [vmem:[%s326 + $0x69] sm:$0xff]
      %v1710 = vld [vmem:[%s326 + $0x71] sm:$0xff]
      %v1711 = vld [vmem:[%s326 + $0x79] sm:$0xff]
      %v1712 = vld [vmem:[%s326 + $0x81] sm:$0xff]
      %v1713 = vld [vmem:[%s326 + $0x89] sm:$0xff]
      %v1714 = vld [vmem:[%s326 + $0x91] sm:$0xff]
      %v1715 = vld [vmem:[%s326 + $0x99] sm:$0xff]
      %v1716 = vld [vmem:[%s326 + $0xa1] sm:$0xff]
      %v1717 = vld [vmem:[%s326 + $0xa9] sm:$0xff]
      %v1718 = vld [vmem:[%s326 + $0xb1] sm:$0xff]
      %v1719 = vld [vmem:[%s326 + $0xb9] sm:$0xff]
      %v1720 = vld [vmem:[%s326 + $0xc1] sm:$0xff]
      %v1721 = vld [vmem:[%s326 + $0xc9] sm:$0xff]
      %v1722 = vld [vmem:[%s326 + $0xd1] sm:$0xff]
      %v1723 = vld [vmem:[%s326 + $0xd9] sm:$0xff]
      %v1724 = vld [vmem:[%s326 + $0xe1] sm:$0xff]
      %v1725 = vld [vmem:[%s326 + $0xe9] sm:$0xff]
      %v1726 = vld [vmem:[%s326 + $0xf1] sm:$0xff]
      %v1727 = vld [vmem:[%s326 + $0xf9] sm:$0xff]
      %v1728 = vld [vmem:[%s326 + $0x101] sm:$0xff]
      %v1729 = vld [vmem:[%s326 + $0x109] sm:$0xff]
      %v1730 = vld [vmem:[%s326 + $0x111] sm:$0xff]
      %v1731 = vld [vmem:[%s326 + $0x119] sm:$0xff]
      %v1732 = vld [vmem:[%s326 + $0x121] sm:$0xff]
      %v1733 = vld [vmem:[%s326 + $0x129] sm:$0xff]
      %v1734 = vld [vmem:[%s326 + $0x131] sm:$0xff]
      %v1735 = vld [vmem:[%s326 + $0x139] sm:$0xff]
      %v1736 = vld [vmem:[%s326 + $0x141] sm:$0xff]
      %v1737 = vld [vmem:[%s326 + $0x149] sm:$0xf]
      %s1738 = scalar_lea.vmem %s1, 12
      %v1739 = vld [vmem:[%s1738] sm:$0xf]
      %v1741 = vsel %vm423, %v1697, 0
      %v1744 = vsel %vm423, %v1698, 0
      %v1747 = vsel %vm423, %v1699, 0
      %v1750 = vsel %vm423, %v1700, 0
      %v1753 = vsel %vm423, %v1701, 0
      %v1756 = vsel %vm423, %v1702, 0
      %v1759 = vsel %vm423, %v1703, 0
      %v1762 = vsel %vm423, %v1704, 0
      %v1765 = vsel %vm423, %v1705, 0
      %v1768 = vsel %vm423, %v1706, 0
      %v1771 = vsel %vm423, %v1707, 0
      %v1774 = vsel %vm423, %v1708, 0
      %v1777 = vsel %vm423, %v1709, 0
      %v1780 = vsel %vm423, %v1710, 0
      %v1783 = vsel %vm423, %v1711, 0
      %v1786 = vsel %vm423, %v1712, 0
      %v1789 = vsel %vm423, %v1713, 0
      %v1792 = vsel %vm423, %v1714, 0
      %v1795 = vsel %vm423, %v1715, 0
      %v1798 = vsel %vm423, %v1716, 0
      %v1801 = vsel %vm423, %v1717, 0
      %v1804 = vsel %vm423, %v1718, 0
      %v1807 = vsel %vm423, %v1719, 0
      %v1810 = vsel %vm423, %v1720, 0
      %v1813 = vsel %vm423, %v1721, 0
      %v1816 = vsel %vm423, %v1722, 0
      %v1819 = vsel %vm423, %v1723, 0
      %v1822 = vsel %vm423, %v1724, 0
      %v1825 = vsel %vm423, %v1725, 0
      %v1828 = vsel %vm423, %v1726, 0
      %v1831 = vsel %vm423, %v1727, 0
      %v1834 = vsel %vm423, %v1728, 0
      %v1837 = vsel %vm423, %v1729, 0
      %v1840 = vsel %vm423, %v1730, 0
      %v1843 = vsel %vm423, %v1731, 0
      %v1846 = vsel %vm423, %v1732, 0
      %v1849 = vsel %vm423, %v1733, 0
      %v1852 = vsel %vm423, %v1734, 0
      %v1855 = vsel %vm423, %v1735, 0
      %v1858 = vsel %vm423, %v1736, 0
      %v1861 = vsel %vm423, %v1737, 0
      %v1864 = vsel %vm547, %v1739, 0
      %1866 = vmatprep.subr.mxu0 0.0
      %1867 = vmatpush1.msra.mxu0 0.0
      %1868 = vmatprep.subr.mxu0 0.0
      %1869 = vmatpush1.msra.mxu0 0.0
      %1870 = vmatprep.subr.mxu0 0.0
      %1871 = vmatpush1.msra.mxu0 0.0
      %1872 = vmatprep.subr.mxu0 0.0
      %1873 = vmatpush1.msra.mxu0 0.0
      %1874 = vmatprep.subr.mxu0 0.0
      %1875 = vmatpush1.msra.mxu0 0.0
      %1876 = vmatprep.subr.mxu0 0.0
      %1877 = vmatpush1.msra.mxu0 0.0
      %1878 = vmatprep.subr.mxu0 0.0
      %1879 = vmatpush1.msra.mxu0 0.0
      %1880 = vmatprep.subr.mxu0 0.0
      %1881 = vmatpush1.msra.mxu0 0.0
      %1882 = vmatprep.subr.mxu0 0.0
      %1883 = vmatpush1.msra.mxu0 0.0
      %1884 = vmatprep.subr.mxu0 0.0
      %1885 = vmatpush1.msra.mxu0 0.0
      %1886 = vmatprep.subr.mxu0 0.0
      %1887 = vmatpush1.msra.mxu0 0.0
      %1888 = vmatprep.subr.mxu0 0.0
      %1889 = vmatpush1.msra.mxu0 0.0
      %1890 = vmatprep.subr.mxu0 0.0
      %1891 = vmatpush1.msra.mxu0 0.0
      %1892 = vmatprep.subr.mxu0 0.0
      %1893 = vmatpush1.msra.mxu0 0.0
      %1894 = vmatprep.subr.mxu0 0.0
      %1895 = vmatpush1.msra.mxu0 0.0
      %1896 = vmatprep.subr.mxu0 0.0
      %1897 = vmatpush1.msra.mxu0 %v1864
      %1898 = vmatprep.subr.mxu0 0.0
      %1899 = vmatpush2.msra.mxu0 0.0
      %1900 = vmatprep.subr.mxu0 0.0
      %1901 = vmatpush2.msra.mxu0 0.0
      %1902 = vmatprep.subr.mxu0 0.0
      %1903 = vmatpush2.msra.mxu0 0.0
      %1904 = vmatprep.subr.mxu0 0.0
      %1905 = vmatpush2.msra.mxu0 0.0
      %1906 = vmatprep.subr.mxu0 0.0
      %1907 = vmatpush2.msra.mxu0 0.0
      %1908 = vmatprep.subr.mxu0 0.0
      %1909 = vmatpush2.msra.mxu0 0.0
      %1910 = vmatprep.subr.mxu0 0.0
      %1911 = vmatpush2.msra.mxu0 0.0
      %1912 = vmatprep.subr.mxu0 0.0
      %1913 = vmatpush2.msra.mxu0 0.0
      %1914 = vmatprep.subr.mxu0 0.0
      %1915 = vmatpush2.msra.mxu0 0.0
      %1916 = vmatprep.subr.mxu0 0.0
      %1917 = vmatpush2.msra.mxu0 0.0
      %1918 = vmatprep.subr.mxu0 0.0
      %1919 = vmatpush2.msra.mxu0 0.0
      %1920 = vmatprep.subr.mxu0 0.0
      %1921 = vmatpush2.msra.mxu0 0.0
      %1922 = vmatprep.subr.mxu0 0.0
      %1923 = vmatpush2.msra.mxu0 0.0
      %1924 = vmatprep.subr.mxu0 0.0
      %1925 = vmatpush2.msra.mxu0 0.0
      %1926 = vmatprep.subr.mxu0 0.0
      %1927 = vmatpush2.msra.mxu0 0.0
      %1928 = vmatprep.subr.mxu0 0.0
      %1929 = vmatpush2.msra.mxu0 0.0
      %1930 = vmatprep.mubr.f32.mxu0 0.0
      %1931 = vmatmul.mubr.f32.gmra.mxu0 %v1741
      %v1932 = vpop.f32.mrf.mxu0
      %v1933 = vadd.f32 0.0, %v1932
      %v1934 = vpop.f32.mrf.mxu0
      %1935 = vmatprep.mubr.f32.mxu0 0.0
      %1936 = vmatmul.mubr.f32.gmra.mxu0 %v1744
      %v1937 = vpop.f32.mrf.mxu0
      %v1938 = vadd.f32 0.0, %v1937
      %v1939 = vpop.f32.mrf.mxu0
      %1940 = vmatprep.mubr.f32.mxu0 0.0
      %1941 = vmatmul.mubr.f32.gmra.mxu0 %v1747
      %v1942 = vpop.f32.mrf.mxu0
      %v1943 = vadd.f32 0.0, %v1942
      %v1944 = vpop.f32.mrf.mxu0
      %1945 = vmatprep.mubr.f32.mxu0 0.0
      %1946 = vmatmul.mubr.f32.gmra.mxu0 %v1750
      %v1947 = vpop.f32.mrf.mxu0
      %v1948 = vadd.f32 0.0, %v1947
      %v1949 = vpop.f32.mrf.mxu0
      %1950 = vmatprep.mubr.f32.mxu0 0.0
      %1951 = vmatmul.mubr.f32.gmra.mxu0 %v1753
      %v1952 = vpop.f32.mrf.mxu0
      %v1953 = vadd.f32 0.0, %v1952
      %v1954 = vpop.f32.mrf.mxu0
      %1955 = vmatprep.mubr.f32.mxu0 0.0
      %1956 = vmatmul.mubr.f32.gmra.mxu0 %v1756
      %v1957 = vpop.f32.mrf.mxu0
      %v1958 = vadd.f32 0.0, %v1957
      %v1959 = vpop.f32.mrf.mxu0
      %1960 = vmatprep.mubr.f32.mxu0 0.0
      %1961 = vmatmul.mubr.f32.gmra.mxu0 %v1759
      %v1962 = vpop.f32.mrf.mxu0
      %v1963 = vadd.f32 0.0, %v1962
      %v1964 = vpop.f32.mrf.mxu0
      %1965 = vmatprep.mubr.f32.mxu0 0.0
      %1966 = vmatmul.mubr.f32.gmra.mxu0 %v1762
      %v1967 = vpop.f32.mrf.mxu0
      %v1968 = vadd.f32 0.0, %v1967
      %v1969 = vpop.f32.mrf.mxu0
      %1970 = vmatprep.mubr.f32.mxu0 0.0
      %1971 = vmatmul.mubr.f32.gmra.mxu0 %v1765
      %v1972 = vpop.f32.mrf.mxu0
      %v1973 = vadd.f32 0.0, %v1972
      %v1974 = vpop.f32.mrf.mxu0
      %1975 = vmatprep.mubr.f32.mxu0 0.0
      %1976 = vmatmul.mubr.f32.gmra.mxu0 %v1768
      %v1977 = vpop.f32.mrf.mxu0
      %v1978 = vadd.f32 0.0, %v1977
      %v1979 = vpop.f32.mrf.mxu0
      %1980 = vmatprep.mubr.f32.mxu0 0.0
      %1981 = vmatmul.mubr.f32.gmra.mxu0 %v1771
      %v1982 = vpop.f32.mrf.mxu0
      %v1983 = vadd.f32 0.0, %v1982
      %v1984 = vpop.f32.mrf.mxu0
      %1985 = vmatprep.mubr.f32.mxu0 0.0
      %1986 = vmatmul.mubr.f32.gmra.mxu0 %v1774
      %v1987 = vpop.f32.mrf.mxu0
      %v1988 = vadd.f32 0.0, %v1987
      %v1989 = vpop.f32.mrf.mxu0
      %1990 = vmatprep.mubr.f32.mxu0 0.0
      %1991 = vmatmul.mubr.f32.gmra.mxu0 %v1777
      %v1992 = vpop.f32.mrf.mxu0
      %v1993 = vadd.f32 0.0, %v1992
      %v1994 = vpop.f32.mrf.mxu0
      %1995 = vmatprep.mubr.f32.mxu0 0.0
      %1996 = vmatmul.mubr.f32.gmra.mxu0 %v1780
      %v1997 = vpop.f32.mrf.mxu0
      %v1998 = vadd.f32 0.0, %v1997
      %v1999 = vpop.f32.mrf.mxu0
      %2000 = vmatprep.mubr.f32.mxu0 0.0
      %2001 = vmatmul.mubr.f32.gmra.mxu0 %v1783
      %v2002 = vpop.f32.mrf.mxu0
      %v2003 = vadd.f32 0.0, %v2002
      %v2004 = vpop.f32.mrf.mxu0
      %2005 = vmatprep.mubr.f32.mxu0 0.0
      %2006 = vmatmul.mubr.f32.gmra.mxu0 %v1786
      %v2007 = vpop.f32.mrf.mxu0
      %v2008 = vadd.f32 0.0, %v2007
      %v2009 = vpop.f32.mrf.mxu0
      %2010 = vmatprep.mubr.f32.mxu0 0.0
      %2011 = vmatmul.mubr.f32.gmra.mxu0 %v1789
      %v2012 = vpop.f32.mrf.mxu0
      %v2013 = vadd.f32 0.0, %v2012
      %v2014 = vpop.f32.mrf.mxu0
      %2015 = vmatprep.mubr.f32.mxu0 0.0
      %2016 = vmatmul.mubr.f32.gmra.mxu0 %v1792
      %v2017 = vpop.f32.mrf.mxu0
      %v2018 = vadd.f32 0.0, %v2017
      %v2019 = vpop.f32.mrf.mxu0
      %2020 = vmatprep.mubr.f32.mxu0 0.0
      %2021 = vmatmul.mubr.f32.gmra.mxu0 %v1795
      %v2022 = vpop.f32.mrf.mxu0
      %v2023 = vadd.f32 0.0, %v2022
      %v2024 = vpop.f32.mrf.mxu0
      %2025 = vmatprep.mubr.f32.mxu0 0.0
      %2026 = vmatmul.mubr.f32.gmra.mxu0 %v1798
      %v2027 = vpop.f32.mrf.mxu0
      %v2028 = vadd.f32 0.0, %v2027
      %v2029 = vpop.f32.mrf.mxu0
      %2030 = vmatprep.mubr.f32.mxu0 0.0
      %2031 = vmatmul.mubr.f32.gmra.mxu0 %v1801
      %v2032 = vpop.f32.mrf.mxu0
      %v2033 = vadd.f32 0.0, %v2032
      %v2034 = vpop.f32.mrf.mxu0
      %2035 = vmatprep.mubr.f32.mxu0 0.0
      %2036 = vmatmul.mubr.f32.gmra.mxu0 %v1804
      %v2037 = vpop.f32.mrf.mxu0
      %v2038 = vadd.f32 0.0, %v2037
      %v2039 = vpop.f32.mrf.mxu0
      %2040 = vmatprep.mubr.f32.mxu0 0.0
      %2041 = vmatmul.mubr.f32.gmra.mxu0 %v1807
      %v2042 = vpop.f32.mrf.mxu0
      %v2043 = vadd.f32 0.0, %v2042
      %v2044 = vpop.f32.mrf.mxu0
      %2045 = vmatprep.mubr.f32.mxu0 0.0
      %2046 = vmatmul.mubr.f32.gmra.mxu0 %v1810
      %v2047 = vpop.f32.mrf.mxu0
      %v2048 = vadd.f32 0.0, %v2047
      %v2049 = vpop.f32.mrf.mxu0
      %2050 = vmatprep.mubr.f32.mxu0 0.0
      %2051 = vmatmul.mubr.f32.gmra.mxu0 %v1813
      %v2052 = vpop.f32.mrf.mxu0
      %v2053 = vadd.f32 0.0, %v2052
      %v2054 = vpop.f32.mrf.mxu0
      %2055 = vmatprep.mubr.f32.mxu0 0.0
      %2056 = vmatmul.mubr.f32.gmra.mxu0 %v1816
      %v2057 = vpop.f32.mrf.mxu0
      %v2058 = vadd.f32 0.0, %v2057
      %v2059 = vpop.f32.mrf.mxu0
      %2060 = vmatprep.mubr.f32.mxu0 0.0
      %2061 = vmatmul.mubr.f32.gmra.mxu0 %v1819
      %v2062 = vpop.f32.mrf.mxu0
      %v2063 = vadd.f32 0.0, %v2062
      %v2064 = vpop.f32.mrf.mxu0
      %2065 = vmatprep.mubr.f32.mxu0 0.0
      %2066 = vmatmul.mubr.f32.gmra.mxu0 %v1822
      %v2067 = vpop.f32.mrf.mxu0
      %v2068 = vadd.f32 0.0, %v2067
      %v2069 = vpop.f32.mrf.mxu0
      %2070 = vmatprep.mubr.f32.mxu0 0.0
      %2071 = vmatmul.mubr.f32.gmra.mxu0 %v1825
      %v2072 = vpop.f32.mrf.mxu0
      %v2073 = vadd.f32 0.0, %v2072
      %v2074 = vpop.f32.mrf.mxu0
      %2075 = vmatprep.mubr.f32.mxu0 0.0
      %2076 = vmatmul.mubr.f32.gmra.mxu0 %v1828
      %v2077 = vpop.f32.mrf.mxu0
      %v2078 = vadd.f32 0.0, %v2077
      %v2079 = vpop.f32.mrf.mxu0
      %2080 = vmatprep.mubr.f32.mxu0 0.0
      %2081 = vmatmul.mubr.f32.gmra.mxu0 %v1831
      %v2082 = vpop.f32.mrf.mxu0
      %v2083 = vadd.f32 0.0, %v2082
      %v2084 = vpop.f32.mrf.mxu0
      %2085 = vmatprep.mubr.f32.mxu0 0.0
      %2086 = vmatmul.mubr.f32.gmra.mxu0 %v1834
      %v2087 = vpop.f32.mrf.mxu0
      %v2088 = vadd.f32 0.0, %v2087
      %v2089 = vpop.f32.mrf.mxu0
      %2090 = vmatprep.mubr.f32.mxu0 0.0
      %2091 = vmatmul.mubr.f32.gmra.mxu0 %v1837
      %v2092 = vpop.f32.mrf.mxu0
      %v2093 = vadd.f32 0.0, %v2092
      %v2094 = vpop.f32.mrf.mxu0
      %2095 = vmatprep.mubr.f32.mxu0 0.0
      %2096 = vmatmul.mubr.f32.gmra.mxu0 %v1840
      %v2097 = vpop.f32.mrf.mxu0
      %v2098 = vadd.f32 0.0, %v2097
      %v2099 = vpop.f32.mrf.mxu0
      %2100 = vmatprep.mubr.f32.mxu0 0.0
      %2101 = vmatmul.mubr.f32.gmra.mxu0 %v1843
      %v2102 = vpop.f32.mrf.mxu0
      %v2103 = vadd.f32 0.0, %v2102
      %v2104 = vpop.f32.mrf.mxu0
      %2105 = vmatprep.mubr.f32.mxu0 0.0
      %2106 = vmatmul.mubr.f32.gmra.mxu0 %v1846
      %v2107 = vpop.f32.mrf.mxu0
      %v2108 = vadd.f32 0.0, %v2107
      %v2109 = vpop.f32.mrf.mxu0
      %2110 = vmatprep.mubr.f32.mxu0 0.0
      %2111 = vmatmul.mubr.f32.gmra.mxu0 %v1849
      %v2112 = vpop.f32.mrf.mxu0
      %v2113 = vadd.f32 0.0, %v2112
      %v2114 = vpop.f32.mrf.mxu0
      %2115 = vmatprep.mubr.f32.mxu0 0.0
      %2116 = vmatmul.mubr.f32.gmra.mxu0 %v1852
      %v2117 = vpop.f32.mrf.mxu0
      %v2118 = vadd.f32 0.0, %v2117
      %v2119 = vpop.f32.mrf.mxu0
      %2120 = vmatprep.mubr.f32.mxu0 0.0
      %2121 = vmatmul.mubr.f32.gmra.mxu0 %v1855
      %v2122 = vpop.f32.mrf.mxu0
      %v2123 = vadd.f32 0.0, %v2122
      %v2124 = vpop.f32.mrf.mxu0
      %2125 = vmatprep.mubr.f32.mxu0 0.0
      %2126 = vmatmul.mubr.f32.gmra.mxu0 %v1858
      %v2127 = vpop.f32.mrf.mxu0
      %v2128 = vadd.f32 0.0, %v2127
      %v2129 = vpop.f32.mrf.mxu0
      %2130 = vmatprep.mubr.f32.mxu0 0.0
      %2131 = vmatmul.mubr.f32.gmra.mxu0 %v1861
      %v2132 = vpop.f32.mrf.mxu0
      %v2133 = vadd.f32 0.0, %v2132
      %v2134 = vpop.f32.mrf.mxu0
      %2135 = vdwg.mxu0
      %v2136 = vadd.f32 %v1656, %v1933
      %v2137 = vadd.f32 %v1657, %v1938
      %v2138 = vadd.f32 %v1658, %v1943
      %v2139 = vadd.f32 %v1659, %v1948
      %v2140 = vadd.f32 %v1660, %v1953
      %v2141 = vadd.f32 %v1661, %v1958
      %v2142 = vadd.f32 %v1662, %v1963
      %v2143 = vadd.f32 %v1663, %v1968
      %v2144 = vadd.f32 %v1664, %v1973
      %v2145 = vadd.f32 %v1665, %v1978
      %v2146 = vadd.f32 %v1666, %v1983
      %v2147 = vadd.f32 %v1667, %v1988
      %v2148 = vadd.f32 %v1668, %v1993
      %v2149 = vadd.f32 %v1669, %v1998
      %v2150 = vadd.f32 %v1670, %v2003
      %v2151 = vadd.f32 %v1671, %v2008
      %v2152 = vadd.f32 %v1672, %v2013
      %v2153 = vadd.f32 %v1673, %v2018
      %v2154 = vadd.f32 %v1674, %v2023
      %v2155 = vadd.f32 %v1675, %v2028
      %v2156 = vadd.f32 %v1676, %v2033
      %v2157 = vadd.f32 %v1677, %v2038
      %v2158 = vadd.f32 %v1678, %v2043
      %v2159 = vadd.f32 %v1679, %v2048
      %v2160 = vadd.f32 %v1680, %v2053
      %v2161 = vadd.f32 %v1681, %v2058
      %v2162 = vadd.f32 %v1682, %v2063
      %v2163 = vadd.f32 %v1683, %v2068
      %v2164 = vadd.f32 %v1684, %v2073
      %v2165 = vadd.f32 %v1685, %v2078
      %v2166 = vadd.f32 %v1686, %v2083
      %v2167 = vadd.f32 %v1687, %v2088
      %v2168 = vadd.f32 %v1688, %v2093
      %v2169 = vadd.f32 %v1689, %v2098
      %v2170 = vadd.f32 %v1690, %v2103
      %v2171 = vadd.f32 %v1691, %v2108
      %v2172 = vadd.f32 %v1692, %v2113
      %v2173 = vadd.f32 %v1693, %v2118
      %v2174 = vadd.f32 %v1694, %v2123
      %v2175 = vadd.f32 %v1695, %v2128
      %v2176 = vadd.f32 %v1696, %v2133
      %v2177 = vld [vmem:[%s326 + $0xa] sm:$0xff]
      %v2178 = vld [vmem:[%s326 + $0x12] sm:$0xff]
      %v2179 = vld [vmem:[%s326 + $0x1a] sm:$0xff]
      %v2180 = vld [vmem:[%s326 + $0x22] sm:$0xff]
      %v2181 = vld [vmem:[%s326 + $0x2a] sm:$0xff]
      %v2182 = vld [vmem:[%s326 + $0x32] sm:$0xff]
      %v2183 = vld [vmem:[%s326 + $0x3a] sm:$0xff]
      %v2184 = vld [vmem:[%s326 + $0x42] sm:$0xff]
      %v2185 = vld [vmem:[%s326 + $0x4a] sm:$0xff]
      %v2186 = vld [vmem:[%s326 + $0x52] sm:$0xff]
      %v2187 = vld [vmem:[%s326 + $0x5a] sm:$0xff]
      %v2188 = vld [vmem:[%s326 + $0x62] sm:$0xff]
      %v2189 = vld [vmem:[%s326 + $0x6a] sm:$0xff]
      %v2190 = vld [vmem:[%s326 + $0x72] sm:$0xff]
      %v2191 = vld [vmem:[%s326 + $0x7a] sm:$0xff]
      %v2192 = vld [vmem:[%s326 + $0x82] sm:$0xff]
      %v2193 = vld [vmem:[%s326 + $0x8a] sm:$0xff]
      %v2194 = vld [vmem:[%s326 + $0x92] sm:$0xff]
      %v2195 = vld [vmem:[%s326 + $0x9a] sm:$0xff]
      %v2196 = vld [vmem:[%s326 + $0xa2] sm:$0xff]
      %v2197 = vld [vmem:[%s326 + $0xaa] sm:$0xff]
      %v2198 = vld [vmem:[%s326 + $0xb2] sm:$0xff]
      %v2199 = vld [vmem:[%s326 + $0xba] sm:$0xff]
      %v2200 = vld [vmem:[%s326 + $0xc2] sm:$0xff]
      %v2201 = vld [vmem:[%s326 + $0xca] sm:$0xff]
      %v2202 = vld [vmem:[%s326 + $0xd2] sm:$0xff]
      %v2203 = vld [vmem:[%s326 + $0xda] sm:$0xff]
      %v2204 = vld [vmem:[%s326 + $0xe2] sm:$0xff]
      %v2205 = vld [vmem:[%s326 + $0xea] sm:$0xff]
      %v2206 = vld [vmem:[%s326 + $0xf2] sm:$0xff]
      %v2207 = vld [vmem:[%s326 + $0xfa] sm:$0xff]
      %v2208 = vld [vmem:[%s326 + $0x102] sm:$0xff]
      %v2209 = vld [vmem:[%s326 + $0x10a] sm:$0xff]
      %v2210 = vld [vmem:[%s326 + $0x112] sm:$0xff]
      %v2211 = vld [vmem:[%s326 + $0x11a] sm:$0xff]
      %v2212 = vld [vmem:[%s326 + $0x122] sm:$0xff]
      %v2213 = vld [vmem:[%s326 + $0x12a] sm:$0xff]
      %v2214 = vld [vmem:[%s326 + $0x132] sm:$0xff]
      %v2215 = vld [vmem:[%s326 + $0x13a] sm:$0xff]
      %v2216 = vld [vmem:[%s326 + $0x142] sm:$0xff]
      %v2217 = vld [vmem:[%s326 + $0x14a] sm:$0xf]
      %s2218 = scalar_lea.vmem %s1, 16
      %v2219 = vld [vmem:[%s2218] sm:$0xf]
      %v2221 = vsel %vm423, %v2177, 0
      %v2224 = vsel %vm423, %v2178, 0
      %v2227 = vsel %vm423, %v2179, 0
      %v2230 = vsel %vm423, %v2180, 0
      %v2233 = vsel %vm423, %v2181, 0
      %v2236 = vsel %vm423, %v2182, 0
      %v2239 = vsel %vm423, %v2183, 0
      %v2242 = vsel %vm423, %v2184, 0
      %v2245 = vsel %vm423, %v2185, 0
      %v2248 = vsel %vm423, %v2186, 0
      %v2251 = vsel %vm423, %v2187, 0
      %v2254 = vsel %vm423, %v2188, 0
      %v2257 = vsel %vm423, %v2189, 0
      %v2260 = vsel %vm423, %v2190, 0
      %v2263 = vsel %vm423, %v2191, 0
      %v2266 = vsel %vm423, %v2192, 0
      %v2269 = vsel %vm423, %v2193, 0
      %v2272 = vsel %vm423, %v2194, 0
      %v2275 = vsel %vm423, %v2195, 0
      %v2278 = vsel %vm423, %v2196, 0
      %v2281 = vsel %vm423, %v2197, 0
      %v2284 = vsel %vm423, %v2198, 0
      %v2287 = vsel %vm423, %v2199, 0
      %v2290 = vsel %vm423, %v2200, 0
      %v2293 = vsel %vm423, %v2201, 0
      %v2296 = vsel %vm423, %v2202, 0
      %v2299 = vsel %vm423, %v2203, 0
      %v2302 = vsel %vm423, %v2204, 0
      %v2305 = vsel %vm423, %v2205, 0
      %v2308 = vsel %vm423, %v2206, 0
      %v2311 = vsel %vm423, %v2207, 0
      %v2314 = vsel %vm423, %v2208, 0
      %v2317 = vsel %vm423, %v2209, 0
      %v2320 = vsel %vm423, %v2210, 0
      %v2323 = vsel %vm423, %v2211, 0
      %v2326 = vsel %vm423, %v2212, 0
      %v2329 = vsel %vm423, %v2213, 0
      %v2332 = vsel %vm423, %v2214, 0
      %v2335 = vsel %vm423, %v2215, 0
      %v2338 = vsel %vm423, %v2216, 0
      %v2341 = vsel %vm423, %v2217, 0
      %v2344 = vsel %vm547, %v2219, 0
      %2346 = vmatprep.subr.mxu0 0.0
      %2347 = vmatpush1.msra.mxu0 0.0
      %2348 = vmatprep.subr.mxu0 0.0
      %2349 = vmatpush1.msra.mxu0 0.0
      %2350 = vmatprep.subr.mxu0 0.0
      %2351 = vmatpush1.msra.mxu0 0.0
      %2352 = vmatprep.subr.mxu0 0.0
      %2353 = vmatpush1.msra.mxu0 0.0
      %2354 = vmatprep.subr.mxu0 0.0
      %2355 = vmatpush1.msra.mxu0 0.0
      %2356 = vmatprep.subr.mxu0 0.0
      %2357 = vmatpush1.msra.mxu0 0.0
      %2358 = vmatprep.subr.mxu0 0.0
      %2359 = vmatpush1.msra.mxu0 0.0
      %2360 = vmatprep.subr.mxu0 0.0
      %2361 = vmatpush1.msra.mxu0 0.0
      %2362 = vmatprep.subr.mxu0 0.0
      %2363 = vmatpush1.msra.mxu0 0.0
      %2364 = vmatprep.subr.mxu0 0.0
      %2365 = vmatpush1.msra.mxu0 0.0
      %2366 = vmatprep.subr.mxu0 0.0
      %2367 = vmatpush1.msra.mxu0 0.0
      %2368 = vmatprep.subr.mxu0 0.0
      %2369 = vmatpush1.msra.mxu0 0.0
      %2370 = vmatprep.subr.mxu0 0.0
      %2371 = vmatpush1.msra.mxu0 0.0
      %2372 = vmatprep.subr.mxu0 0.0
      %2373 = vmatpush1.msra.mxu0 0.0
      %2374 = vmatprep.subr.mxu0 0.0
      %2375 = vmatpush1.msra.mxu0 0.0
      %2376 = vmatprep.subr.mxu0 0.0
      %2377 = vmatpush1.msra.mxu0 %v2344
      %2378 = vmatprep.subr.mxu0 0.0
      %2379 = vmatpush2.msra.mxu0 0.0
      %2380 = vmatprep.subr.mxu0 0.0
      %2381 = vmatpush2.msra.mxu0 0.0
      %2382 = vmatprep.subr.mxu0 0.0
      %2383 = vmatpush2.msra.mxu0 0.0
      %2384 = vmatprep.subr.mxu0 0.0
      %2385 = vmatpush2.msra.mxu0 0.0
      %2386 = vmatprep.subr.mxu0 0.0
      %2387 = vmatpush2.msra.mxu0 0.0
      %2388 = vmatprep.subr.mxu0 0.0
      %2389 = vmatpush2.msra.mxu0 0.0
      %2390 = vmatprep.subr.mxu0 0.0
      %2391 = vmatpush2.msra.mxu0 0.0
      %2392 = vmatprep.subr.mxu0 0.0
      %2393 = vmatpush2.msra.mxu0 0.0
      %2394 = vmatprep.subr.mxu0 0.0
      %2395 = vmatpush2.msra.mxu0 0.0
      %2396 = vmatprep.subr.mxu0 0.0
      %2397 = vmatpush2.msra.mxu0 0.0
      %2398 = vmatprep.subr.mxu0 0.0
      %2399 = vmatpush2.msra.mxu0 0.0
      %2400 = vmatprep.subr.mxu0 0.0
      %2401 = vmatpush2.msra.mxu0 0.0
      %2402 = vmatprep.subr.mxu0 0.0
      %2403 = vmatpush2.msra.mxu0 0.0
      %2404 = vmatprep.subr.mxu0 0.0
      %2405 = vmatpush2.msra.mxu0 0.0
      %2406 = vmatprep.subr.mxu0 0.0
      %2407 = vmatpush2.msra.mxu0 0.0
      %2408 = vmatprep.subr.mxu0 0.0
      %2409 = vmatpush2.msra.mxu0 0.0
      %2410 = vmatprep.mubr.f32.mxu0 0.0
      %2411 = vmatmul.mubr.f32.gmra.mxu0 %v2221
      %v2412 = vpop.f32.mrf.mxu0
      %v2413 = vadd.f32 0.0, %v2412
      %v2414 = vpop.f32.mrf.mxu0
      %2415 = vmatprep.mubr.f32.mxu0 0.0
      %2416 = vmatmul.mubr.f32.gmra.mxu0 %v2224
      %v2417 = vpop.f32.mrf.mxu0
      %v2418 = vadd.f32 0.0, %v2417
      %v2419 = vpop.f32.mrf.mxu0
      %2420 = vmatprep.mubr.f32.mxu0 0.0
      %2421 = vmatmul.mubr.f32.gmra.mxu0 %v2227
      %v2422 = vpop.f32.mrf.mxu0
      %v2423 = vadd.f32 0.0, %v2422
      %v2424 = vpop.f32.mrf.mxu0
      %2425 = vmatprep.mubr.f32.mxu0 0.0
      %2426 = vmatmul.mubr.f32.gmra.mxu0 %v2230
      %v2427 = vpop.f32.mrf.mxu0
      %v2428 = vadd.f32 0.0, %v2427
      %v2429 = vpop.f32.mrf.mxu0
      %2430 = vmatprep.mubr.f32.mxu0 0.0
      %2431 = vmatmul.mubr.f32.gmra.mxu0 %v2233
      %v2432 = vpop.f32.mrf.mxu0
      %v2433 = vadd.f32 0.0, %v2432
      %v2434 = vpop.f32.mrf.mxu0
      %2435 = vmatprep.mubr.f32.mxu0 0.0
      %2436 = vmatmul.mubr.f32.gmra.mxu0 %v2236
      %v2437 = vpop.f32.mrf.mxu0
      %v2438 = vadd.f32 0.0, %v2437
      %v2439 = vpop.f32.mrf.mxu0
      %2440 = vmatprep.mubr.f32.mxu0 0.0
      %2441 = vmatmul.mubr.f32.gmra.mxu0 %v2239
      %v2442 = vpop.f32.mrf.mxu0
      %v2443 = vadd.f32 0.0, %v2442
      %v2444 = vpop.f32.mrf.mxu0
      %2445 = vmatprep.mubr.f32.mxu0 0.0
      %2446 = vmatmul.mubr.f32.gmra.mxu0 %v2242
      %v2447 = vpop.f32.mrf.mxu0
      %v2448 = vadd.f32 0.0, %v2447
      %v2449 = vpop.f32.mrf.mxu0
      %2450 = vmatprep.mubr.f32.mxu0 0.0
      %2451 = vmatmul.mubr.f32.gmra.mxu0 %v2245
      %v2452 = vpop.f32.mrf.mxu0
      %v2453 = vadd.f32 0.0, %v2452
      %v2454 = vpop.f32.mrf.mxu0
      %2455 = vmatprep.mubr.f32.mxu0 0.0
      %2456 = vmatmul.mubr.f32.gmra.mxu0 %v2248
      %v2457 = vpop.f32.mrf.mxu0
      %v2458 = vadd.f32 0.0, %v2457
      %v2459 = vpop.f32.mrf.mxu0
      %2460 = vmatprep.mubr.f32.mxu0 0.0
      %2461 = vmatmul.mubr.f32.gmra.mxu0 %v2251
      %v2462 = vpop.f32.mrf.mxu0
      %v2463 = vadd.f32 0.0, %v2462
      %v2464 = vpop.f32.mrf.mxu0
      %2465 = vmatprep.mubr.f32.mxu0 0.0
      %2466 = vmatmul.mubr.f32.gmra.mxu0 %v2254
      %v2467 = vpop.f32.mrf.mxu0
      %v2468 = vadd.f32 0.0, %v2467
      %v2469 = vpop.f32.mrf.mxu0
      %2470 = vmatprep.mubr.f32.mxu0 0.0
      %2471 = vmatmul.mubr.f32.gmra.mxu0 %v2257
      %v2472 = vpop.f32.mrf.mxu0
      %v2473 = vadd.f32 0.0, %v2472
      %v2474 = vpop.f32.mrf.mxu0
      %2475 = vmatprep.mubr.f32.mxu0 0.0
      %2476 = vmatmul.mubr.f32.gmra.mxu0 %v2260
      %v2477 = vpop.f32.mrf.mxu0
      %v2478 = vadd.f32 0.0, %v2477
      %v2479 = vpop.f32.mrf.mxu0
      %2480 = vmatprep.mubr.f32.mxu0 0.0
      %2481 = vmatmul.mubr.f32.gmra.mxu0 %v2263
      %v2482 = vpop.f32.mrf.mxu0
      %v2483 = vadd.f32 0.0, %v2482
      %v2484 = vpop.f32.mrf.mxu0
      %2485 = vmatprep.mubr.f32.mxu0 0.0
      %2486 = vmatmul.mubr.f32.gmra.mxu0 %v2266
      %v2487 = vpop.f32.mrf.mxu0
      %v2488 = vadd.f32 0.0, %v2487
      %v2489 = vpop.f32.mrf.mxu0
      %2490 = vmatprep.mubr.f32.mxu0 0.0
      %2491 = vmatmul.mubr.f32.gmra.mxu0 %v2269
      %v2492 = vpop.f32.mrf.mxu0
      %v2493 = vadd.f32 0.0, %v2492
      %v2494 = vpop.f32.mrf.mxu0
      %2495 = vmatprep.mubr.f32.mxu0 0.0
      %2496 = vmatmul.mubr.f32.gmra.mxu0 %v2272
      %v2497 = vpop.f32.mrf.mxu0
      %v2498 = vadd.f32 0.0, %v2497
      %v2499 = vpop.f32.mrf.mxu0
      %2500 = vmatprep.mubr.f32.mxu0 0.0
      %2501 = vmatmul.mubr.f32.gmra.mxu0 %v2275
      %v2502 = vpop.f32.mrf.mxu0
      %v2503 = vadd.f32 0.0, %v2502
      %v2504 = vpop.f32.mrf.mxu0
      %2505 = vmatprep.mubr.f32.mxu0 0.0
      %2506 = vmatmul.mubr.f32.gmra.mxu0 %v2278
      %v2507 = vpop.f32.mrf.mxu0
      %v2508 = vadd.f32 0.0, %v2507
      %v2509 = vpop.f32.mrf.mxu0
      %2510 = vmatprep.mubr.f32.mxu0 0.0
      %2511 = vmatmul.mubr.f32.gmra.mxu0 %v2281
      %v2512 = vpop.f32.mrf.mxu0
      %v2513 = vadd.f32 0.0, %v2512
      %v2514 = vpop.f32.mrf.mxu0
      %2515 = vmatprep.mubr.f32.mxu0 0.0
      %2516 = vmatmul.mubr.f32.gmra.mxu0 %v2284
      %v2517 = vpop.f32.mrf.mxu0
      %v2518 = vadd.f32 0.0, %v2517
      %v2519 = vpop.f32.mrf.mxu0
      %2520 = vmatprep.mubr.f32.mxu0 0.0
      %2521 = vmatmul.mubr.f32.gmra.mxu0 %v2287
      %v2522 = vpop.f32.mrf.mxu0
      %v2523 = vadd.f32 0.0, %v2522
      %v2524 = vpop.f32.mrf.mxu0
      %2525 = vmatprep.mubr.f32.mxu0 0.0
      %2526 = vmatmul.mubr.f32.gmra.mxu0 %v2290
      %v2527 = vpop.f32.mrf.mxu0
      %v2528 = vadd.f32 0.0, %v2527
      %v2529 = vpop.f32.mrf.mxu0
      %2530 = vmatprep.mubr.f32.mxu0 0.0
      %2531 = vmatmul.mubr.f32.gmra.mxu0 %v2293
      %v2532 = vpop.f32.mrf.mxu0
      %v2533 = vadd.f32 0.0, %v2532
      %v2534 = vpop.f32.mrf.mxu0
      %2535 = vmatprep.mubr.f32.mxu0 0.0
      %2536 = vmatmul.mubr.f32.gmra.mxu0 %v2296
      %v2537 = vpop.f32.mrf.mxu0
      %v2538 = vadd.f32 0.0, %v2537
      %v2539 = vpop.f32.mrf.mxu0
      %2540 = vmatprep.mubr.f32.mxu0 0.0
      %2541 = vmatmul.mubr.f32.gmra.mxu0 %v2299
      %v2542 = vpop.f32.mrf.mxu0
      %v2543 = vadd.f32 0.0, %v2542
      %v2544 = vpop.f32.mrf.mxu0
      %2545 = vmatprep.mubr.f32.mxu0 0.0
      %2546 = vmatmul.mubr.f32.gmra.mxu0 %v2302
      %v2547 = vpop.f32.mrf.mxu0
      %v2548 = vadd.f32 0.0, %v2547
      %v2549 = vpop.f32.mrf.mxu0
      %2550 = vmatprep.mubr.f32.mxu0 0.0
      %2551 = vmatmul.mubr.f32.gmra.mxu0 %v2305
      %v2552 = vpop.f32.mrf.mxu0
      %v2553 = vadd.f32 0.0, %v2552
      %v2554 = vpop.f32.mrf.mxu0
      %2555 = vmatprep.mubr.f32.mxu0 0.0
      %2556 = vmatmul.mubr.f32.gmra.mxu0 %v2308
      %v2557 = vpop.f32.mrf.mxu0
      %v2558 = vadd.f32 0.0, %v2557
      %v2559 = vpop.f32.mrf.mxu0
      %2560 = vmatprep.mubr.f32.mxu0 0.0
      %2561 = vmatmul.mubr.f32.gmra.mxu0 %v2311
      %v2562 = vpop.f32.mrf.mxu0
      %v2563 = vadd.f32 0.0, %v2562
      %v2564 = vpop.f32.mrf.mxu0
      %2565 = vmatprep.mubr.f32.mxu0 0.0
      %2566 = vmatmul.mubr.f32.gmra.mxu0 %v2314
      %v2567 = vpop.f32.mrf.mxu0
      %v2568 = vadd.f32 0.0, %v2567
      %v2569 = vpop.f32.mrf.mxu0
      %2570 = vmatprep.mubr.f32.mxu0 0.0
      %2571 = vmatmul.mubr.f32.gmra.mxu0 %v2317
      %v2572 = vpop.f32.mrf.mxu0
      %v2573 = vadd.f32 0.0, %v2572
      %v2574 = vpop.f32.mrf.mxu0
      %2575 = vmatprep.mubr.f32.mxu0 0.0
      %2576 = vmatmul.mubr.f32.gmra.mxu0 %v2320
      %v2577 = vpop.f32.mrf.mxu0
      %v2578 = vadd.f32 0.0, %v2577
      %v2579 = vpop.f32.mrf.mxu0
      %2580 = vmatprep.mubr.f32.mxu0 0.0
      %2581 = vmatmul.mubr.f32.gmra.mxu0 %v2323
      %v2582 = vpop.f32.mrf.mxu0
      %v2583 = vadd.f32 0.0, %v2582
      %v2584 = vpop.f32.mrf.mxu0
      %2585 = vmatprep.mubr.f32.mxu0 0.0
      %2586 = vmatmul.mubr.f32.gmra.mxu0 %v2326
      %v2587 = vpop.f32.mrf.mxu0
      %v2588 = vadd.f32 0.0, %v2587
      %v2589 = vpop.f32.mrf.mxu0
      %2590 = vmatprep.mubr.f32.mxu0 0.0
      %2591 = vmatmul.mubr.f32.gmra.mxu0 %v2329
      %v2592 = vpop.f32.mrf.mxu0
      %v2593 = vadd.f32 0.0, %v2592
      %v2594 = vpop.f32.mrf.mxu0
      %2595 = vmatprep.mubr.f32.mxu0 0.0
      %2596 = vmatmul.mubr.f32.gmra.mxu0 %v2332
      %v2597 = vpop.f32.mrf.mxu0
      %v2598 = vadd.f32 0.0, %v2597
      %v2599 = vpop.f32.mrf.mxu0
      %2600 = vmatprep.mubr.f32.mxu0 0.0
      %2601 = vmatmul.mubr.f32.gmra.mxu0 %v2335
      %v2602 = vpop.f32.mrf.mxu0
      %v2603 = vadd.f32 0.0, %v2602
      %v2604 = vpop.f32.mrf.mxu0
      %2605 = vmatprep.mubr.f32.mxu0 0.0
      %2606 = vmatmul.mubr.f32.gmra.mxu0 %v2338
      %v2607 = vpop.f32.mrf.mxu0
      %v2608 = vadd.f32 0.0, %v2607
      %v2609 = vpop.f32.mrf.mxu0
      %2610 = vmatprep.mubr.f32.mxu0 0.0
      %2611 = vmatmul.mubr.f32.gmra.mxu0 %v2341
      %v2612 = vpop.f32.mrf.mxu0
      %v2613 = vadd.f32 0.0, %v2612
      %v2614 = vpop.f32.mrf.mxu0
      %2615 = vdwg.mxu0
      %v2616 = vadd.f32 %v2136, %v2413
      %v2617 = vadd.f32 %v2137, %v2418
      %v2618 = vadd.f32 %v2138, %v2423
      %v2619 = vadd.f32 %v2139, %v2428
      %v2620 = vadd.f32 %v2140, %v2433
      %v2621 = vadd.f32 %v2141, %v2438
      %v2622 = vadd.f32 %v2142, %v2443
      %v2623 = vadd.f32 %v2143, %v2448
      %v2624 = vadd.f32 %v2144, %v2453
      %v2625 = vadd.f32 %v2145, %v2458
      %v2626 = vadd.f32 %v2146, %v2463
      %v2627 = vadd.f32 %v2147, %v2468
      %v2628 = vadd.f32 %v2148, %v2473
      %v2629 = vadd.f32 %v2149, %v2478
      %v2630 = vadd.f32 %v2150, %v2483
      %v2631 = vadd.f32 %v2151, %v2488
      %v2632 = vadd.f32 %v2152, %v2493
      %v2633 = vadd.f32 %v2153, %v2498
      %v2634 = vadd.f32 %v2154, %v2503
      %v2635 = vadd.f32 %v2155, %v2508
      %v2636 = vadd.f32 %v2156, %v2513
      %v2637 = vadd.f32 %v2157, %v2518
      %v2638 = vadd.f32 %v2158, %v2523
      %v2639 = vadd.f32 %v2159, %v2528
      %v2640 = vadd.f32 %v2160, %v2533
      %v2641 = vadd.f32 %v2161, %v2538
      %v2642 = vadd.f32 %v2162, %v2543
      %v2643 = vadd.f32 %v2163, %v2548
      %v2644 = vadd.f32 %v2164, %v2553
      %v2645 = vadd.f32 %v2165, %v2558
      %v2646 = vadd.f32 %v2166, %v2563
      %v2647 = vadd.f32 %v2167, %v2568
      %v2648 = vadd.f32 %v2168, %v2573
      %v2649 = vadd.f32 %v2169, %v2578
      %v2650 = vadd.f32 %v2170, %v2583
      %v2651 = vadd.f32 %v2171, %v2588
      %v2652 = vadd.f32 %v2172, %v2593
      %v2653 = vadd.f32 %v2173, %v2598
      %v2654 = vadd.f32 %v2174, %v2603
      %v2655 = vadd.f32 %v2175, %v2608
      %v2656 = vadd.f32 %v2176, %v2613
      %2657 = vst.msk [vmem:[#allocation5] sm:$0xff] %vm331, %v2616
      %2658 = vst.msk [vmem:[#allocation5 + $0x8] sm:$0xff] %vm331, %v2617
      %2659 = vst.msk [vmem:[#allocation5 + $0x10] sm:$0xff] %vm331, %v2618
      %2660 = vst.msk [vmem:[#allocation5 + $0x18] sm:$0xff] %vm331, %v2619
      %2661 = vst.msk [vmem:[#allocation5 + $0x20] sm:$0xff] %vm331, %v2620
      %2662 = vst.msk [vmem:[#allocation5 + $0x28] sm:$0xff] %vm331, %v2621
      %2663 = vst.msk [vmem:[#allocation5 + $0x30] sm:$0xff] %vm331, %v2622
      %2664 = vst.msk [vmem:[#allocation5 + $0x38] sm:$0xff] %vm331, %v2623
      %2665 = vst.msk [vmem:[#allocation5 + $0x40] sm:$0xff] %vm331, %v2624
      %2666 = vst.msk [vmem:[#allocation5 + $0x48] sm:$0xff] %vm331, %v2625
      %2667 = vst.msk [vmem:[#allocation5 + $0x50] sm:$0xff] %vm331, %v2626
      %2668 = vst.msk [vmem:[#allocation5 + $0x58] sm:$0xff] %vm331, %v2627
      %2669 = vst.msk [vmem:[#allocation5 + $0x60] sm:$0xff] %vm331, %v2628
      %2670 = vst.msk [vmem:[#allocation5 + $0x68] sm:$0xff] %vm331, %v2629
      %2671 = vst.msk [vmem:[#allocation5 + $0x70] sm:$0xff] %vm331, %v2630
      %2672 = vst.msk [vmem:[#allocation5 + $0x78] sm:$0xff] %vm331, %v2631
      %2673 = vst.msk [vmem:[#allocation5 + $0x80] sm:$0xff] %vm331, %v2632
      %2674 = vst.msk [vmem:[#allocation5 + $0x88] sm:$0xff] %vm331, %v2633
      %2675 = vst.msk [vmem:[#allocation5 + $0x90] sm:$0xff] %vm331, %v2634
      %2676 = vst.msk [vmem:[#allocation5 + $0x98] sm:$0xff] %vm331, %v2635
      %2677 = vst.msk [vmem:[#allocation5 + $0xa0] sm:$0xff] %vm331, %v2636
      %2678 = vst.msk [vmem:[#allocation5 + $0xa8] sm:$0xff] %vm331, %v2637
      %2679 = vst.msk [vmem:[#allocation5 + $0xb0] sm:$0xff] %vm331, %v2638
      %2680 = vst.msk [vmem:[#allocation5 + $0xb8] sm:$0xff] %vm331, %v2639
      %2681 = vst.msk [vmem:[#allocation5 + $0xc0] sm:$0xff] %vm331, %v2640
      %2682 = vst.msk [vmem:[#allocation5 + $0xc8] sm:$0xff] %vm331, %v2641
      %2683 = vst.msk [vmem:[#allocation5 + $0xd0] sm:$0xff] %vm331, %v2642
      %2684 = vst.msk [vmem:[#allocation5 + $0xd8] sm:$0xff] %vm331, %v2643
      %2685 = vst.msk [vmem:[#allocation5 + $0xe0] sm:$0xff] %vm331, %v2644
      %2686 = vst.msk [vmem:[#allocation5 + $0xe8] sm:$0xff] %vm331, %v2645
      %2687 = vst.msk [vmem:[#allocation5 + $0xf0] sm:$0xff] %vm331, %v2646
      %2688 = vst.msk [vmem:[#allocation5 + $0xf8] sm:$0xff] %vm331, %v2647
      %2689 = vst.msk [vmem:[#allocation5 + $0x100] sm:$0xff] %vm331, %v2648
      %2690 = vst.msk [vmem:[#allocation5 + $0x108] sm:$0xff] %vm331, %v2649
      %2691 = vst.msk [vmem:[#allocation5 + $0x110] sm:$0xff] %vm331, %v2650
      %2692 = vst.msk [vmem:[#allocation5 + $0x118] sm:$0xff] %vm331, %v2651
      %2693 = vst.msk [vmem:[#allocation5 + $0x120] sm:$0xff] %vm331, %v2652
      %2694 = vst.msk [vmem:[#allocation5 + $0x128] sm:$0xff] %vm331, %v2653
      %2695 = vst.msk [vmem:[#allocation5 + $0x130] sm:$0xff] %vm331, %v2654
      %2696 = vst.msk [vmem:[#allocation5 + $0x138] sm:$0xff] %vm331, %v2655
      %vm2697 = vcmask 519168
      %2698 = vst.msk [vmem:[#allocation5 + $0x140] sm:$0xf] %vm2697, %v2656
      %v2699 = vld [vmem:[#allocation5] ss:$3 sm:$0xff]
      %s2700 = scalar_lea.vmem [#allocation5], 24
      %v2701 = vld [vmem:[%s2700] ss:$3 sm:$0xff]
      %s2702 = scalar_lea.vmem [#allocation5], 48
      %v2703 = vld [vmem:[%s2702] ss:$3 sm:$0xff]
      %s2704 = scalar_lea.vmem [#allocation5], 72
      %v2705 = vld [vmem:[%s2704] ss:$3 sm:$0xff]
      %s2706 = scalar_lea.vmem [#allocation5], 96
      %v2707 = vld [vmem:[%s2706] ss:$3 sm:$0xff]
      %s2708 = scalar_lea.vmem [#allocation5], 120
      %v2709 = vld [vmem:[%s2708] ss:$3 sm:$0xff]
      %s2710 = scalar_lea.vmem [#allocation5], 144
      %v2711 = vld [vmem:[%s2710] ss:$3 sm:$0xff]
      %s2712 = scalar_lea.vmem [#allocation5], 168
      %v2713 = vld [vmem:[%s2712] ss:$3 sm:$0xff]
      %s2714 = scalar_lea.vmem [#allocation5], 192
      %v2715 = vld [vmem:[%s2714] ss:$3 sm:$0xff]
      %s2716 = scalar_lea.vmem [#allocation5], 216
      %v2717 = vld [vmem:[%s2716] ss:$3 sm:$0xff]
      %s2718 = scalar_lea.vmem [#allocation5], 240
      %v2719 = vld [vmem:[%s2718] ss:$3 sm:$0xff]
      %s2720 = scalar_lea.vmem [#allocation5], 264
      %v2721 = vld [vmem:[%s2720] ss:$3 sm:$0xff]
      %s2722 = scalar_lea.vmem [#allocation5], 288
      %v2723 = vld [vmem:[%s2722] ss:$3 sm:$0xff]
      %s2724 = scalar_lea.vmem [#allocation5], 312
      %v2725 = vld [vmem:[%s2724] ss:$3 sm:$0xf]
      %s2726 = scalar_lea.vmem [#allocation5], 1
      %v2727 = vld [vmem:[%s2726] ss:$3 sm:$0xff]
      %s2728 = scalar_lea.vmem [#allocation5], 25
      %v2729 = vld [vmem:[%s2728] ss:$3 sm:$0xff]
      %s2730 = scalar_lea.vmem [#allocation5], 49
      %v2731 = vld [vmem:[%s2730] ss:$3 sm:$0xff]
      %s2732 = scalar_lea.vmem [#allocation5], 73
      %v2733 = vld [vmem:[%s2732] ss:$3 sm:$0xff]
      %s2734 = scalar_lea.vmem [#allocation5], 97
      %v2735 = vld [vmem:[%s2734] ss:$3 sm:$0xff]
      %s2736 = scalar_lea.vmem [#allocation5], 121
      %v2737 = vld [vmem:[%s2736] ss:$3 sm:$0xff]
      %s2738 = scalar_lea.vmem [#allocation5], 145
      %v2739 = vld [vmem:[%s2738] ss:$3 sm:$0xff]
      %s2740 = scalar_lea.vmem [#allocation5], 169
      %v2741 = vld [vmem:[%s2740] ss:$3 sm:$0xff]
      %s2742 = scalar_lea.vmem [#allocation5], 193
      %v2743 = vld [vmem:[%s2742] ss:$3 sm:$0xff]
      %s2744 = scalar_lea.vmem [#allocation5], 217
      %v2745 = vld [vmem:[%s2744] ss:$3 sm:$0xff]
      %s2746 = scalar_lea.vmem [#allocation5], 241
      %v2747 = vld [vmem:[%s2746] ss:$3 sm:$0xff]
      %s2748 = scalar_lea.vmem [#allocation5], 265
      %v2749 = vld [vmem:[%s2748] ss:$3 sm:$0xff]
      %s2750 = scalar_lea.vmem [#allocation5], 289
      %v2751 = vld [vmem:[%s2750] ss:$3 sm:$0xff]
      %s2752 = scalar_lea.vmem [#allocation5], 313
      %v2753 = vld [vmem:[%s2752] ss:$3 sm:$0xf]
      %v2754 = vmax.f32 %v2699, %v2727
      %v2755 = vmax.f32 %v2701, %v2729
      %v2756 = vmax.f32 %v2703, %v2731
      %v2757 = vmax.f32 %v2705, %v2733
      %v2758 = vmax.f32 %v2707, %v2735
      %v2759 = vmax.f32 %v2709, %v2737
      %v2760 = vmax.f32 %v2711, %v2739
      %v2761 = vmax.f32 %v2713, %v2741
      %v2762 = vmax.f32 %v2715, %v2743
      %v2763 = vmax.f32 %v2717, %v2745
      %v2764 = vmax.f32 %v2719, %v2747
      %v2765 = vmax.f32 %v2721, %v2749
      %v2766 = vmax.f32 %v2723, %v2751
      %v2767 = vmax.f32 %v2725, %v2753
      %s2768 = scalar_lea.vmem [#allocation5], 2
      %v2769 = vld [vmem:[%s2768] ss:$3 sm:$0xff]
      %s2770 = scalar_lea.vmem [#allocation5], 26
      %v2771 = vld [vmem:[%s2770] ss:$3 sm:$0xff]
      %s2772 = scalar_lea.vmem [#allocation5], 50
      %v2773 = vld [vmem:[%s2772] ss:$3 sm:$0xff]
      %s2774 = scalar_lea.vmem [#allocation5], 74
      %v2775 = vld [vmem:[%s2774] ss:$3 sm:$0xff]
      %s2776 = scalar_lea.vmem [#allocation5], 98
      %v2777 = vld [vmem:[%s2776] ss:$3 sm:$0xff]
      %s2778 = scalar_lea.vmem [#allocation5], 122
      %v2779 = vld [vmem:[%s2778] ss:$3 sm:$0xff]
      %s2780 = scalar_lea.vmem [#allocation5], 146
      %v2781 = vld [vmem:[%s2780] ss:$3 sm:$0xff]
      %s2782 = scalar_lea.vmem [#allocation5], 170
      %v2783 = vld [vmem:[%s2782] ss:$3 sm:$0xff]
      %s2784 = scalar_lea.vmem [#allocation5], 194
      %v2785 = vld [vmem:[%s2784] ss:$3 sm:$0xff]
      %s2786 = scalar_lea.vmem [#allocation5], 218
      %v2787 = vld [vmem:[%s2786] ss:$3 sm:$0xff]
      %s2788 = scalar_lea.vmem [#allocation5], 242
      %v2789 = vld [vmem:[%s2788] ss:$3 sm:$0xff]
      %s2790 = scalar_lea.vmem [#allocation5], 266
      %v2791 = vld [vmem:[%s2790] ss:$3 sm:$0xff]
      %s2792 = scalar_lea.vmem [#allocation5], 290
      %v2793 = vld [vmem:[%s2792] ss:$3 sm:$0xff]
      %s2794 = scalar_lea.vmem [#allocation5], 314
      %v2795 = vld [vmem:[%s2794] ss:$3 sm:$0xf]
      %v2796 = vmax.f32 %v2754, %v2769
      %v2797 = vmax.f32 %v2755, %v2771
      %v2798 = vmax.f32 %v2756, %v2773
      %v2799 = vmax.f32 %v2757, %v2775
      %v2800 = vmax.f32 %v2758, %v2777
      %v2801 = vmax.f32 %v2759, %v2779
      %v2802 = vmax.f32 %v2760, %v2781
      %v2803 = vmax.f32 %v2761, %v2783
      %v2804 = vmax.f32 %v2762, %v2785
      %v2805 = vmax.f32 %v2763, %v2787
      %v2806 = vmax.f32 %v2764, %v2789
      %v2807 = vmax.f32 %v2765, %v2791
      %v2808 = vmax.f32 %v2766, %v2793
      %v2809 = vmax.f32 %v2767, %v2795
      %v2810 = vld [vmem:[%s2] sm:$0x1]
      %v2812 = vlaneseq
      %v2813 = vshrl.u32 %v2812, 7
      %v2814 = vsub.s32 0, %v2813
      %v2815 = vrot.slane %v2810, %v2814
      %v2817 = vadd.f32 %v2796, %v2815
      %v2818 = vadd.f32 %v2797, %v2815
      %v2819 = vadd.f32 %v2798, %v2815
      %v2820 = vadd.f32 %v2799, %v2815
      %v2821 = vadd.f32 %v2800, %v2815
      %v2822 = vadd.f32 %v2801, %v2815
      %v2823 = vadd.f32 %v2802, %v2815
      %v2824 = vadd.f32 %v2803, %v2815
      %v2825 = vadd.f32 %v2804, %v2815
      %v2826 = vadd.f32 %v2805, %v2815
      %v2827 = vadd.f32 %v2806, %v2815
      %v2828 = vadd.f32 %v2807, %v2815
      %v2829 = vadd.f32 %v2808, %v2815
      %v2830 = vadd.f32 %v2809, %v2815
      %v2831 = vmax.f32 %v2817, 0.0
      %v2832 = vmax.f32 %v2818, 0.0
      %v2833 = vmax.f32 %v2819, 0.0
      %v2834 = vmax.f32 %v2820, 0.0
      %v2835 = vmax.f32 %v2821, 0.0
      %v2836 = vmax.f32 %v2822, 0.0
      %v2837 = vmax.f32 %v2823, 0.0
      %v2838 = vmax.f32 %v2824, 0.0
      %v2839 = vmax.f32 %v2825, 0.0
      %v2840 = vmax.f32 %v2826, 0.0
      %v2841 = vmax.f32 %v2827, 0.0
      %v2842 = vmax.f32 %v2828, 0.0
      %v2843 = vmax.f32 %v2829, 0.0
      %v2844 = vmax.f32 %v2830, 0.0
      %2845 = vst.msk [vmem:[#allocation2 + $0x8] sm:$0xff] %vm331, %v2831
      %2846 = vst.msk [vmem:[#allocation2 + $0x10] sm:$0xff] %vm331, %v2832
      %2847 = vst.msk [vmem:[#allocation2 + $0x18] sm:$0xff] %vm331, %v2833
      %2848 = vst.msk [vmem:[#allocation2 + $0x20] sm:$0xff] %vm331, %v2834
      %2849 = vst.msk [vmem:[#allocation2 + $0x28] sm:$0xff] %vm331, %v2835
      %2850 = vst.msk [vmem:[#allocation2 + $0x30] sm:$0xff] %vm331, %v2836
      %2851 = vst.msk [vmem:[#allocation2 + $0x38] sm:$0xff] %vm331, %v2837
      %2852 = vst.msk [vmem:[#allocation2 + $0x40] sm:$0xff] %vm331, %v2838
      %2853 = vst.msk [vmem:[#allocation2 + $0x48] sm:$0xff] %vm331, %v2839
      %2854 = vst.msk [vmem:[#allocation2 + $0x50] sm:$0xff] %vm331, %v2840
      %2855 = vst.msk [vmem:[#allocation2 + $0x58] sm:$0xff] %vm331, %v2841
      %2856 = vst.msk [vmem:[#allocation2 + $0x60] sm:$0xff] %vm331, %v2842
      %2857 = vst.msk [vmem:[#allocation2 + $0x68] sm:$0xff] %vm331, %v2843
      %2858 = vst.msk [vmem:[#allocation2 + $0x70] sm:$0xf] %vm2697, %v2844
      %v2859 = vld [vmem:[#allocation2 + $0x6] sm:$0xff]
      %v2860 = vld [vmem:[#allocation2 + $0xe] sm:$0xff]
      %v2861 = vld [vmem:[#allocation2 + $0x16] sm:$0xff]
      %v2862 = vld [vmem:[#allocation2 + $0x1e] sm:$0xff]
      %v2863 = vld [vmem:[#allocation2 + $0x26] sm:$0xff]
      %v2864 = vld [vmem:[#allocation2 + $0x2e] sm:$0xff]
      %v2865 = vld [vmem:[#allocation2 + $0x36] sm:$0xff]
      %v2866 = vld [vmem:[#allocation2 + $0x3e] sm:$0xff]
      %v2867 = vld [vmem:[#allocation2 + $0x46] sm:$0xff]
      %v2868 = vld [vmem:[#allocation2 + $0x4e] sm:$0xff]
      %v2869 = vld [vmem:[#allocation2 + $0x56] sm:$0xff]
      %v2870 = vld [vmem:[#allocation2 + $0x5e] sm:$0xff]
      %v2871 = vld [vmem:[#allocation2 + $0x66] sm:$0xff]
      %v2872 = vld [vmem:[#allocation2 + $0x6e] sm:$0xf]
      %v2873 = vld [vmem:[%s3] sm:$0xff]
      %v2874 = vld [vmem:[%s3 + $0x8] sm:$0xff]
      %v2875 = vld [vmem:[%s3 + $0x10] sm:$0xff]
      %v2876 = vld [vmem:[%s3 + $0x18] sm:$0xff]
      %v2877 = vld [vmem:[%s3 + $0x20] sm:$0xff]
      %v2878 = vld [vmem:[%s3 + $0x28] sm:$0xff]
      %v2879 = vld [vmem:[%s3 + $0x30] sm:$0xff]
      %v2880 = vld [vmem:[%s3 + $0x38] sm:$0xff]
      %v2881 = vld [vmem:[#allocation2 + $0x7] sm:$0xff]
      %v2882 = vld [vmem:[#allocation2 + $0xf] sm:$0xff]
      %v2883 = vld [vmem:[#allocation2 + $0x17] sm:$0xff]
      %v2884 = vld [vmem:[#allocation2 + $0x1f] sm:$0xff]
      %v2885 = vld [vmem:[#allocation2 + $0x27] sm:$0xff]
      %v2886 = vld [vmem:[#allocation2 + $0x2f] sm:$0xff]
      %v2887 = vld [vmem:[#allocation2 + $0x37] sm:$0xff]
      %v2888 = vld [vmem:[#allocation2 + $0x3f] sm:$0xff]
      %v2889 = vld [vmem:[#allocation2 + $0x47] sm:$0xff]
      %v2890 = vld [vmem:[#allocation2 + $0x4f] sm:$0xff]
      %v2891 = vld [vmem:[#allocation2 + $0x57] sm:$0xff]
      %v2892 = vld [vmem:[#allocation2 + $0x5f] sm:$0xff]
      %v2893 = vld [vmem:[#allocation2 + $0x67] sm:$0xff]
      %v2894 = vld [vmem:[#allocation2 + $0x6f] sm:$0xf]
      %s2895 = scalar_lea.vmem %s3, 64
      %v2896 = vld [vmem:[%s2895] sm:$0xff]
      %v2897 = vld [vmem:[%s2895 + $0x8] sm:$0xff]
      %v2898 = vld [vmem:[%s2895 + $0x10] sm:$0xff]
      %v2899 = vld [vmem:[%s2895 + $0x18] sm:$0xff]
      %v2900 = vld [vmem:[%s2895 + $0x20] sm:$0xff]
      %v2901 = vld [vmem:[%s2895 + $0x28] sm:$0xff]
      %v2902 = vld [vmem:[%s2895 + $0x30] sm:$0xff]
      %v2903 = vld [vmem:[%s2895 + $0x38] sm:$0xff]
      %v2905 = vsel %vm331, %v2881, 0
      %v2908 = vsel %vm331, %v2882, 0
      %v2911 = vsel %vm331, %v2883, 0
      %v2914 = vsel %vm331, %v2884, 0
      %v2917 = vsel %vm331, %v2885, 0
      %v2920 = vsel %vm331, %v2886, 0
      %v2923 = vsel %vm331, %v2887, 0
      %v2926 = vsel %vm331, %v2888, 0
      %v2929 = vsel %vm331, %v2889, 0
      %v2932 = vsel %vm331, %v2890, 0
      %v2935 = vsel %vm331, %v2891, 0
      %v2938 = vsel %vm331, %v2892, 0
      %v2941 = vsel %vm331, %v2893, 0
      %v2944 = vsel %vm331, %v2894, 0
      %2946 = vmatprep.subr.mxu0 0.0
      %2947 = vmatpush1.msra.mxu0 0.0
      %2948 = vmatprep.subr.mxu0 0.0
      %2949 = vmatpush1.msra.mxu0 0.0
      %2950 = vmatprep.subr.mxu0 0.0
      %2951 = vmatpush1.msra.mxu0 0.0
      %2952 = vmatprep.subr.mxu0 0.0
      %2953 = vmatpush1.msra.mxu0 0.0
      %2954 = vmatprep.subr.mxu0 0.0
      %2955 = vmatpush1.msra.mxu0 0.0
      %2956 = vmatprep.subr.mxu0 0.0
      %2957 = vmatpush1.msra.mxu0 0.0
      %2958 = vmatprep.subr.mxu0 0.0
      %2959 = vmatpush1.msra.mxu0 0.0
      %2960 = vmatprep.subr.mxu0 0.0
      %2961 = vmatpush1.msra.mxu0 0.0
      %2962 = vmatprep.subr.mxu0 0.0
      %2963 = vmatpush1.msra.mxu0 %v2903
      %2964 = vmatprep.subr.mxu0 0.0
      %2965 = vmatpush1.msra.mxu0 %v2902
      %2966 = vmatprep.subr.mxu0 0.0
      %2967 = vmatpush1.msra.mxu0 %v2901
      %2968 = vmatprep.subr.mxu0 0.0
      %2969 = vmatpush1.msra.mxu0 %v2900
      %2970 = vmatprep.subr.mxu0 0.0
      %2971 = vmatpush1.msra.mxu0 %v2899
      %2972 = vmatprep.subr.mxu0 0.0
      %2973 = vmatpush1.msra.mxu0 %v2898
      %2974 = vmatprep.subr.mxu0 0.0
      %2975 = vmatpush1.msra.mxu0 %v2897
      %2976 = vmatprep.subr.mxu0 0.0
      %2977 = vmatpush1.msra.mxu0 %v2896
      %2978 = vmatprep.subr.mxu0 0.0
      %2979 = vmatpush2.msra.mxu0 0.0
      %2980 = vmatprep.subr.mxu0 0.0
      %2981 = vmatpush2.msra.mxu0 0.0
      %2982 = vmatprep.subr.mxu0 0.0
      %2983 = vmatpush2.msra.mxu0 0.0
      %2984 = vmatprep.subr.mxu0 0.0
      %2985 = vmatpush2.msra.mxu0 0.0
      %2986 = vmatprep.subr.mxu0 0.0
      %2987 = vmatpush2.msra.mxu0 0.0
      %2988 = vmatprep.subr.mxu0 0.0
      %2989 = vmatpush2.msra.mxu0 0.0
      %2990 = vmatprep.subr.mxu0 0.0
      %2991 = vmatpush2.msra.mxu0 0.0
      %2992 = vmatprep.subr.mxu0 0.0
      %2993 = vmatpush2.msra.mxu0 0.0
      %2994 = vmatprep.subr.mxu0 0.0
      %2995 = vmatpush2.msra.mxu0 0.0
      %2996 = vmatprep.subr.mxu0 0.0
      %2997 = vmatpush2.msra.mxu0 0.0
      %2998 = vmatprep.subr.mxu0 0.0
      %2999 = vmatpush2.msra.mxu0 0.0
      %3000 = vmatprep.subr.mxu0 0.0
      %3001 = vmatpush2.msra.mxu0 0.0
      %3002 = vmatprep.subr.mxu0 0.0
      %3003 = vmatpush2.msra.mxu0 0.0
      %3004 = vmatprep.subr.mxu0 0.0
      %3005 = vmatpush2.msra.mxu0 0.0
      %3006 = vmatprep.subr.mxu0 0.0
      %3007 = vmatpush2.msra.mxu0 0.0
      %3008 = vmatprep.subr.mxu0 0.0
      %3009 = vmatpush2.msra.mxu0 0.0
      %3010 = vmatprep.mubr.f32.mxu0 0.0
      %3011 = vmatmul.mubr.f32.gmra.mxu0 %v2905
      %v3012 = vpop.f32.mrf.mxu0
      %v3013 = vadd.f32 0.0, %v3012
      %v3014 = vpop.f32.mrf.mxu0
      %3015 = vmatprep.mubr.f32.mxu0 0.0
      %3016 = vmatmul.mubr.f32.gmra.mxu0 %v2908
      %v3017 = vpop.f32.mrf.mxu0
      %v3018 = vadd.f32 0.0, %v3017
      %v3019 = vpop.f32.mrf.mxu0
      %3020 = vmatprep.mubr.f32.mxu0 0.0
      %3021 = vmatmul.mubr.f32.gmra.mxu0 %v2911
      %v3022 = vpop.f32.mrf.mxu0
      %v3023 = vadd.f32 0.0, %v3022
      %v3024 = vpop.f32.mrf.mxu0
      %3025 = vmatprep.mubr.f32.mxu0 0.0
      %3026 = vmatmul.mubr.f32.gmra.mxu0 %v2914
      %v3027 = vpop.f32.mrf.mxu0
      %v3028 = vadd.f32 0.0, %v3027
      %v3029 = vpop.f32.mrf.mxu0
      %3030 = vmatprep.mubr.f32.mxu0 0.0
      %3031 = vmatmul.mubr.f32.gmra.mxu0 %v2917
      %v3032 = vpop.f32.mrf.mxu0
      %v3033 = vadd.f32 0.0, %v3032
      %v3034 = vpop.f32.mrf.mxu0
      %3035 = vmatprep.mubr.f32.mxu0 0.0
      %3036 = vmatmul.mubr.f32.gmra.mxu0 %v2920
      %v3037 = vpop.f32.mrf.mxu0
      %v3038 = vadd.f32 0.0, %v3037
      %v3039 = vpop.f32.mrf.mxu0
      %3040 = vmatprep.mubr.f32.mxu0 0.0
      %3041 = vmatmul.mubr.f32.gmra.mxu0 %v2923
      %v3042 = vpop.f32.mrf.mxu0
      %v3043 = vadd.f32 0.0, %v3042
      %v3044 = vpop.f32.mrf.mxu0
      %3045 = vmatprep.mubr.f32.mxu0 0.0
      %3046 = vmatmul.mubr.f32.gmra.mxu0 %v2926
      %v3047 = vpop.f32.mrf.mxu0
      %v3048 = vadd.f32 0.0, %v3047
      %v3049 = vpop.f32.mrf.mxu0
      %3050 = vmatprep.mubr.f32.mxu0 0.0
      %3051 = vmatmul.mubr.f32.gmra.mxu0 %v2929
      %v3052 = vpop.f32.mrf.mxu0
      %v3053 = vadd.f32 0.0, %v3052
      %v3054 = vpop.f32.mrf.mxu0
      %3055 = vmatprep.mubr.f32.mxu0 0.0
      %3056 = vmatmul.mubr.f32.gmra.mxu0 %v2932
      %v3057 = vpop.f32.mrf.mxu0
      %v3058 = vadd.f32 0.0, %v3057
      %v3059 = vpop.f32.mrf.mxu0
      %3060 = vmatprep.mubr.f32.mxu0 0.0
      %3061 = vmatmul.mubr.f32.gmra.mxu0 %v2935
      %v3062 = vpop.f32.mrf.mxu0
      %v3063 = vadd.f32 0.0, %v3062
      %v3064 = vpop.f32.mrf.mxu0
      %3065 = vmatprep.mubr.f32.mxu0 0.0
      %3066 = vmatmul.mubr.f32.gmra.mxu0 %v2938
      %v3067 = vpop.f32.mrf.mxu0
      %v3068 = vadd.f32 0.0, %v3067
      %v3069 = vpop.f32.mrf.mxu0
      %3070 = vmatprep.mubr.f32.mxu0 0.0
      %3071 = vmatmul.mubr.f32.gmra.mxu0 %v2941
      %v3072 = vpop.f32.mrf.mxu0
      %v3073 = vadd.f32 0.0, %v3072
      %v3074 = vpop.f32.mrf.mxu0
      %3075 = vmatprep.mubr.f32.mxu0 0.0
      %3076 = vmatmul.mubr.f32.gmra.mxu0 %v2944
      %v3077 = vpop.f32.mrf.mxu0
      %v3078 = vadd.f32 0.0, %v3077
      %v3079 = vpop.f32.mrf.mxu0
      %3080 = vdwg.mxu0
      %v3082 = vsel %vm331, %v2859, 0
      %v3085 = vsel %vm331, %v2860, 0
      %v3088 = vsel %vm331, %v2861, 0
      %v3091 = vsel %vm331, %v2862, 0
      %v3094 = vsel %vm331, %v2863, 0
      %v3097 = vsel %vm331, %v2864, 0
      %v3100 = vsel %vm331, %v2865, 0
      %v3103 = vsel %vm331, %v2866, 0
      %v3106 = vsel %vm331, %v2867, 0
      %v3109 = vsel %vm331, %v2868, 0
      %v3112 = vsel %vm331, %v2869, 0
      %v3115 = vsel %vm331, %v2870, 0
      %v3118 = vsel %vm331, %v2871, 0
      %v3121 = vsel %vm331, %v2872, 0
      %3123 = vmatprep.subr.mxu0 0.0
      %3124 = vmatpush1.msra.mxu0 0.0
      %3125 = vmatprep.subr.mxu0 0.0
      %3126 = vmatpush1.msra.mxu0 0.0
      %3127 = vmatprep.subr.mxu0 0.0
      %3128 = vmatpush1.msra.mxu0 0.0
      %3129 = vmatprep.subr.mxu0 0.0
      %3130 = vmatpush1.msra.mxu0 0.0
      %3131 = vmatprep.subr.mxu0 0.0
      %3132 = vmatpush1.msra.mxu0 0.0
      %3133 = vmatprep.subr.mxu0 0.0
      %3134 = vmatpush1.msra.mxu0 0.0
      %3135 = vmatprep.subr.mxu0 0.0
      %3136 = vmatpush1.msra.mxu0 0.0
      %3137 = vmatprep.subr.mxu0 0.0
      %3138 = vmatpush1.msra.mxu0 0.0
      %3139 = vmatprep.subr.mxu0 0.0
      %3140 = vmatpush1.msra.mxu0 %v2880
      %3141 = vmatprep.subr.mxu0 0.0
      %3142 = vmatpush1.msra.mxu0 %v2879
      %3143 = vmatprep.subr.mxu0 0.0
      %3144 = vmatpush1.msra.mxu0 %v2878
      %3145 = vmatprep.subr.mxu0 0.0
      %3146 = vmatpush1.msra.mxu0 %v2877
      %3147 = vmatprep.subr.mxu0 0.0
      %3148 = vmatpush1.msra.mxu0 %v2876
      %3149 = vmatprep.subr.mxu0 0.0
      %3150 = vmatpush1.msra.mxu0 %v2875
      %3151 = vmatprep.subr.mxu0 0.0
      %3152 = vmatpush1.msra.mxu0 %v2874
      %3153 = vmatprep.subr.mxu0 0.0
      %3154 = vmatpush1.msra.mxu0 %v2873
      %3155 = vmatprep.subr.mxu0 0.0
      %3156 = vmatpush2.msra.mxu0 0.0
      %3157 = vmatprep.subr.mxu0 0.0
      %3158 = vmatpush2.msra.mxu0 0.0
      %3159 = vmatprep.subr.mxu0 0.0
      %3160 = vmatpush2.msra.mxu0 0.0
      %3161 = vmatprep.subr.mxu0 0.0
      %3162 = vmatpush2.msra.mxu0 0.0
      %3163 = vmatprep.subr.mxu0 0.0
      %3164 = vmatpush2.msra.mxu0 0.0
      %3165 = vmatprep.subr.mxu0 0.0
      %3166 = vmatpush2.msra.mxu0 0.0
      %3167 = vmatprep.subr.mxu0 0.0
      %3168 = vmatpush2.msra.mxu0 0.0
      %3169 = vmatprep.subr.mxu0 0.0
      %3170 = vmatpush2.msra.mxu0 0.0
      %3171 = vmatprep.subr.mxu0 0.0
      %3172 = vmatpush2.msra.mxu0 0.0
      %3173 = vmatprep.subr.mxu0 0.0
      %3174 = vmatpush2.msra.mxu0 0.0
      %3175 = vmatprep.subr.mxu0 0.0
      %3176 = vmatpush2.msra.mxu0 0.0
      %3177 = vmatprep.subr.mxu0 0.0
      %3178 = vmatpush2.msra.mxu0 0.0
      %3179 = vmatprep.subr.mxu0 0.0
      %3180 = vmatpush2.msra.mxu0 0.0
      %3181 = vmatprep.subr.mxu0 0.0
      %3182 = vmatpush2.msra.mxu0 0.0
      %3183 = vmatprep.subr.mxu0 0.0
      %3184 = vmatpush2.msra.mxu0 0.0
      %3185 = vmatprep.subr.mxu0 0.0
      %3186 = vmatpush2.msra.mxu0 0.0
      %3187 = vmatprep.mubr.f32.mxu0 0.0
      %3188 = vmatmul.mubr.f32.gmra.mxu0 %v3082
      %v3189 = vpop.f32.mrf.mxu0
      %v3190 = vadd.f32 %v3013, %v3189
      %v3191 = vpop.f32.mrf.mxu0
      %3192 = vmatprep.mubr.f32.mxu0 0.0
      %3193 = vmatmul.mubr.f32.gmra.mxu0 %v3085
      %v3194 = vpop.f32.mrf.mxu0
      %v3195 = vadd.f32 %v3018, %v3194
      %v3196 = vpop.f32.mrf.mxu0
      %3197 = vmatprep.mubr.f32.mxu0 0.0
      %3198 = vmatmul.mubr.f32.gmra.mxu0 %v3088
      %v3199 = vpop.f32.mrf.mxu0
      %v3200 = vadd.f32 %v3023, %v3199
      %v3201 = vpop.f32.mrf.mxu0
      %3202 = vmatprep.mubr.f32.mxu0 0.0
      %3203 = vmatmul.mubr.f32.gmra.mxu0 %v3091
      %v3204 = vpop.f32.mrf.mxu0
      %v3205 = vadd.f32 %v3028, %v3204
      %v3206 = vpop.f32.mrf.mxu0
      %3207 = vmatprep.mubr.f32.mxu0 0.0
      %3208 = vmatmul.mubr.f32.gmra.mxu0 %v3094
      %v3209 = vpop.f32.mrf.mxu0
      %v3210 = vadd.f32 %v3033, %v3209
      %v3211 = vpop.f32.mrf.mxu0
      %3212 = vmatprep.mubr.f32.mxu0 0.0
      %3213 = vmatmul.mubr.f32.gmra.mxu0 %v3097
      %v3214 = vpop.f32.mrf.mxu0
      %v3215 = vadd.f32 %v3038, %v3214
      %v3216 = vpop.f32.mrf.mxu0
      %3217 = vmatprep.mubr.f32.mxu0 0.0
      %3218 = vmatmul.mubr.f32.gmra.mxu0 %v3100
      %v3219 = vpop.f32.mrf.mxu0
      %v3220 = vadd.f32 %v3043, %v3219
      %v3221 = vpop.f32.mrf.mxu0
      %3222 = vmatprep.mubr.f32.mxu0 0.0
      %3223 = vmatmul.mubr.f32.gmra.mxu0 %v3103
      %v3224 = vpop.f32.mrf.mxu0
      %v3225 = vadd.f32 %v3048, %v3224
      %v3226 = vpop.f32.mrf.mxu0
      %3227 = vmatprep.mubr.f32.mxu0 0.0
      %3228 = vmatmul.mubr.f32.gmra.mxu0 %v3106
      %v3229 = vpop.f32.mrf.mxu0
      %v3230 = vadd.f32 %v3053, %v3229
      %v3231 = vpop.f32.mrf.mxu0
      %3232 = vmatprep.mubr.f32.mxu0 0.0
      %3233 = vmatmul.mubr.f32.gmra.mxu0 %v3109
      %v3234 = vpop.f32.mrf.mxu0
      %v3235 = vadd.f32 %v3058, %v3234
      %v3236 = vpop.f32.mrf.mxu0
      %3237 = vmatprep.mubr.f32.mxu0 0.0
      %3238 = vmatmul.mubr.f32.gmra.mxu0 %v3112
      %v3239 = vpop.f32.mrf.mxu0
      %v3240 = vadd.f32 %v3063, %v3239
      %v3241 = vpop.f32.mrf.mxu0
      %3242 = vmatprep.mubr.f32.mxu0 0.0
      %3243 = vmatmul.mubr.f32.gmra.mxu0 %v3115
      %v3244 = vpop.f32.mrf.mxu0
      %v3245 = vadd.f32 %v3068, %v3244
      %v3246 = vpop.f32.mrf.mxu0
      %3247 = vmatprep.mubr.f32.mxu0 0.0
      %3248 = vmatmul.mubr.f32.gmra.mxu0 %v3118
      %v3249 = vpop.f32.mrf.mxu0
      %v3250 = vadd.f32 %v3073, %v3249
      %v3251 = vpop.f32.mrf.mxu0
      %3252 = vmatprep.mubr.f32.mxu0 0.0
      %3253 = vmatmul.mubr.f32.gmra.mxu0 %v3121
      %v3254 = vpop.f32.mrf.mxu0
      %v3255 = vadd.f32 %v3078, %v3254
      %v3256 = vpop.f32.mrf.mxu0
      %3257 = vdwg.mxu0
      %v3258 = vld [vmem:[#allocation2 + $0x8] sm:$0xff]
      %v3259 = vld [vmem:[#allocation2 + $0x10] sm:$0xff]
      %v3260 = vld [vmem:[#allocation2 + $0x18] sm:$0xff]
      %v3261 = vld [vmem:[#allocation2 + $0x20] sm:$0xff]
      %v3262 = vld [vmem:[#allocation2 + $0x28] sm:$0xff]
      %v3263 = vld [vmem:[#allocation2 + $0x30] sm:$0xff]
      %v3264 = vld [vmem:[#allocation2 + $0x38] sm:$0xff]
      %v3265 = vld [vmem:[#allocation2 + $0x40] sm:$0xff]
      %v3266 = vld [vmem:[#allocation2 + $0x48] sm:$0xff]
      %v3267 = vld [vmem:[#allocation2 + $0x50] sm:$0xff]
      %v3268 = vld [vmem:[#allocation2 + $0x58] sm:$0xff]
      %v3269 = vld [vmem:[#allocation2 + $0x60] sm:$0xff]
      %v3270 = vld [vmem:[#allocation2 + $0x68] sm:$0xff]
      %v3271 = vld [vmem:[#allocation2 + $0x70] sm:$0xf]
      %s3272 = scalar_lea.vmem %s3, 128
      %v3273 = vld [vmem:[%s3272] sm:$0xff]
      %v3274 = vld [vmem:[%s3272 + $0x8] sm:$0xff]
      %v3275 = vld [vmem:[%s3272 + $0x10] sm:$0xff]
      %v3276 = vld [vmem:[%s3272 + $0x18] sm:$0xff]
      %v3277 = vld [vmem:[%s3272 + $0x20] sm:$0xff]
      %v3278 = vld [vmem:[%s3272 + $0x28] sm:$0xff]
      %v3279 = vld [vmem:[%s3272 + $0x30] sm:$0xff]
      %v3280 = vld [vmem:[%s3272 + $0x38] sm:$0xff]
      %v3282 = vsel %vm331, %v3258, 0
      %v3285 = vsel %vm331, %v3259, 0
      %v3288 = vsel %vm331, %v3260, 0
      %v3291 = vsel %vm331, %v3261, 0
      %v3294 = vsel %vm331, %v3262, 0
      %v3297 = vsel %vm331, %v3263, 0
      %v3300 = vsel %vm331, %v3264, 0
      %v3303 = vsel %vm331, %v3265, 0
      %v3306 = vsel %vm331, %v3266, 0
      %v3309 = vsel %vm331, %v3267, 0
      %v3312 = vsel %vm331, %v3268, 0
      %v3315 = vsel %vm331, %v3269, 0
      %v3318 = vsel %vm331, %v3270, 0
      %v3321 = vsel %vm331, %v3271, 0
      %3323 = vmatprep.subr.mxu0 0.0
      %3324 = vmatpush1.msra.mxu0 0.0
      %3325 = vmatprep.subr.mxu0 0.0
      %3326 = vmatpush1.msra.mxu0 0.0
      %3327 = vmatprep.subr.mxu0 0.0
      %3328 = vmatpush1.msra.mxu0 0.0
      %3329 = vmatprep.subr.mxu0 0.0
      %3330 = vmatpush1.msra.mxu0 0.0
      %3331 = vmatprep.subr.mxu0 0.0
      %3332 = vmatpush1.msra.mxu0 0.0
      %3333 = vmatprep.subr.mxu0 0.0
      %3334 = vmatpush1.msra.mxu0 0.0
      %3335 = vmatprep.subr.mxu0 0.0
      %3336 = vmatpush1.msra.mxu0 0.0
      %3337 = vmatprep.subr.mxu0 0.0
      %3338 = vmatpush1.msra.mxu0 0.0
      %3339 = vmatprep.subr.mxu0 0.0
      %3340 = vmatpush1.msra.mxu0 %v3280
      %3341 = vmatprep.subr.mxu0 0.0
      %3342 = vmatpush1.msra.mxu0 %v3279
      %3343 = vmatprep.subr.mxu0 0.0
      %3344 = vmatpush1.msra.mxu0 %v3278
      %3345 = vmatprep.subr.mxu0 0.0
      %3346 = vmatpush1.msra.mxu0 %v3277
      %3347 = vmatprep.subr.mxu0 0.0
      %3348 = vmatpush1.msra.mxu0 %v3276
      %3349 = vmatprep.subr.mxu0 0.0
      %3350 = vmatpush1.msra.mxu0 %v3275
      %3351 = vmatprep.subr.mxu0 0.0
      %3352 = vmatpush1.msra.mxu0 %v3274
      %3353 = vmatprep.subr.mxu0 0.0
      %3354 = vmatpush1.msra.mxu0 %v3273
      %3355 = vmatprep.subr.mxu0 0.0
      %3356 = vmatpush2.msra.mxu0 0.0
      %3357 = vmatprep.subr.mxu0 0.0
      %3358 = vmatpush2.msra.mxu0 0.0
      %3359 = vmatprep.subr.mxu0 0.0
      %3360 = vmatpush2.msra.mxu0 0.0
      %3361 = vmatprep.subr.mxu0 0.0
      %3362 = vmatpush2.msra.mxu0 0.0
      %3363 = vmatprep.subr.mxu0 0.0
      %3364 = vmatpush2.msra.mxu0 0.0
      %3365 = vmatprep.subr.mxu0 0.0
      %3366 = vmatpush2.msra.mxu0 0.0
      %3367 = vmatprep.subr.mxu0 0.0
      %3368 = vmatpush2.msra.mxu0 0.0
      %3369 = vmatprep.subr.mxu0 0.0
      %3370 = vmatpush2.msra.mxu0 0.0
      %3371 = vmatprep.subr.mxu0 0.0
      %3372 = vmatpush2.msra.mxu0 0.0
      %3373 = vmatprep.subr.mxu0 0.0
      %3374 = vmatpush2.msra.mxu0 0.0
      %3375 = vmatprep.subr.mxu0 0.0
      %3376 = vmatpush2.msra.mxu0 0.0
      %3377 = vmatprep.subr.mxu0 0.0
      %3378 = vmatpush2.msra.mxu0 0.0
      %3379 = vmatprep.subr.mxu0 0.0
      %3380 = vmatpush2.msra.mxu0 0.0
      %3381 = vmatprep.subr.mxu0 0.0
      %3382 = vmatpush2.msra.mxu0 0.0
      %3383 = vmatprep.subr.mxu0 0.0
      %3384 = vmatpush2.msra.mxu0 0.0
      %3385 = vmatprep.subr.mxu0 0.0
      %3386 = vmatpush2.msra.mxu0 0.0
      %3387 = vmatprep.mubr.f32.mxu0 0.0
      %3388 = vmatmul.mubr.f32.gmra.mxu0 %v3282
      %v3389 = vpop.f32.mrf.mxu0
      %v3390 = vadd.f32 0.0, %v3389
      %v3391 = vpop.f32.mrf.mxu0
      %3392 = vmatprep.mubr.f32.mxu0 0.0
      %3393 = vmatmul.mubr.f32.gmra.mxu0 %v3285
      %v3394 = vpop.f32.mrf.mxu0
      %v3395 = vadd.f32 0.0, %v3394
      %v3396 = vpop.f32.mrf.mxu0
      %3397 = vmatprep.mubr.f32.mxu0 0.0
      %3398 = vmatmul.mubr.f32.gmra.mxu0 %v3288
      %v3399 = vpop.f32.mrf.mxu0
      %v3400 = vadd.f32 0.0, %v3399
      %v3401 = vpop.f32.mrf.mxu0
      %3402 = vmatprep.mubr.f32.mxu0 0.0
      %3403 = vmatmul.mubr.f32.gmra.mxu0 %v3291
      %v3404 = vpop.f32.mrf.mxu0
      %v3405 = vadd.f32 0.0, %v3404
      %v3406 = vpop.f32.mrf.mxu0
      %3407 = vmatprep.mubr.f32.mxu0 0.0
      %3408 = vmatmul.mubr.f32.gmra.mxu0 %v3294
      %v3409 = vpop.f32.mrf.mxu0
      %v3410 = vadd.f32 0.0, %v3409
      %v3411 = vpop.f32.mrf.mxu0
      %3412 = vmatprep.mubr.f32.mxu0 0.0
      %3413 = vmatmul.mubr.f32.gmra.mxu0 %v3297
      %v3414 = vpop.f32.mrf.mxu0
      %v3415 = vadd.f32 0.0, %v3414
      %v3416 = vpop.f32.mrf.mxu0
      %3417 = vmatprep.mubr.f32.mxu0 0.0
      %3418 = vmatmul.mubr.f32.gmra.mxu0 %v3300
      %v3419 = vpop.f32.mrf.mxu0
      %v3420 = vadd.f32 0.0, %v3419
      %v3421 = vpop.f32.mrf.mxu0
      %3422 = vmatprep.mubr.f32.mxu0 0.0
      %3423 = vmatmul.mubr.f32.gmra.mxu0 %v3303
      %v3424 = vpop.f32.mrf.mxu0
      %v3425 = vadd.f32 0.0, %v3424
      %v3426 = vpop.f32.mrf.mxu0
      %3427 = vmatprep.mubr.f32.mxu0 0.0
      %3428 = vmatmul.mubr.f32.gmra.mxu0 %v3306
      %v3429 = vpop.f32.mrf.mxu0
      %v3430 = vadd.f32 0.0, %v3429
      %v3431 = vpop.f32.mrf.mxu0
      %3432 = vmatprep.mubr.f32.mxu0 0.0
      %3433 = vmatmul.mubr.f32.gmra.mxu0 %v3309
      %v3434 = vpop.f32.mrf.mxu0
      %v3435 = vadd.f32 0.0, %v3434
      %v3436 = vpop.f32.mrf.mxu0
      %3437 = vmatprep.mubr.f32.mxu0 0.0
      %3438 = vmatmul.mubr.f32.gmra.mxu0 %v3312
      %v3439 = vpop.f32.mrf.mxu0
      %v3440 = vadd.f32 0.0, %v3439
      %v3441 = vpop.f32.mrf.mxu0
      %3442 = vmatprep.mubr.f32.mxu0 0.0
      %3443 = vmatmul.mubr.f32.gmra.mxu0 %v3315
      %v3444 = vpop.f32.mrf.mxu0
      %v3445 = vadd.f32 0.0, %v3444
      %v3446 = vpop.f32.mrf.mxu0
      %3447 = vmatprep.mubr.f32.mxu0 0.0
      %3448 = vmatmul.mubr.f32.gmra.mxu0 %v3318
      %v3449 = vpop.f32.mrf.mxu0
      %v3450 = vadd.f32 0.0, %v3449
      %v3451 = vpop.f32.mrf.mxu0
      %3452 = vmatprep.mubr.f32.mxu0 0.0
      %3453 = vmatmul.mubr.f32.gmra.mxu0 %v3321
      %v3454 = vpop.f32.mrf.mxu0
      %v3455 = vadd.f32 0.0, %v3454
      %v3456 = vpop.f32.mrf.mxu0
      %3457 = vdwg.mxu0
      %v3458 = vadd.f32 %v3190, %v3390
      %v3459 = vadd.f32 %v3195, %v3395
      %v3460 = vadd.f32 %v3200, %v3400
      %v3461 = vadd.f32 %v3205, %v3405
      %v3462 = vadd.f32 %v3210, %v3410
      %v3463 = vadd.f32 %v3215, %v3415
      %v3464 = vadd.f32 %v3220, %v3420
      %v3465 = vadd.f32 %v3225, %v3425
      %v3466 = vadd.f32 %v3230, %v3430
      %v3467 = vadd.f32 %v3235, %v3435
      %v3468 = vadd.f32 %v3240, %v3440
      %v3469 = vadd.f32 %v3245, %v3445
      %v3470 = vadd.f32 %v3250, %v3450
      %v3471 = vadd.f32 %v3255, %v3455
      %v3472 = vld [vmem:[#allocation2 + $0x9] sm:$0xff]
      %v3473 = vld [vmem:[#allocation2 + $0x11] sm:$0xff]
      %v3474 = vld [vmem:[#allocation2 + $0x19] sm:$0xff]
      %v3475 = vld [vmem:[#allocation2 + $0x21] sm:$0xff]
      %v3476 = vld [vmem:[#allocation2 + $0x29] sm:$0xff]
      %v3477 = vld [vmem:[#allocation2 + $0x31] sm:$0xff]
      %v3478 = vld [vmem:[#allocation2 + $0x39] sm:$0xff]
      %v3479 = vld [vmem:[#allocation2 + $0x41] sm:$0xff]
      %v3480 = vld [vmem:[#allocation2 + $0x49] sm:$0xff]
      %v3481 = vld [vmem:[#allocation2 + $0x51] sm:$0xff]
      %v3482 = vld [vmem:[#allocation2 + $0x59] sm:$0xff]
      %v3483 = vld [vmem:[#allocation2 + $0x61] sm:$0xff]
      %v3484 = vld [vmem:[#allocation2 + $0x69] sm:$0xff]
      %v3485 = vld [vmem:[#allocation2 + $0x71] sm:$0xf]
      %s3486 = scalar_lea.vmem %s3, 192
      %v3487 = vld [vmem:[%s3486] sm:$0xff]
      %v3488 = vld [vmem:[%s3486 + $0x8] sm:$0xff]
      %v3489 = vld [vmem:[%s3486 + $0x10] sm:$0xff]
      %v3490 = vld [vmem:[%s3486 + $0x18] sm:$0xff]
      %v3491 = vld [vmem:[%s3486 + $0x20] sm:$0xff]
      %v3492 = vld [vmem:[%s3486 + $0x28] sm:$0xff]
      %v3493 = vld [vmem:[%s3486 + $0x30] sm:$0xff]
      %v3494 = vld [vmem:[%s3486 + $0x38] sm:$0xff]
      %v3496 = vsel %vm331, %v3472, 0
      %v3499 = vsel %vm331, %v3473, 0
      %v3502 = vsel %vm331, %v3474, 0
      %v3505 = vsel %vm331, %v3475, 0
      %v3508 = vsel %vm331, %v3476, 0
      %v3511 = vsel %vm331, %v3477, 0
      %v3514 = vsel %vm331, %v3478, 0
      %v3517 = vsel %vm331, %v3479, 0
      %v3520 = vsel %vm331, %v3480, 0
      %v3523 = vsel %vm331, %v3481, 0
      %v3526 = vsel %vm331, %v3482, 0
      %v3529 = vsel %vm331, %v3483, 0
      %v3532 = vsel %vm331, %v3484, 0
      %v3535 = vsel %vm331, %v3485, 0
      %3537 = vmatprep.subr.mxu0 0.0
      %3538 = vmatpush1.msra.mxu0 0.0
      %3539 = vmatprep.subr.mxu0 0.0
      %3540 = vmatpush1.msra.mxu0 0.0
      %3541 = vmatprep.subr.mxu0 0.0
      %3542 = vmatpush1.msra.mxu0 0.0
      %3543 = vmatprep.subr.mxu0 0.0
      %3544 = vmatpush1.msra.mxu0 0.0
      %3545 = vmatprep.subr.mxu0 0.0
      %3546 = vmatpush1.msra.mxu0 0.0
      %3547 = vmatprep.subr.mxu0 0.0
      %3548 = vmatpush1.msra.mxu0 0.0
      %3549 = vmatprep.subr.mxu0 0.0
      %3550 = vmatpush1.msra.mxu0 0.0
      %3551 = vmatprep.subr.mxu0 0.0
      %3552 = vmatpush1.msra.mxu0 0.0
      %3553 = vmatprep.subr.mxu0 0.0
      %3554 = vmatpush1.msra.mxu0 %v3494
      %3555 = vmatprep.subr.mxu0 0.0
      %3556 = vmatpush1.msra.mxu0 %v3493
      %3557 = vmatprep.subr.mxu0 0.0
      %3558 = vmatpush1.msra.mxu0 %v3492
      %3559 = vmatprep.subr.mxu0 0.0
      %3560 = vmatpush1.msra.mxu0 %v3491
      %3561 = vmatprep.subr.mxu0 0.0
      %3562 = vmatpush1.msra.mxu0 %v3490
      %3563 = vmatprep.subr.mxu0 0.0
      %3564 = vmatpush1.msra.mxu0 %v3489
      %3565 = vmatprep.subr.mxu0 0.0
      %3566 = vmatpush1.msra.mxu0 %v3488
      %3567 = vmatprep.subr.mxu0 0.0
      %3568 = vmatpush1.msra.mxu0 %v3487
      %3569 = vmatprep.subr.mxu0 0.0
      %3570 = vmatpush2.msra.mxu0 0.0
      %3571 = vmatprep.subr.mxu0 0.0
      %3572 = vmatpush2.msra.mxu0 0.0
      %3573 = vmatprep.subr.mxu0 0.0
      %3574 = vmatpush2.msra.mxu0 0.0
      %3575 = vmatprep.subr.mxu0 0.0
      %3576 = vmatpush2.msra.mxu0 0.0
      %3577 = vmatprep.subr.mxu0 0.0
      %3578 = vmatpush2.msra.mxu0 0.0
      %3579 = vmatprep.subr.mxu0 0.0
      %3580 = vmatpush2.msra.mxu0 0.0
      %3581 = vmatprep.subr.mxu0 0.0
      %3582 = vmatpush2.msra.mxu0 0.0
      %3583 = vmatprep.subr.mxu0 0.0
      %3584 = vmatpush2.msra.mxu0 0.0
      %3585 = vmatprep.subr.mxu0 0.0
      %3586 = vmatpush2.msra.mxu0 0.0
      %3587 = vmatprep.subr.mxu0 0.0
      %3588 = vmatpush2.msra.mxu0 0.0
      %3589 = vmatprep.subr.mxu0 0.0
      %3590 = vmatpush2.msra.mxu0 0.0
      %3591 = vmatprep.subr.mxu0 0.0
      %3592 = vmatpush2.msra.mxu0 0.0
      %3593 = vmatprep.subr.mxu0 0.0
      %3594 = vmatpush2.msra.mxu0 0.0
      %3595 = vmatprep.subr.mxu0 0.0
      %3596 = vmatpush2.msra.mxu0 0.0
      %3597 = vmatprep.subr.mxu0 0.0
      %3598 = vmatpush2.msra.mxu0 0.0
      %3599 = vmatprep.subr.mxu0 0.0
      %3600 = vmatpush2.msra.mxu0 0.0
      %3601 = vmatprep.mubr.f32.mxu0 0.0
      %3602 = vmatmul.mubr.f32.gmra.mxu0 %v3496
      %v3603 = vpop.f32.mrf.mxu0
      %v3604 = vadd.f32 0.0, %v3603
      %v3605 = vpop.f32.mrf.mxu0
      %3606 = vmatprep.mubr.f32.mxu0 0.0
      %3607 = vmatmul.mubr.f32.gmra.mxu0 %v3499
      %v3608 = vpop.f32.mrf.mxu0
      %v3609 = vadd.f32 0.0, %v3608
      %v3610 = vpop.f32.mrf.mxu0
      %3611 = vmatprep.mubr.f32.mxu0 0.0
      %3612 = vmatmul.mubr.f32.gmra.mxu0 %v3502
      %v3613 = vpop.f32.mrf.mxu0
      %v3614 = vadd.f32 0.0, %v3613
      %v3615 = vpop.f32.mrf.mxu0
      %3616 = vmatprep.mubr.f32.mxu0 0.0
      %3617 = vmatmul.mubr.f32.gmra.mxu0 %v3505
      %v3618 = vpop.f32.mrf.mxu0
      %v3619 = vadd.f32 0.0, %v3618
      %v3620 = vpop.f32.mrf.mxu0
      %3621 = vmatprep.mubr.f32.mxu0 0.0
      %3622 = vmatmul.mubr.f32.gmra.mxu0 %v3508
      %v3623 = vpop.f32.mrf.mxu0
      %v3624 = vadd.f32 0.0, %v3623
      %v3625 = vpop.f32.mrf.mxu0
      %3626 = vmatprep.mubr.f32.mxu0 0.0
      %3627 = vmatmul.mubr.f32.gmra.mxu0 %v3511
      %v3628 = vpop.f32.mrf.mxu0
      %v3629 = vadd.f32 0.0, %v3628
      %v3630 = vpop.f32.mrf.mxu0
      %3631 = vmatprep.mubr.f32.mxu0 0.0
      %3632 = vmatmul.mubr.f32.gmra.mxu0 %v3514
      %v3633 = vpop.f32.mrf.mxu0
      %v3634 = vadd.f32 0.0, %v3633
      %v3635 = vpop.f32.mrf.mxu0
      %3636 = vmatprep.mubr.f32.mxu0 0.0
      %3637 = vmatmul.mubr.f32.gmra.mxu0 %v3517
      %v3638 = vpop.f32.mrf.mxu0
      %v3639 = vadd.f32 0.0, %v3638
      %v3640 = vpop.f32.mrf.mxu0
      %3641 = vmatprep.mubr.f32.mxu0 0.0
      %3642 = vmatmul.mubr.f32.gmra.mxu0 %v3520
      %v3643 = vpop.f32.mrf.mxu0
      %v3644 = vadd.f32 0.0, %v3643
      %v3645 = vpop.f32.mrf.mxu0
      %3646 = vmatprep.mubr.f32.mxu0 0.0
      %3647 = vmatmul.mubr.f32.gmra.mxu0 %v3523
      %v3648 = vpop.f32.mrf.mxu0
      %v3649 = vadd.f32 0.0, %v3648
      %v3650 = vpop.f32.mrf.mxu0
      %3651 = vmatprep.mubr.f32.mxu0 0.0
      %3652 = vmatmul.mubr.f32.gmra.mxu0 %v3526
      %v3653 = vpop.f32.mrf.mxu0
      %v3654 = vadd.f32 0.0, %v3653
      %v3655 = vpop.f32.mrf.mxu0
      %3656 = vmatprep.mubr.f32.mxu0 0.0
      %3657 = vmatmul.mubr.f32.gmra.mxu0 %v3529
      %v3658 = vpop.f32.mrf.mxu0
      %v3659 = vadd.f32 0.0, %v3658
      %v3660 = vpop.f32.mrf.mxu0
      %3661 = vmatprep.mubr.f32.mxu0 0.0
      %3662 = vmatmul.mubr.f32.gmra.mxu0 %v3532
      %v3663 = vpop.f32.mrf.mxu0
      %v3664 = vadd.f32 0.0, %v3663
      %v3665 = vpop.f32.mrf.mxu0
      %3666 = vmatprep.mubr.f32.mxu0 0.0
      %3667 = vmatmul.mubr.f32.gmra.mxu0 %v3535
      %v3668 = vpop.f32.mrf.mxu0
      %v3669 = vadd.f32 0.0, %v3668
      %v3670 = vpop.f32.mrf.mxu0
      %3671 = vdwg.mxu0
      %v3672 = vadd.f32 %v3458, %v3604
      %v3673 = vadd.f32 %v3459, %v3609
      %v3674 = vadd.f32 %v3460, %v3614
      %v3675 = vadd.f32 %v3461, %v3619
      %v3676 = vadd.f32 %v3462, %v3624
      %v3677 = vadd.f32 %v3463, %v3629
      %v3678 = vadd.f32 %v3464, %v3634
      %v3679 = vadd.f32 %v3465, %v3639
      %v3680 = vadd.f32 %v3466, %v3644
      %v3681 = vadd.f32 %v3467, %v3649
      %v3682 = vadd.f32 %v3468, %v3654
      %v3683 = vadd.f32 %v3469, %v3659
      %v3684 = vadd.f32 %v3470, %v3664
      %v3685 = vadd.f32 %v3471, %v3669
      %v3686 = vld [vmem:[#allocation2 + $0xa] sm:$0xff]
      %v3687 = vld [vmem:[#allocation2 + $0x12] sm:$0xff]
      %v3688 = vld [vmem:[#allocation2 + $0x1a] sm:$0xff]
      %v3689 = vld [vmem:[#allocation2 + $0x22] sm:$0xff]
      %v3690 = vld [vmem:[#allocation2 + $0x2a] sm:$0xff]
      %v3691 = vld [vmem:[#allocation2 + $0x32] sm:$0xff]
      %v3692 = vld [vmem:[#allocation2 + $0x3a] sm:$0xff]
      %v3693 = vld [vmem:[#allocation2 + $0x42] sm:$0xff]
      %v3694 = vld [vmem:[#allocation2 + $0x4a] sm:$0xff]
      %v3695 = vld [vmem:[#allocation2 + $0x52] sm:$0xff]
      %v3696 = vld [vmem:[#allocation2 + $0x5a] sm:$0xff]
      %v3697 = vld [vmem:[#allocation2 + $0x62] sm:$0xff]
      %v3698 = vld [vmem:[#allocation2 + $0x6a] sm:$0xff]
      %v3699 = vld [vmem:[#allocation2 + $0x72] sm:$0xf]
      %s3700 = scalar_lea.vmem %s3, 256
      %v3701 = vld [vmem:[%s3700] sm:$0xff]
      %v3702 = vld [vmem:[%s3700 + $0x8] sm:$0xff]
      %v3703 = vld [vmem:[%s3700 + $0x10] sm:$0xff]
      %v3704 = vld [vmem:[%s3700 + $0x18] sm:$0xff]
      %v3705 = vld [vmem:[%s3700 + $0x20] sm:$0xff]
      %v3706 = vld [vmem:[%s3700 + $0x28] sm:$0xff]
      %v3707 = vld [vmem:[%s3700 + $0x30] sm:$0xff]
      %v3708 = vld [vmem:[%s3700 + $0x38] sm:$0xff]
      %v3710 = vsel %vm331, %v3686, 0
      %v3713 = vsel %vm331, %v3687, 0
      %v3716 = vsel %vm331, %v3688, 0
      %v3719 = vsel %vm331, %v3689, 0
      %v3722 = vsel %vm331, %v3690, 0
      %v3725 = vsel %vm331, %v3691, 0
      %v3728 = vsel %vm331, %v3692, 0
      %v3731 = vsel %vm331, %v3693, 0
      %v3734 = vsel %vm331, %v3694, 0
      %v3737 = vsel %vm331, %v3695, 0
      %v3740 = vsel %vm331, %v3696, 0
      %v3743 = vsel %vm331, %v3697, 0
      %v3746 = vsel %vm331, %v3698, 0
      %v3749 = vsel %vm331, %v3699, 0
      %3751 = vmatprep.subr.mxu0 0.0
      %3752 = vmatpush1.msra.mxu0 0.0
      %3753 = vmatprep.subr.mxu0 0.0
      %3754 = vmatpush1.msra.mxu0 0.0
      %3755 = vmatprep.subr.mxu0 0.0
      %3756 = vmatpush1.msra.mxu0 0.0
      %3757 = vmatprep.subr.mxu0 0.0
      %3758 = vmatpush1.msra.mxu0 0.0
      %3759 = vmatprep.subr.mxu0 0.0
      %3760 = vmatpush1.msra.mxu0 0.0
      %3761 = vmatprep.subr.mxu0 0.0
      %3762 = vmatpush1.msra.mxu0 0.0
      %3763 = vmatprep.subr.mxu0 0.0
      %3764 = vmatpush1.msra.mxu0 0.0
      %3765 = vmatprep.subr.mxu0 0.0
      %3766 = vmatpush1.msra.mxu0 0.0
      %3767 = vmatprep.subr.mxu0 0.0
      %3768 = vmatpush1.msra.mxu0 %v3708
      %3769 = vmatprep.subr.mxu0 0.0
      %3770 = vmatpush1.msra.mxu0 %v3707
      %3771 = vmatprep.subr.mxu0 0.0
      %3772 = vmatpush1.msra.mxu0 %v3706
      %3773 = vmatprep.subr.mxu0 0.0
      %3774 = vmatpush1.msra.mxu0 %v3705
      %3775 = vmatprep.subr.mxu0 0.0
      %3776 = vmatpush1.msra.mxu0 %v3704
      %3777 = vmatprep.subr.mxu0 0.0
      %3778 = vmatpush1.msra.mxu0 %v3703
      %3779 = vmatprep.subr.mxu0 0.0
      %3780 = vmatpush1.msra.mxu0 %v3702
      %3781 = vmatprep.subr.mxu0 0.0
      %3782 = vmatpush1.msra.mxu0 %v3701
      %3783 = vmatprep.subr.mxu0 0.0
      %3784 = vmatpush2.msra.mxu0 0.0
      %3785 = vmatprep.subr.mxu0 0.0
      %3786 = vmatpush2.msra.mxu0 0.0
      %3787 = vmatprep.subr.mxu0 0.0
      %3788 = vmatpush2.msra.mxu0 0.0
      %3789 = vmatprep.subr.mxu0 0.0
      %3790 = vmatpush2.msra.mxu0 0.0
      %3791 = vmatprep.subr.mxu0 0.0
      %3792 = vmatpush2.msra.mxu0 0.0
      %3793 = vmatprep.subr.mxu0 0.0
      %3794 = vmatpush2.msra.mxu0 0.0
      %3795 = vmatprep.subr.mxu0 0.0
      %3796 = vmatpush2.msra.mxu0 0.0
      %3797 = vmatprep.subr.mxu0 0.0
      %3798 = vmatpush2.msra.mxu0 0.0
      %3799 = vmatprep.subr.mxu0 0.0
      %3800 = vmatpush2.msra.mxu0 0.0
      %3801 = vmatprep.subr.mxu0 0.0
      %3802 = vmatpush2.msra.mxu0 0.0
      %3803 = vmatprep.subr.mxu0 0.0
      %3804 = vmatpush2.msra.mxu0 0.0
      %3805 = vmatprep.subr.mxu0 0.0
      %3806 = vmatpush2.msra.mxu0 0.0
      %3807 = vmatprep.subr.mxu0 0.0
      %3808 = vmatpush2.msra.mxu0 0.0
      %3809 = vmatprep.subr.mxu0 0.0
      %3810 = vmatpush2.msra.mxu0 0.0
      %3811 = vmatprep.subr.mxu0 0.0
      %3812 = vmatpush2.msra.mxu0 0.0
      %3813 = vmatprep.subr.mxu0 0.0
      %3814 = vmatpush2.msra.mxu0 0.0
      %3815 = vmatprep.mubr.f32.mxu0 0.0
      %3816 = vmatmul.mubr.f32.gmra.mxu0 %v3710
      %v3817 = vpop.f32.mrf.mxu0
      %v3818 = vadd.f32 0.0, %v3817
      %v3819 = vpop.f32.mrf.mxu0
      %3820 = vmatprep.mubr.f32.mxu0 0.0
      %3821 = vmatmul.mubr.f32.gmra.mxu0 %v3713
      %v3822 = vpop.f32.mrf.mxu0
      %v3823 = vadd.f32 0.0, %v3822
      %v3824 = vpop.f32.mrf.mxu0
      %3825 = vmatprep.mubr.f32.mxu0 0.0
      %3826 = vmatmul.mubr.f32.gmra.mxu0 %v3716
      %v3827 = vpop.f32.mrf.mxu0
      %v3828 = vadd.f32 0.0, %v3827
      %v3829 = vpop.f32.mrf.mxu0
      %3830 = vmatprep.mubr.f32.mxu0 0.0
      %3831 = vmatmul.mubr.f32.gmra.mxu0 %v3719
      %v3832 = vpop.f32.mrf.mxu0
      %v3833 = vadd.f32 0.0, %v3832
      %v3834 = vpop.f32.mrf.mxu0
      %3835 = vmatprep.mubr.f32.mxu0 0.0
      %3836 = vmatmul.mubr.f32.gmra.mxu0 %v3722
      %v3837 = vpop.f32.mrf.mxu0
      %v3838 = vadd.f32 0.0, %v3837
      %v3839 = vpop.f32.mrf.mxu0
      %3840 = vmatprep.mubr.f32.mxu0 0.0
      %3841 = vmatmul.mubr.f32.gmra.mxu0 %v3725
      %v3842 = vpop.f32.mrf.mxu0
      %v3843 = vadd.f32 0.0, %v3842
      %v3844 = vpop.f32.mrf.mxu0
      %3845 = vmatprep.mubr.f32.mxu0 0.0
      %3846 = vmatmul.mubr.f32.gmra.mxu0 %v3728
      %v3847 = vpop.f32.mrf.mxu0
      %v3848 = vadd.f32 0.0, %v3847
      %v3849 = vpop.f32.mrf.mxu0
      %3850 = vmatprep.mubr.f32.mxu0 0.0
      %3851 = vmatmul.mubr.f32.gmra.mxu0 %v3731
      %v3852 = vpop.f32.mrf.mxu0
      %v3853 = vadd.f32 0.0, %v3852
      %v3854 = vpop.f32.mrf.mxu0
      %3855 = vmatprep.mubr.f32.mxu0 0.0
      %3856 = vmatmul.mubr.f32.gmra.mxu0 %v3734
      %v3857 = vpop.f32.mrf.mxu0
      %v3858 = vadd.f32 0.0, %v3857
      %v3859 = vpop.f32.mrf.mxu0
      %3860 = vmatprep.mubr.f32.mxu0 0.0
      %3861 = vmatmul.mubr.f32.gmra.mxu0 %v3737
      %v3862 = vpop.f32.mrf.mxu0
      %v3863 = vadd.f32 0.0, %v3862
      %v3864 = vpop.f32.mrf.mxu0
      %3865 = vmatprep.mubr.f32.mxu0 0.0
      %3866 = vmatmul.mubr.f32.gmra.mxu0 %v3740
      %v3867 = vpop.f32.mrf.mxu0
      %v3868 = vadd.f32 0.0, %v3867
      %v3869 = vpop.f32.mrf.mxu0
      %3870 = vmatprep.mubr.f32.mxu0 0.0
      %3871 = vmatmul.mubr.f32.gmra.mxu0 %v3743
      %v3872 = vpop.f32.mrf.mxu0
      %v3873 = vadd.f32 0.0, %v3872
      %v3874 = vpop.f32.mrf.mxu0
      %3875 = vmatprep.mubr.f32.mxu0 0.0
      %3876 = vmatmul.mubr.f32.gmra.mxu0 %v3746
      %v3877 = vpop.f32.mrf.mxu0
      %v3878 = vadd.f32 0.0, %v3877
      %v3879 = vpop.f32.mrf.mxu0
      %3880 = vmatprep.mubr.f32.mxu0 0.0
      %3881 = vmatmul.mubr.f32.gmra.mxu0 %v3749
      %v3882 = vpop.f32.mrf.mxu0
      %v3883 = vadd.f32 0.0, %v3882
      %v3884 = vpop.f32.mrf.mxu0
      %3885 = vdwg.mxu0
      %v3886 = vadd.f32 %v3672, %v3818
      %v3887 = vadd.f32 %v3673, %v3823
      %v3888 = vadd.f32 %v3674, %v3828
      %v3889 = vadd.f32 %v3675, %v3833
      %v3890 = vadd.f32 %v3676, %v3838
      %v3891 = vadd.f32 %v3677, %v3843
      %v3892 = vadd.f32 %v3678, %v3848
      %v3893 = vadd.f32 %v3679, %v3853
      %v3894 = vadd.f32 %v3680, %v3858
      %v3895 = vadd.f32 %v3681, %v3863
      %v3896 = vadd.f32 %v3682, %v3868
      %v3897 = vadd.f32 %v3683, %v3873
      %v3898 = vadd.f32 %v3684, %v3878
      %v3899 = vadd.f32 %v3685, %v3883
      %3900 = vst.msk [vmem:[#allocation5] sm:$0xff] %vm331, %v3886
      %3901 = vst.msk [vmem:[#allocation5 + $0x8] sm:$0xff] %vm331, %v3887
      %3902 = vst.msk [vmem:[#allocation5 + $0x10] sm:$0xff] %vm331, %v3888
      %3903 = vst.msk [vmem:[#allocation5 + $0x18] sm:$0xff] %vm331, %v3889
      %3904 = vst.msk [vmem:[#allocation5 + $0x20] sm:$0xff] %vm331, %v3890
      %3905 = vst.msk [vmem:[#allocation5 + $0x28] sm:$0xff] %vm331, %v3891
      %3906 = vst.msk [vmem:[#allocation5 + $0x30] sm:$0xff] %vm331, %v3892
      %3907 = vst.msk [vmem:[#allocation5 + $0x38] sm:$0xff] %vm331, %v3893
      %3908 = vst.msk [vmem:[#allocation5 + $0x40] sm:$0xff] %vm331, %v3894
      %3909 = vst.msk [vmem:[#allocation5 + $0x48] sm:$0xff] %vm331, %v3895
      %3910 = vst.msk [vmem:[#allocation5 + $0x50] sm:$0xff] %vm331, %v3896
      %3911 = vst.msk [vmem:[#allocation5 + $0x58] sm:$0xff] %vm331, %v3897
      %3912 = vst.msk [vmem:[#allocation5 + $0x60] sm:$0xff] %vm331, %v3898
      %3913 = vst.msk [vmem:[#allocation5 + $0x68] sm:$0xf] %vm2697, %v3899
      %v3914 = vld [vmem:[#allocation5] ss:$3 sm:$0xff]
      %v3915 = vld [vmem:[%s2700] ss:$3 sm:$0xff]
      %v3916 = vld [vmem:[%s2702] ss:$3 sm:$0xff]
      %v3917 = vld [vmem:[%s2704] ss:$3 sm:$0xff]
      %v3918 = vld [vmem:[%s2706] ss:$3 sm:$0xf]
      %v3919 = vld [vmem:[%s2726] ss:$3 sm:$0xff]
      %v3920 = vld [vmem:[%s2728] ss:$3 sm:$0xff]
      %v3921 = vld [vmem:[%s2730] ss:$3 sm:$0xff]
      %v3922 = vld [vmem:[%s2732] ss:$3 sm:$0xff]
      %v3923 = vld [vmem:[%s2734] ss:$3 sm:$0xf]
      %v3924 = vmax.f32 %v3914, %v3919
      %v3925 = vmax.f32 %v3915, %v3920
      %v3926 = vmax.f32 %v3916, %v3921
      %v3927 = vmax.f32 %v3917, %v3922
      %v3928 = vmax.f32 %v3918, %v3923
      %v3929 = vld [vmem:[%s2768] ss:$3 sm:$0xff]
      %v3930 = vld [vmem:[%s2770] ss:$3 sm:$0xff]
      %v3931 = vld [vmem:[%s2772] ss:$3 sm:$0xff]
      %v3932 = vld [vmem:[%s2774] ss:$3 sm:$0xff]
      %v3933 = vld [vmem:[%s2776] ss:$3 sm:$0xf]
      %v3934 = vmax.f32 %v3924, %v3929
      %v3935 = vmax.f32 %v3925, %v3930
      %v3936 = vmax.f32 %v3926, %v3931
      %v3937 = vmax.f32 %v3927, %v3932
      %v3938 = vmax.f32 %v3928, %v3933
      %v3939 = vld [vmem:[%s4] sm:$0x1]
      %v3941 = vlaneseq
      %v3942 = vshrl.u32 %v3941, 7
      %v3943 = vsub.s32 0, %v3942
      %v3944 = vrot.slane %v3939, %v3943
      %v3946 = vadd.f32 %v3934, %v3944
      %v3947 = vadd.f32 %v3935, %v3944
      %v3948 = vadd.f32 %v3936, %v3944
      %v3949 = vadd.f32 %v3937, %v3944
      %v3950 = vadd.f32 %v3938, %v3944
      %v3951 = vmax.f32 %v3946, 0.0
      %v3952 = vmax.f32 %v3947, 0.0
      %v3953 = vmax.f32 %v3948, 0.0
      %v3954 = vmax.f32 %v3949, 0.0
      %v3955 = vmax.f32 %v3950, 0.0
      %3956 = vst.msk [vmem:[#allocation3 + $0x8] sm:$0xff] %vm331, %v3951
      %3957 = vst.msk [vmem:[#allocation3 + $0x10] sm:$0xff] %vm331, %v3952
      %3958 = vst.msk [vmem:[#allocation3 + $0x18] sm:$0xff] %vm331, %v3953
      %3959 = vst.msk [vmem:[#allocation3 + $0x20] sm:$0xff] %vm331, %v3954
      %3960 = vst.msk [vmem:[#allocation3 + $0x28] sm:$0xf] %vm2697, %v3955
      %v3961 = vld [vmem:[#allocation3 + $0x6] sm:$0xff]
      %v3962 = vld [vmem:[#allocation3 + $0xe] sm:$0xff]
      %v3963 = vld [vmem:[#allocation3 + $0x16] sm:$0xff]
      %v3964 = vld [vmem:[#allocation3 + $0x1e] sm:$0xff]
      %v3965 = vld [vmem:[#allocation3 + $0x26] sm:$0xf]
      %v3966 = vld [vmem:[%s5] sm:$0xff]
      %v3967 = vld [vmem:[%s5 + $0x8] sm:$0xff]
      %v3968 = vld [vmem:[%s5 + $0x10] sm:$0xff]
      %v3969 = vld [vmem:[%s5 + $0x18] sm:$0xff]
      %v3970 = vld [vmem:[%s5 + $0x20] sm:$0xff]
      %v3971 = vld [vmem:[%s5 + $0x28] sm:$0xff]
      %v3972 = vld [vmem:[%s5 + $0x30] sm:$0xff]
      %v3973 = vld [vmem:[%s5 + $0x38] sm:$0xff]
      %v3974 = vld [vmem:[#allocation3 + $0x7] sm:$0xff]
      %v3975 = vld [vmem:[#allocation3 + $0xf] sm:$0xff]
      %v3976 = vld [vmem:[#allocation3 + $0x17] sm:$0xff]
      %v3977 = vld [vmem:[#allocation3 + $0x1f] sm:$0xff]
      %v3978 = vld [vmem:[#allocation3 + $0x27] sm:$0xf]
      %s3979 = scalar_lea.vmem %s5, 64
      %v3980 = vld [vmem:[%s3979] sm:$0xff]
      %v3981 = vld [vmem:[%s3979 + $0x8] sm:$0xff]
      %v3982 = vld [vmem:[%s3979 + $0x10] sm:$0xff]
      %v3983 = vld [vmem:[%s3979 + $0x18] sm:$0xff]
      %v3984 = vld [vmem:[%s3979 + $0x20] sm:$0xff]
      %v3985 = vld [vmem:[%s3979 + $0x28] sm:$0xff]
      %v3986 = vld [vmem:[%s3979 + $0x30] sm:$0xff]
      %v3987 = vld [vmem:[%s3979 + $0x38] sm:$0xff]
      %v3989 = vsel %vm331, %v3974, 0
      %v3992 = vsel %vm331, %v3975, 0
      %v3995 = vsel %vm331, %v3976, 0
      %v3998 = vsel %vm331, %v3977, 0
      %v4001 = vsel %vm331, %v3978, 0
      %4003 = vmatprep.subr.mxu0 0.0
      %4004 = vmatpush1.msra.mxu0 0.0
      %4005 = vmatprep.subr.mxu0 0.0
      %4006 = vmatpush1.msra.mxu0 0.0
      %4007 = vmatprep.subr.mxu0 0.0
      %4008 = vmatpush1.msra.mxu0 0.0
      %4009 = vmatprep.subr.mxu0 0.0
      %4010 = vmatpush1.msra.mxu0 0.0
      %4011 = vmatprep.subr.mxu0 0.0
      %4012 = vmatpush1.msra.mxu0 0.0
      %4013 = vmatprep.subr.mxu0 0.0
      %4014 = vmatpush1.msra.mxu0 0.0
      %4015 = vmatprep.subr.mxu0 0.0
      %4016 = vmatpush1.msra.mxu0 0.0
      %4017 = vmatprep.subr.mxu0 0.0
      %4018 = vmatpush1.msra.mxu0 0.0
      %4019 = vmatprep.subr.mxu0 0.0
      %4020 = vmatpush1.msra.mxu0 %v3987
      %4021 = vmatprep.subr.mxu0 0.0
      %4022 = vmatpush1.msra.mxu0 %v3986
      %4023 = vmatprep.subr.mxu0 0.0
      %4024 = vmatpush1.msra.mxu0 %v3985
      %4025 = vmatprep.subr.mxu0 0.0
      %4026 = vmatpush1.msra.mxu0 %v3984
      %4027 = vmatprep.subr.mxu0 0.0
      %4028 = vmatpush1.msra.mxu0 %v3983
      %4029 = vmatprep.subr.mxu0 0.0
      %4030 = vmatpush1.msra.mxu0 %v3982
      %4031 = vmatprep.subr.mxu0 0.0
      %4032 = vmatpush1.msra.mxu0 %v3981
      %4033 = vmatprep.subr.mxu0 0.0
      %4034 = vmatpush1.msra.mxu0 %v3980
      %4035 = vmatprep.subr.mxu0 0.0
      %4036 = vmatpush2.msra.mxu0 0.0
      %4037 = vmatprep.subr.mxu0 0.0
      %4038 = vmatpush2.msra.mxu0 0.0
      %4039 = vmatprep.subr.mxu0 0.0
      %4040 = vmatpush2.msra.mxu0 0.0
      %4041 = vmatprep.subr.mxu0 0.0
      %4042 = vmatpush2.msra.mxu0 0.0
      %4043 = vmatprep.subr.mxu0 0.0
      %4044 = vmatpush2.msra.mxu0 0.0
      %4045 = vmatprep.subr.mxu0 0.0
      %4046 = vmatpush2.msra.mxu0 0.0
      %4047 = vmatprep.subr.mxu0 0.0
      %4048 = vmatpush2.msra.mxu0 0.0
      %4049 = vmatprep.subr.mxu0 0.0
      %4050 = vmatpush2.msra.mxu0 0.0
      %4051 = vmatprep.subr.mxu0 0.0
      %4052 = vmatpush2.msra.mxu0 0.0
      %4053 = vmatprep.subr.mxu0 0.0
      %4054 = vmatpush2.msra.mxu0 0.0
      %4055 = vmatprep.subr.mxu0 0.0
      %4056 = vmatpush2.msra.mxu0 0.0
      %4057 = vmatprep.subr.mxu0 0.0
      %4058 = vmatpush2.msra.mxu0 0.0
      %4059 = vmatprep.subr.mxu0 0.0
      %4060 = vmatpush2.msra.mxu0 0.0
      %4061 = vmatprep.subr.mxu0 0.0
      %4062 = vmatpush2.msra.mxu0 0.0
      %4063 = vmatprep.subr.mxu0 0.0
      %4064 = vmatpush2.msra.mxu0 0.0
      %4065 = vmatprep.subr.mxu0 0.0
      %4066 = vmatpush2.msra.mxu0 0.0
      %4067 = vmatprep.mubr.f32.mxu0 0.0
      %4068 = vmatmul.mubr.f32.gmra.mxu0 %v3989
      %v4069 = vpop.f32.mrf.mxu0
      %v4070 = vadd.f32 0.0, %v4069
      %v4071 = vpop.f32.mrf.mxu0
      %4072 = vmatprep.mubr.f32.mxu0 0.0
      %4073 = vmatmul.mubr.f32.gmra.mxu0 %v3992
      %v4074 = vpop.f32.mrf.mxu0
      %v4075 = vadd.f32 0.0, %v4074
      %v4076 = vpop.f32.mrf.mxu0
      %4077 = vmatprep.mubr.f32.mxu0 0.0
      %4078 = vmatmul.mubr.f32.gmra.mxu0 %v3995
      %v4079 = vpop.f32.mrf.mxu0
      %v4080 = vadd.f32 0.0, %v4079
      %v4081 = vpop.f32.mrf.mxu0
      %4082 = vmatprep.mubr.f32.mxu0 0.0
      %4083 = vmatmul.mubr.f32.gmra.mxu0 %v3998
      %v4084 = vpop.f32.mrf.mxu0
      %v4085 = vadd.f32 0.0, %v4084
      %v4086 = vpop.f32.mrf.mxu0
      %4087 = vmatprep.mubr.f32.mxu0 0.0
      %4088 = vmatmul.mubr.f32.gmra.mxu0 %v4001
      %v4089 = vpop.f32.mrf.mxu0
      %v4090 = vadd.f32 0.0, %v4089
      %v4091 = vpop.f32.mrf.mxu0
      %4092 = vdwg.mxu0
      %v4094 = vsel %vm331, %v3961, 0
      %v4097 = vsel %vm331, %v3962, 0
      %v4100 = vsel %vm331, %v3963, 0
      %v4103 = vsel %vm331, %v3964, 0
      %v4106 = vsel %vm331, %v3965, 0
      %4108 = vmatprep.subr.mxu0 0.0
      %4109 = vmatpush1.msra.mxu0 0.0
      %4110 = vmatprep.subr.mxu0 0.0
      %4111 = vmatpush1.msra.mxu0 0.0
      %4112 = vmatprep.subr.mxu0 0.0
      %4113 = vmatpush1.msra.mxu0 0.0
      %4114 = vmatprep.subr.mxu0 0.0
      %4115 = vmatpush1.msra.mxu0 0.0
      %4116 = vmatprep.subr.mxu0 0.0
      %4117 = vmatpush1.msra.mxu0 0.0
      %4118 = vmatprep.subr.mxu0 0.0
      %4119 = vmatpush1.msra.mxu0 0.0
      %4120 = vmatprep.subr.mxu0 0.0
      %4121 = vmatpush1.msra.mxu0 0.0
      %4122 = vmatprep.subr.mxu0 0.0
      %4123 = vmatpush1.msra.mxu0 0.0
      %4124 = vmatprep.subr.mxu0 0.0
      %4125 = vmatpush1.msra.mxu0 %v3973
      %4126 = vmatprep.subr.mxu0 0.0
      %4127 = vmatpush1.msra.mxu0 %v3972
      %4128 = vmatprep.subr.mxu0 0.0
      %4129 = vmatpush1.msra.mxu0 %v3971
      %4130 = vmatprep.subr.mxu0 0.0
      %4131 = vmatpush1.msra.mxu0 %v3970
      %4132 = vmatprep.subr.mxu0 0.0
      %4133 = vmatpush1.msra.mxu0 %v3969
      %4134 = vmatprep.subr.mxu0 0.0
      %4135 = vmatpush1.msra.mxu0 %v3968
      %4136 = vmatprep.subr.mxu0 0.0
      %4137 = vmatpush1.msra.mxu0 %v3967
      %4138 = vmatprep.subr.mxu0 0.0
      %4139 = vmatpush1.msra.mxu0 %v3966
      %4140 = vmatprep.subr.mxu0 0.0
      %4141 = vmatpush2.msra.mxu0 0.0
      %4142 = vmatprep.subr.mxu0 0.0
      %4143 = vmatpush2.msra.mxu0 0.0
      %4144 = vmatprep.subr.mxu0 0.0
      %4145 = vmatpush2.msra.mxu0 0.0
      %4146 = vmatprep.subr.mxu0 0.0
      %4147 = vmatpush2.msra.mxu0 0.0
      %4148 = vmatprep.subr.mxu0 0.0
      %4149 = vmatpush2.msra.mxu0 0.0
      %4150 = vmatprep.subr.mxu0 0.0
      %4151 = vmatpush2.msra.mxu0 0.0
      %4152 = vmatprep.subr.mxu0 0.0
      %4153 = vmatpush2.msra.mxu0 0.0
      %4154 = vmatprep.subr.mxu0 0.0
      %4155 = vmatpush2.msra.mxu0 0.0
      %4156 = vmatprep.subr.mxu0 0.0
      %4157 = vmatpush2.msra.mxu0 0.0
      %4158 = vmatprep.subr.mxu0 0.0
      %4159 = vmatpush2.msra.mxu0 0.0
      %4160 = vmatprep.subr.mxu0 0.0
      %4161 = vmatpush2.msra.mxu0 0.0
      %4162 = vmatprep.subr.mxu0 0.0
      %4163 = vmatpush2.msra.mxu0 0.0
      %4164 = vmatprep.subr.mxu0 0.0
      %4165 = vmatpush2.msra.mxu0 0.0
      %4166 = vmatprep.subr.mxu0 0.0
      %4167 = vmatpush2.msra.mxu0 0.0
      %4168 = vmatprep.subr.mxu0 0.0
      %4169 = vmatpush2.msra.mxu0 0.0
      %4170 = vmatprep.subr.mxu0 0.0
      %4171 = vmatpush2.msra.mxu0 0.0
      %4172 = vmatprep.mubr.f32.mxu0 0.0
      %4173 = vmatmul.mubr.f32.gmra.mxu0 %v4094
      %v4174 = vpop.f32.mrf.mxu0
      %v4175 = vadd.f32 %v4070, %v4174
      %v4176 = vpop.f32.mrf.mxu0
      %4177 = vmatprep.mubr.f32.mxu0 0.0
      %4178 = vmatmul.mubr.f32.gmra.mxu0 %v4097
      %v4179 = vpop.f32.mrf.mxu0
      %v4180 = vadd.f32 %v4075, %v4179
      %v4181 = vpop.f32.mrf.mxu0
      %4182 = vmatprep.mubr.f32.mxu0 0.0
      %4183 = vmatmul.mubr.f32.gmra.mxu0 %v4100
      %v4184 = vpop.f32.mrf.mxu0
      %v4185 = vadd.f32 %v4080, %v4184
      %v4186 = vpop.f32.mrf.mxu0
      %4187 = vmatprep.mubr.f32.mxu0 0.0
      %4188 = vmatmul.mubr.f32.gmra.mxu0 %v4103
      %v4189 = vpop.f32.mrf.mxu0
      %v4190 = vadd.f32 %v4085, %v4189
      %v4191 = vpop.f32.mrf.mxu0
      %4192 = vmatprep.mubr.f32.mxu0 0.0
      %4193 = vmatmul.mubr.f32.gmra.mxu0 %v4106
      %v4194 = vpop.f32.mrf.mxu0
      %v4195 = vadd.f32 %v4090, %v4194
      %v4196 = vpop.f32.mrf.mxu0
      %4197 = vdwg.mxu0
      %v4198 = vld [vmem:[#allocation3 + $0x8] sm:$0xff]
      %v4199 = vld [vmem:[#allocation3 + $0x10] sm:$0xff]
      %v4200 = vld [vmem:[#allocation3 + $0x18] sm:$0xff]
      %v4201 = vld [vmem:[#allocation3 + $0x20] sm:$0xff]
      %v4202 = vld [vmem:[#allocation3 + $0x28] sm:$0xf]
      %s4203 = scalar_lea.vmem %s5, 128
      %v4204 = vld [vmem:[%s4203] sm:$0xff]
      %v4205 = vld [vmem:[%s4203 + $0x8] sm:$0xff]
      %v4206 = vld [vmem:[%s4203 + $0x10] sm:$0xff]
      %v4207 = vld [vmem:[%s4203 + $0x18] sm:$0xff]
      %v4208 = vld [vmem:[%s4203 + $0x20] sm:$0xff]
      %v4209 = vld [vmem:[%s4203 + $0x28] sm:$0xff]
      %v4210 = vld [vmem:[%s4203 + $0x30] sm:$0xff]
      %v4211 = vld [vmem:[%s4203 + $0x38] sm:$0xff]
      %v4213 = vsel %vm331, %v4198, 0
      %v4216 = vsel %vm331, %v4199, 0
      %v4219 = vsel %vm331, %v4200, 0
      %v4222 = vsel %vm331, %v4201, 0
      %v4225 = vsel %vm331, %v4202, 0
      %4227 = vmatprep.subr.mxu0 0.0
      %4228 = vmatpush1.msra.mxu0 0.0
      %4229 = vmatprep.subr.mxu0 0.0
      %4230 = vmatpush1.msra.mxu0 0.0
      %4231 = vmatprep.subr.mxu0 0.0
      %4232 = vmatpush1.msra.mxu0 0.0
      %4233 = vmatprep.subr.mxu0 0.0
      %4234 = vmatpush1.msra.mxu0 0.0
      %4235 = vmatprep.subr.mxu0 0.0
      %4236 = vmatpush1.msra.mxu0 0.0
      %4237 = vmatprep.subr.mxu0 0.0
      %4238 = vmatpush1.msra.mxu0 0.0
      %4239 = vmatprep.subr.mxu0 0.0
      %4240 = vmatpush1.msra.mxu0 0.0
      %4241 = vmatprep.subr.mxu0 0.0
      %4242 = vmatpush1.msra.mxu0 0.0
      %4243 = vmatprep.subr.mxu0 0.0
      %4244 = vmatpush1.msra.mxu0 %v4211
      %4245 = vmatprep.subr.mxu0 0.0
      %4246 = vmatpush1.msra.mxu0 %v4210
      %4247 = vmatprep.subr.mxu0 0.0
      %4248 = vmatpush1.msra.mxu0 %v4209
      %4249 = vmatprep.subr.mxu0 0.0
      %4250 = vmatpush1.msra.mxu0 %v4208
      %4251 = vmatprep.subr.mxu0 0.0
      %4252 = vmatpush1.msra.mxu0 %v4207
      %4253 = vmatprep.subr.mxu0 0.0
      %4254 = vmatpush1.msra.mxu0 %v4206
      %4255 = vmatprep.subr.mxu0 0.0
      %4256 = vmatpush1.msra.mxu0 %v4205
      %4257 = vmatprep.subr.mxu0 0.0
      %4258 = vmatpush1.msra.mxu0 %v4204
      %4259 = vmatprep.subr.mxu0 0.0
      %4260 = vmatpush2.msra.mxu0 0.0
      %4261 = vmatprep.subr.mxu0 0.0
      %4262 = vmatpush2.msra.mxu0 0.0
      %4263 = vmatprep.subr.mxu0 0.0
      %4264 = vmatpush2.msra.mxu0 0.0
      %4265 = vmatprep.subr.mxu0 0.0
      %4266 = vmatpush2.msra.mxu0 0.0
      %4267 = vmatprep.subr.mxu0 0.0
      %4268 = vmatpush2.msra.mxu0 0.0
      %4269 = vmatprep.subr.mxu0 0.0
      %4270 = vmatpush2.msra.mxu0 0.0
      %4271 = vmatprep.subr.mxu0 0.0
      %4272 = vmatpush2.msra.mxu0 0.0
      %4273 = vmatprep.subr.mxu0 0.0
      %4274 = vmatpush2.msra.mxu0 0.0
      %4275 = vmatprep.subr.mxu0 0.0
      %4276 = vmatpush2.msra.mxu0 0.0
      %4277 = vmatprep.subr.mxu0 0.0
      %4278 = vmatpush2.msra.mxu0 0.0
      %4279 = vmatprep.subr.mxu0 0.0
      %4280 = vmatpush2.msra.mxu0 0.0
      %4281 = vmatprep.subr.mxu0 0.0
      %4282 = vmatpush2.msra.mxu0 0.0
      %4283 = vmatprep.subr.mxu0 0.0
      %4284 = vmatpush2.msra.mxu0 0.0
      %4285 = vmatprep.subr.mxu0 0.0
      %4286 = vmatpush2.msra.mxu0 0.0
      %4287 = vmatprep.subr.mxu0 0.0
      %4288 = vmatpush2.msra.mxu0 0.0
      %4289 = vmatprep.subr.mxu0 0.0
      %4290 = vmatpush2.msra.mxu0 0.0
      %4291 = vmatprep.mubr.f32.mxu0 0.0
      %4292 = vmatmul.mubr.f32.gmra.mxu0 %v4213
      %v4293 = vpop.f32.mrf.mxu0
      %v4294 = vadd.f32 0.0, %v4293
      %v4295 = vpop.f32.mrf.mxu0
      %4296 = vmatprep.mubr.f32.mxu0 0.0
      %4297 = vmatmul.mubr.f32.gmra.mxu0 %v4216
      %v4298 = vpop.f32.mrf.mxu0
      %v4299 = vadd.f32 0.0, %v4298
      %v4300 = vpop.f32.mrf.mxu0
      %4301 = vmatprep.mubr.f32.mxu0 0.0
      %4302 = vmatmul.mubr.f32.gmra.mxu0 %v4219
      %v4303 = vpop.f32.mrf.mxu0
      %v4304 = vadd.f32 0.0, %v4303
      %v4305 = vpop.f32.mrf.mxu0
      %4306 = vmatprep.mubr.f32.mxu0 0.0
      %4307 = vmatmul.mubr.f32.gmra.mxu0 %v4222
      %v4308 = vpop.f32.mrf.mxu0
      %v4309 = vadd.f32 0.0, %v4308
      %v4310 = vpop.f32.mrf.mxu0
      %4311 = vmatprep.mubr.f32.mxu0 0.0
      %4312 = vmatmul.mubr.f32.gmra.mxu0 %v4225
      %v4313 = vpop.f32.mrf.mxu0
      %v4314 = vadd.f32 0.0, %v4313
      %v4315 = vpop.f32.mrf.mxu0
      %4316 = vdwg.mxu0
      %v4317 = vadd.f32 %v4175, %v4294
      %v4318 = vadd.f32 %v4180, %v4299
      %v4319 = vadd.f32 %v4185, %v4304
      %v4320 = vadd.f32 %v4190, %v4309
      %v4321 = vadd.f32 %v4195, %v4314
      %v4322 = vld [vmem:[#allocation3 + $0x9] sm:$0xff]
      %v4323 = vld [vmem:[#allocation3 + $0x11] sm:$0xff]
      %v4324 = vld [vmem:[#allocation3 + $0x19] sm:$0xff]
      %v4325 = vld [vmem:[#allocation3 + $0x21] sm:$0xff]
      %v4326 = vld [vmem:[#allocation3 + $0x29] sm:$0xf]
      %s4327 = scalar_lea.vmem %s5, 192
      %v4328 = vld [vmem:[%s4327] sm:$0xff]
      %v4329 = vld [vmem:[%s4327 + $0x8] sm:$0xff]
      %v4330 = vld [vmem:[%s4327 + $0x10] sm:$0xff]
      %v4331 = vld [vmem:[%s4327 + $0x18] sm:$0xff]
      %v4332 = vld [vmem:[%s4327 + $0x20] sm:$0xff]
      %v4333 = vld [vmem:[%s4327 + $0x28] sm:$0xff]
      %v4334 = vld [vmem:[%s4327 + $0x30] sm:$0xff]
      %v4335 = vld [vmem:[%s4327 + $0x38] sm:$0xff]
      %v4337 = vsel %vm331, %v4322, 0
      %v4340 = vsel %vm331, %v4323, 0
      %v4343 = vsel %vm331, %v4324, 0
      %v4346 = vsel %vm331, %v4325, 0
      %v4349 = vsel %vm331, %v4326, 0
      %4351 = vmatprep.subr.mxu0 0.0
      %4352 = vmatpush1.msra.mxu0 0.0
      %4353 = vmatprep.subr.mxu0 0.0
      %4354 = vmatpush1.msra.mxu0 0.0
      %4355 = vmatprep.subr.mxu0 0.0
      %4356 = vmatpush1.msra.mxu0 0.0
      %4357 = vmatprep.subr.mxu0 0.0
      %4358 = vmatpush1.msra.mxu0 0.0
      %4359 = vmatprep.subr.mxu0 0.0
      %4360 = vmatpush1.msra.mxu0 0.0
      %4361 = vmatprep.subr.mxu0 0.0
      %4362 = vmatpush1.msra.mxu0 0.0
      %4363 = vmatprep.subr.mxu0 0.0
      %4364 = vmatpush1.msra.mxu0 0.0
      %4365 = vmatprep.subr.mxu0 0.0
      %4366 = vmatpush1.msra.mxu0 0.0
      %4367 = vmatprep.subr.mxu0 0.0
      %4368 = vmatpush1.msra.mxu0 %v4335
      %4369 = vmatprep.subr.mxu0 0.0
      %4370 = vmatpush1.msra.mxu0 %v4334
      %4371 = vmatprep.subr.mxu0 0.0
      %4372 = vmatpush1.msra.mxu0 %v4333
      %4373 = vmatprep.subr.mxu0 0.0
      %4374 = vmatpush1.msra.mxu0 %v4332
      %4375 = vmatprep.subr.mxu0 0.0
      %4376 = vmatpush1.msra.mxu0 %v4331
      %4377 = vmatprep.subr.mxu0 0.0
      %4378 = vmatpush1.msra.mxu0 %v4330
      %4379 = vmatprep.subr.mxu0 0.0
      %4380 = vmatpush1.msra.mxu0 %v4329
      %4381 = vmatprep.subr.mxu0 0.0
      %4382 = vmatpush1.msra.mxu0 %v4328
      %4383 = vmatprep.subr.mxu0 0.0
      %4384 = vmatpush2.msra.mxu0 0.0
      %4385 = vmatprep.subr.mxu0 0.0
      %4386 = vmatpush2.msra.mxu0 0.0
      %4387 = vmatprep.subr.mxu0 0.0
      %4388 = vmatpush2.msra.mxu0 0.0
      %4389 = vmatprep.subr.mxu0 0.0
      %4390 = vmatpush2.msra.mxu0 0.0
      %4391 = vmatprep.subr.mxu0 0.0
      %4392 = vmatpush2.msra.mxu0 0.0
      %4393 = vmatprep.subr.mxu0 0.0
      %4394 = vmatpush2.msra.mxu0 0.0
      %4395 = vmatprep.subr.mxu0 0.0
      %4396 = vmatpush2.msra.mxu0 0.0
      %4397 = vmatprep.subr.mxu0 0.0
      %4398 = vmatpush2.msra.mxu0 0.0
      %4399 = vmatprep.subr.mxu0 0.0
      %4400 = vmatpush2.msra.mxu0 0.0
      %4401 = vmatprep.subr.mxu0 0.0
      %4402 = vmatpush2.msra.mxu0 0.0
      %4403 = vmatprep.subr.mxu0 0.0
      %4404 = vmatpush2.msra.mxu0 0.0
      %4405 = vmatprep.subr.mxu0 0.0
      %4406 = vmatpush2.msra.mxu0 0.0
      %4407 = vmatprep.subr.mxu0 0.0
      %4408 = vmatpush2.msra.mxu0 0.0
      %4409 = vmatprep.subr.mxu0 0.0
      %4410 = vmatpush2.msra.mxu0 0.0
      %4411 = vmatprep.subr.mxu0 0.0
      %4412 = vmatpush2.msra.mxu0 0.0
      %4413 = vmatprep.subr.mxu0 0.0
      %4414 = vmatpush2.msra.mxu0 0.0
      %4415 = vmatprep.mubr.f32.mxu0 0.0
      %4416 = vmatmul.mubr.f32.gmra.mxu0 %v4337
      %v4417 = vpop.f32.mrf.mxu0
      %v4418 = vadd.f32 0.0, %v4417
      %v4419 = vpop.f32.mrf.mxu0
      %4420 = vmatprep.mubr.f32.mxu0 0.0
      %4421 = vmatmul.mubr.f32.gmra.mxu0 %v4340
      %v4422 = vpop.f32.mrf.mxu0
      %v4423 = vadd.f32 0.0, %v4422
      %v4424 = vpop.f32.mrf.mxu0
      %4425 = vmatprep.mubr.f32.mxu0 0.0
      %4426 = vmatmul.mubr.f32.gmra.mxu0 %v4343
      %v4427 = vpop.f32.mrf.mxu0
      %v4428 = vadd.f32 0.0, %v4427
      %v4429 = vpop.f32.mrf.mxu0
      %4430 = vmatprep.mubr.f32.mxu0 0.0
      %4431 = vmatmul.mubr.f32.gmra.mxu0 %v4346
      %v4432 = vpop.f32.mrf.mxu0
      %v4433 = vadd.f32 0.0, %v4432
      %v4434 = vpop.f32.mrf.mxu0
      %4435 = vmatprep.mubr.f32.mxu0 0.0
      %4436 = vmatmul.mubr.f32.gmra.mxu0 %v4349
      %v4437 = vpop.f32.mrf.mxu0
      %v4438 = vadd.f32 0.0, %v4437
      %v4439 = vpop.f32.mrf.mxu0
      %4440 = vdwg.mxu0
      %v4441 = vadd.f32 %v4317, %v4418
      %v4442 = vadd.f32 %v4318, %v4423
      %v4443 = vadd.f32 %v4319, %v4428
      %v4444 = vadd.f32 %v4320, %v4433
      %v4445 = vadd.f32 %v4321, %v4438
      %v4446 = vld [vmem:[#allocation3 + $0xa] sm:$0xff]
      %v4447 = vld [vmem:[#allocation3 + $0x12] sm:$0xff]
      %v4448 = vld [vmem:[#allocation3 + $0x1a] sm:$0xff]
      %v4449 = vld [vmem:[#allocation3 + $0x22] sm:$0xff]
      %v4450 = vld [vmem:[#allocation3 + $0x2a] sm:$0xf]
      %s4451 = scalar_lea.vmem %s5, 256
      %v4452 = vld [vmem:[%s4451] sm:$0xff]
      %v4453 = vld [vmem:[%s4451 + $0x8] sm:$0xff]
      %v4454 = vld [vmem:[%s4451 + $0x10] sm:$0xff]
      %v4455 = vld [vmem:[%s4451 + $0x18] sm:$0xff]
      %v4456 = vld [vmem:[%s4451 + $0x20] sm:$0xff]
      %v4457 = vld [vmem:[%s4451 + $0x28] sm:$0xff]
      %v4458 = vld [vmem:[%s4451 + $0x30] sm:$0xff]
      %v4459 = vld [vmem:[%s4451 + $0x38] sm:$0xff]
      %v4461 = vsel %vm331, %v4446, 0
      %v4464 = vsel %vm331, %v4447, 0
      %v4467 = vsel %vm331, %v4448, 0
      %v4470 = vsel %vm331, %v4449, 0
      %v4473 = vsel %vm331, %v4450, 0
      %4475 = vmatprep.subr.mxu0 0.0
      %4476 = vmatpush1.msra.mxu0 0.0
      %4477 = vmatprep.subr.mxu0 0.0
      %4478 = vmatpush1.msra.mxu0 0.0
      %4479 = vmatprep.subr.mxu0 0.0
      %4480 = vmatpush1.msra.mxu0 0.0
      %4481 = vmatprep.subr.mxu0 0.0
      %4482 = vmatpush1.msra.mxu0 0.0
      %4483 = vmatprep.subr.mxu0 0.0
      %4484 = vmatpush1.msra.mxu0 0.0
      %4485 = vmatprep.subr.mxu0 0.0
      %4486 = vmatpush1.msra.mxu0 0.0
      %4487 = vmatprep.subr.mxu0 0.0
      %4488 = vmatpush1.msra.mxu0 0.0
      %4489 = vmatprep.subr.mxu0 0.0
      %4490 = vmatpush1.msra.mxu0 0.0
      %4491 = vmatprep.subr.mxu0 0.0
      %4492 = vmatpush1.msra.mxu0 %v4459
      %4493 = vmatprep.subr.mxu0 0.0
      %4494 = vmatpush1.msra.mxu0 %v4458
      %4495 = vmatprep.subr.mxu0 0.0
      %4496 = vmatpush1.msra.mxu0 %v4457
      %4497 = vmatprep.subr.mxu0 0.0
      %4498 = vmatpush1.msra.mxu0 %v4456
      %4499 = vmatprep.subr.mxu0 0.0
      %4500 = vmatpush1.msra.mxu0 %v4455
      %4501 = vmatprep.subr.mxu0 0.0
      %4502 = vmatpush1.msra.mxu0 %v4454
      %4503 = vmatprep.subr.mxu0 0.0
      %4504 = vmatpush1.msra.mxu0 %v4453
      %4505 = vmatprep.subr.mxu0 0.0
      %4506 = vmatpush1.msra.mxu0 %v4452
      %4507 = vmatprep.subr.mxu0 0.0
      %4508 = vmatpush2.msra.mxu0 0.0
      %4509 = vmatprep.subr.mxu0 0.0
      %4510 = vmatpush2.msra.mxu0 0.0
      %4511 = vmatprep.subr.mxu0 0.0
      %4512 = vmatpush2.msra.mxu0 0.0
      %4513 = vmatprep.subr.mxu0 0.0
      %4514 = vmatpush2.msra.mxu0 0.0
      %4515 = vmatprep.subr.mxu0 0.0
      %4516 = vmatpush2.msra.mxu0 0.0
      %4517 = vmatprep.subr.mxu0 0.0
      %4518 = vmatpush2.msra.mxu0 0.0
      %4519 = vmatprep.subr.mxu0 0.0
      %4520 = vmatpush2.msra.mxu0 0.0
      %4521 = vmatprep.subr.mxu0 0.0
      %4522 = vmatpush2.msra.mxu0 0.0
      %4523 = vmatprep.subr.mxu0 0.0
      %4524 = vmatpush2.msra.mxu0 0.0
      %4525 = vmatprep.subr.mxu0 0.0
      %4526 = vmatpush2.msra.mxu0 0.0
      %4527 = vmatprep.subr.mxu0 0.0
      %4528 = vmatpush2.msra.mxu0 0.0
      %4529 = vmatprep.subr.mxu0 0.0
      %4530 = vmatpush2.msra.mxu0 0.0
      %4531 = vmatprep.subr.mxu0 0.0
      %4532 = vmatpush2.msra.mxu0 0.0
      %4533 = vmatprep.subr.mxu0 0.0
      %4534 = vmatpush2.msra.mxu0 0.0
      %4535 = vmatprep.subr.mxu0 0.0
      %4536 = vmatpush2.msra.mxu0 0.0
      %4537 = vmatprep.subr.mxu0 0.0
      %4538 = vmatpush2.msra.mxu0 0.0
      %4539 = vmatprep.mubr.f32.mxu0 0.0
      %4540 = vmatmul.mubr.f32.gmra.mxu0 %v4461
      %v4541 = vpop.f32.mrf.mxu0
      %v4542 = vadd.f32 0.0, %v4541
      %v4543 = vpop.f32.mrf.mxu0
      %4544 = vmatprep.mubr.f32.mxu0 0.0
      %4545 = vmatmul.mubr.f32.gmra.mxu0 %v4464
      %v4546 = vpop.f32.mrf.mxu0
      %v4547 = vadd.f32 0.0, %v4546
      %v4548 = vpop.f32.mrf.mxu0
      %4549 = vmatprep.mubr.f32.mxu0 0.0
      %4550 = vmatmul.mubr.f32.gmra.mxu0 %v4467
      %v4551 = vpop.f32.mrf.mxu0
      %v4552 = vadd.f32 0.0, %v4551
      %v4553 = vpop.f32.mrf.mxu0
      %4554 = vmatprep.mubr.f32.mxu0 0.0
      %4555 = vmatmul.mubr.f32.gmra.mxu0 %v4470
      %v4556 = vpop.f32.mrf.mxu0
      %v4557 = vadd.f32 0.0, %v4556
      %v4558 = vpop.f32.mrf.mxu0
      %4559 = vmatprep.mubr.f32.mxu0 0.0
      %4560 = vmatmul.mubr.f32.gmra.mxu0 %v4473
      %v4561 = vpop.f32.mrf.mxu0
      %v4562 = vadd.f32 0.0, %v4561
      %v4563 = vpop.f32.mrf.mxu0
      %4564 = vdwg.mxu0
      %v4565 = vadd.f32 %v4441, %v4542
      %v4566 = vadd.f32 %v4442, %v4547
      %v4567 = vadd.f32 %v4443, %v4552
      %v4568 = vadd.f32 %v4444, %v4557
      %v4569 = vadd.f32 %v4445, %v4562
      %4570 = vst [vmem:[#allocation6] sm:$0xff] %v4565
      %4571 = vst [vmem:[#allocation6 + $0x8] sm:$0xff] %v4566
      %4572 = vst [vmem:[#allocation6 + $0x10] sm:$0xff] %v4567
      %4573 = vst [vmem:[#allocation6 + $0x18] sm:$0xff] %v4568
      %4574 = vst [vmem:[#allocation6 + $0x20] sm:$0xf] %v4569
      %v4575 = vld [vmem:[#allocation6] ss:$3 sm:$0xff]
      %s4576 = scalar_lea.vmem [#allocation6], 24
      %v4577 = vld [vmem:[%s4576] ss:$3 sm:$0xf]
      %s4578 = scalar_lea.vmem [#allocation6], 1
      %v4579 = vld [vmem:[%s4578] ss:$3 sm:$0xff]
      %s4580 = scalar_lea.vmem [#allocation6], 25
      %v4581 = vld [vmem:[%s4580] ss:$3 sm:$0xf]
      %v4582 = vmax.f32 %v4575, %v4579
      %v4583 = vmax.f32 %v4577, %v4581
      %s4584 = scalar_lea.vmem [#allocation6], 2
      %v4585 = vld [vmem:[%s4584] ss:$3 sm:$0xff]
      %s4586 = scalar_lea.vmem [#allocation6], 26
      %v4587 = vld [vmem:[%s4586] ss:$3 sm:$0xf]
      %v4588 = vmax.f32 %v4582, %v4585
      %v4589 = vmax.f32 %v4583, %v4587
      %v4590 = vld [vmem:[%s6] sm:$0x1]
      %v4592 = vlaneseq
      %v4593 = vshrl.u32 %v4592, 7
      %v4594 = vsub.s32 0, %v4593
      %v4595 = vrot.slane %v4590, %v4594
      %v4597 = vadd.f32 %v4588, %v4595
      %v4598 = vadd.f32 %v4589, %v4595
      %v4599 = vmax.f32 %v4597, 0.0
      %v4600 = vmax.f32 %v4598, 0.0
      %4601 = vst [vmem:[#allocation4 + $0x8] sm:$0xff] %v4599
      %4602 = vst [vmem:[#allocation4 + $0x10] sm:$0xf] %v4600
      %v4603 = vld [vmem:[#allocation4 + $0x6] sm:$0xff]
      %v4604 = vld [vmem:[#allocation4 + $0xe] sm:$0xf]
      %v4605 = vld [vmem:[%s7] sm:$0xff]
      %v4606 = vld [vmem:[%s7 + $0x8] sm:$0xff]
      %v4607 = vld [vmem:[%s7 + $0x10] sm:$0xff]
      %v4608 = vld [vmem:[%s7 + $0x18] sm:$0xff]
      %v4609 = vld [vmem:[%s7 + $0x20] sm:$0xff]
      %v4610 = vld [vmem:[%s7 + $0x28] sm:$0xff]
      %v4611 = vld [vmem:[%s7 + $0x30] sm:$0xff]
      %v4612 = vld [vmem:[%s7 + $0x38] sm:$0xff]
      %v4613 = vld [vmem:[%s7 + $0x40] sm:$0xff]
      %v4614 = vld [vmem:[%s7 + $0x48] sm:$0xff]
      %v4615 = vld [vmem:[%s7 + $0x50] sm:$0xff]
      %v4616 = vld [vmem:[%s7 + $0x58] sm:$0xff]
      %v4617 = vld [vmem:[%s7 + $0x60] sm:$0xff]
      %v4618 = vld [vmem:[%s7 + $0x68] sm:$0xff]
      %v4619 = vld [vmem:[%s7 + $0x70] sm:$0xff]
      %v4620 = vld [vmem:[%s7 + $0x78] sm:$0xff]
      %v4621 = vld [vmem:[#allocation4 + $0x7] sm:$0xff]
      %v4622 = vld [vmem:[#allocation4 + $0xf] sm:$0xf]
      %s4623 = scalar_lea.vmem %s7, 128
      %v4624 = vld [vmem:[%s4623] sm:$0xff]
      %v4625 = vld [vmem:[%s4623 + $0x8] sm:$0xff]
      %v4626 = vld [vmem:[%s4623 + $0x10] sm:$0xff]
      %v4627 = vld [vmem:[%s4623 + $0x18] sm:$0xff]
      %v4628 = vld [vmem:[%s4623 + $0x20] sm:$0xff]
      %v4629 = vld [vmem:[%s4623 + $0x28] sm:$0xff]
      %v4630 = vld [vmem:[%s4623 + $0x30] sm:$0xff]
      %v4631 = vld [vmem:[%s4623 + $0x38] sm:$0xff]
      %v4632 = vld [vmem:[%s4623 + $0x40] sm:$0xff]
      %v4633 = vld [vmem:[%s4623 + $0x48] sm:$0xff]
      %v4634 = vld [vmem:[%s4623 + $0x50] sm:$0xff]
      %v4635 = vld [vmem:[%s4623 + $0x58] sm:$0xff]
      %v4636 = vld [vmem:[%s4623 + $0x60] sm:$0xff]
      %v4637 = vld [vmem:[%s4623 + $0x68] sm:$0xff]
      %v4638 = vld [vmem:[%s4623 + $0x70] sm:$0xff]
      %v4639 = vld [vmem:[%s4623 + $0x78] sm:$0xff]
      %4640 = vmatprep.subr.mxu0 0.0
      %4641 = vmatpush1.msra.mxu0 %v4639
      %4642 = vmatprep.subr.mxu0 0.0
      %4643 = vmatpush1.msra.mxu0 %v4638
      %4644 = vmatprep.subr.mxu0 0.0
      %4645 = vmatpush1.msra.mxu0 %v4637
      %4646 = vmatprep.subr.mxu0 0.0
      %4647 = vmatpush1.msra.mxu0 %v4636
      %4648 = vmatprep.subr.mxu0 0.0
      %4649 = vmatpush1.msra.mxu0 %v4635
      %4650 = vmatprep.subr.mxu0 0.0
      %4651 = vmatpush1.msra.mxu0 %v4634
      %4652 = vmatprep.subr.mxu0 0.0
      %4653 = vmatpush1.msra.mxu0 %v4633
      %4654 = vmatprep.subr.mxu0 0.0
      %4655 = vmatpush1.msra.mxu0 %v4632
      %4656 = vmatprep.subr.mxu0 0.0
      %4657 = vmatpush1.msra.mxu0 %v4631
      %4658 = vmatprep.subr.mxu0 0.0
      %4659 = vmatpush1.msra.mxu0 %v4630
      %4660 = vmatprep.subr.mxu0 0.0
      %4661 = vmatpush1.msra.mxu0 %v4629
      %4662 = vmatprep.subr.mxu0 0.0
      %4663 = vmatpush1.msra.mxu0 %v4628
      %4664 = vmatprep.subr.mxu0 0.0
      %4665 = vmatpush1.msra.mxu0 %v4627
      %4666 = vmatprep.subr.mxu0 0.0
      %4667 = vmatpush1.msra.mxu0 %v4626
      %4668 = vmatprep.subr.mxu0 0.0
      %4669 = vmatpush1.msra.mxu0 %v4625
      %4670 = vmatprep.subr.mxu0 0.0
      %4671 = vmatpush1.msra.mxu0 %v4624
      %4672 = vmatprep.subr.mxu0 0.0
      %4673 = vmatpush2.msra.mxu0 0.0
      %4674 = vmatprep.subr.mxu0 0.0
      %4675 = vmatpush2.msra.mxu0 0.0
      %4676 = vmatprep.subr.mxu0 0.0
      %4677 = vmatpush2.msra.mxu0 0.0
      %4678 = vmatprep.subr.mxu0 0.0
      %4679 = vmatpush2.msra.mxu0 0.0
      %4680 = vmatprep.subr.mxu0 0.0
      %4681 = vmatpush2.msra.mxu0 0.0
      %4682 = vmatprep.subr.mxu0 0.0
      %4683 = vmatpush2.msra.mxu0 0.0
      %4684 = vmatprep.subr.mxu0 0.0
      %4685 = vmatpush2.msra.mxu0 0.0
      %4686 = vmatprep.subr.mxu0 0.0
      %4687 = vmatpush2.msra.mxu0 0.0
      %4688 = vmatprep.subr.mxu0 0.0
      %4689 = vmatpush2.msra.mxu0 0.0
      %4690 = vmatprep.subr.mxu0 0.0
      %4691 = vmatpush2.msra.mxu0 0.0
      %4692 = vmatprep.subr.mxu0 0.0
      %4693 = vmatpush2.msra.mxu0 0.0
      %4694 = vmatprep.subr.mxu0 0.0
      %4695 = vmatpush2.msra.mxu0 0.0
      %4696 = vmatprep.subr.mxu0 0.0
      %4697 = vmatpush2.msra.mxu0 0.0
      %4698 = vmatprep.subr.mxu0 0.0
      %4699 = vmatpush2.msra.mxu0 0.0
      %4700 = vmatprep.subr.mxu0 0.0
      %4701 = vmatpush2.msra.mxu0 0.0
      %4702 = vmatprep.subr.mxu0 0.0
      %4703 = vmatpush2.msra.mxu0 0.0
      %4704 = vmatprep.mubr.f32.mxu0 0.0
      %4705 = vmatmul.mubr.f32.gmra.mxu0 %v4621
      %v4706 = vpop.f32.mrf.mxu0
      %v4707 = vadd.f32 0.0, %v4706
      %v4708 = vpop.f32.mrf.mxu0
      %4709 = vmatprep.mubr.f32.mxu0 0.0
      %4710 = vmatmul.mubr.f32.gmra.mxu0 %v4622
      %v4711 = vpop.f32.mrf.mxu0
      %v4712 = vadd.f32 0.0, %v4711
      %v4713 = vpop.f32.mrf.mxu0
      %4714 = vdwg.mxu0
      %4715 = vmatprep.subr.mxu0 0.0
      %4716 = vmatpush1.msra.mxu0 %v4620
      %4717 = vmatprep.subr.mxu0 0.0
      %4718 = vmatpush1.msra.mxu0 %v4619
      %4719 = vmatprep.subr.mxu0 0.0
      %4720 = vmatpush1.msra.mxu0 %v4618
      %4721 = vmatprep.subr.mxu0 0.0
      %4722 = vmatpush1.msra.mxu0 %v4617
      %4723 = vmatprep.subr.mxu0 0.0
      %4724 = vmatpush1.msra.mxu0 %v4616
      %4725 = vmatprep.subr.mxu0 0.0
      %4726 = vmatpush1.msra.mxu0 %v4615
      %4727 = vmatprep.subr.mxu0 0.0
      %4728 = vmatpush1.msra.mxu0 %v4614
      %4729 = vmatprep.subr.mxu0 0.0
      %4730 = vmatpush1.msra.mxu0 %v4613
      %4731 = vmatprep.subr.mxu0 0.0
      %4732 = vmatpush1.msra.mxu0 %v4612
      %4733 = vmatprep.subr.mxu0 0.0
      %4734 = vmatpush1.msra.mxu0 %v4611
      %4735 = vmatprep.subr.mxu0 0.0
      %4736 = vmatpush1.msra.mxu0 %v4610
      %4737 = vmatprep.subr.mxu0 0.0
      %4738 = vmatpush1.msra.mxu0 %v4609
      %4739 = vmatprep.subr.mxu0 0.0
      %4740 = vmatpush1.msra.mxu0 %v4608
      %4741 = vmatprep.subr.mxu0 0.0
      %4742 = vmatpush1.msra.mxu0 %v4607
      %4743 = vmatprep.subr.mxu0 0.0
      %4744 = vmatpush1.msra.mxu0 %v4606
      %4745 = vmatprep.subr.mxu0 0.0
      %4746 = vmatpush1.msra.mxu0 %v4605
      %4747 = vmatprep.subr.mxu0 0.0
      %4748 = vmatpush2.msra.mxu0 0.0
      %4749 = vmatprep.subr.mxu0 0.0
      %4750 = vmatpush2.msra.mxu0 0.0
      %4751 = vmatprep.subr.mxu0 0.0
      %4752 = vmatpush2.msra.mxu0 0.0
      %4753 = vmatprep.subr.mxu0 0.0
      %4754 = vmatpush2.msra.mxu0 0.0
      %4755 = vmatprep.subr.mxu0 0.0
      %4756 = vmatpush2.msra.mxu0 0.0
      %4757 = vmatprep.subr.mxu0 0.0
      %4758 = vmatpush2.msra.mxu0 0.0
      %4759 = vmatprep.subr.mxu0 0.0
      %4760 = vmatpush2.msra.mxu0 0.0
      %4761 = vmatprep.subr.mxu0 0.0
      %4762 = vmatpush2.msra.mxu0 0.0
      %4763 = vmatprep.subr.mxu0 0.0
      %4764 = vmatpush2.msra.mxu0 0.0
      %4765 = vmatprep.subr.mxu0 0.0
      %4766 = vmatpush2.msra.mxu0 0.0
      %4767 = vmatprep.subr.mxu0 0.0
      %4768 = vmatpush2.msra.mxu0 0.0
      %4769 = vmatprep.subr.mxu0 0.0
      %4770 = vmatpush2.msra.mxu0 0.0
      %4771 = vmatprep.subr.mxu0 0.0
      %4772 = vmatpush2.msra.mxu0 0.0
      %4773 = vmatprep.subr.mxu0 0.0
      %4774 = vmatpush2.msra.mxu0 0.0
      %4775 = vmatprep.subr.mxu0 0.0
      %4776 = vmatpush2.msra.mxu0 0.0
      %4777 = vmatprep.subr.mxu0 0.0
      %4778 = vmatpush2.msra.mxu0 0.0
      %4779 = vmatprep.mubr.f32.mxu0 0.0
      %4780 = vmatmul.mubr.f32.gmra.mxu0 %v4603
      %v4781 = vpop.f32.mrf.mxu0
      %v4782 = vadd.f32 %v4707, %v4781
      %v4783 = vpop.f32.mrf.mxu0
      %4784 = vmatprep.mubr.f32.mxu0 0.0
      %4785 = vmatmul.mubr.f32.gmra.mxu0 %v4604
      %v4786 = vpop.f32.mrf.mxu0
      %v4787 = vadd.f32 %v4712, %v4786
      %v4788 = vpop.f32.mrf.mxu0
      %4789 = vdwg.mxu0
      %v4790 = vld [vmem:[#allocation4 + $0x8] sm:$0xff]
      %v4791 = vld [vmem:[#allocation4 + $0x10] sm:$0xf]
      %s4792 = scalar_lea.vmem %s7, 256
      %v4793 = vld [vmem:[%s4792] sm:$0xff]
      %v4794 = vld [vmem:[%s4792 + $0x8] sm:$0xff]
      %v4795 = vld [vmem:[%s4792 + $0x10] sm:$0xff]
      %v4796 = vld [vmem:[%s4792 + $0x18] sm:$0xff]
      %v4797 = vld [vmem:[%s4792 + $0x20] sm:$0xff]
      %v4798 = vld [vmem:[%s4792 + $0x28] sm:$0xff]
      %v4799 = vld [vmem:[%s4792 + $0x30] sm:$0xff]
      %v4800 = vld [vmem:[%s4792 + $0x38] sm:$0xff]
      %v4801 = vld [vmem:[%s4792 + $0x40] sm:$0xff]
      %v4802 = vld [vmem:[%s4792 + $0x48] sm:$0xff]
      %v4803 = vld [vmem:[%s4792 + $0x50] sm:$0xff]
      %v4804 = vld [vmem:[%s4792 + $0x58] sm:$0xff]
      %v4805 = vld [vmem:[%s4792 + $0x60] sm:$0xff]
      %v4806 = vld [vmem:[%s4792 + $0x68] sm:$0xff]
      %v4807 = vld [vmem:[%s4792 + $0x70] sm:$0xff]
      %v4808 = vld [vmem:[%s4792 + $0x78] sm:$0xff]
      %4809 = vmatprep.subr.mxu0 0.0
      %4810 = vmatpush1.msra.mxu0 %v4808
      %4811 = vmatprep.subr.mxu0 0.0
      %4812 = vmatpush1.msra.mxu0 %v4807
      %4813 = vmatprep.subr.mxu0 0.0
      %4814 = vmatpush1.msra.mxu0 %v4806
      %4815 = vmatprep.subr.mxu0 0.0
      %4816 = vmatpush1.msra.mxu0 %v4805
      %4817 = vmatprep.subr.mxu0 0.0
      %4818 = vmatpush1.msra.mxu0 %v4804
      %4819 = vmatprep.subr.mxu0 0.0
      %4820 = vmatpush1.msra.mxu0 %v4803
      %4821 = vmatprep.subr.mxu0 0.0
      %4822 = vmatpush1.msra.mxu0 %v4802
      %4823 = vmatprep.subr.mxu0 0.0
      %4824 = vmatpush1.msra.mxu0 %v4801
      %4825 = vmatprep.subr.mxu0 0.0
      %4826 = vmatpush1.msra.mxu0 %v4800
      %4827 = vmatprep.subr.mxu0 0.0
      %4828 = vmatpush1.msra.mxu0 %v4799
      %4829 = vmatprep.subr.mxu0 0.0
      %4830 = vmatpush1.msra.mxu0 %v4798
      %4831 = vmatprep.subr.mxu0 0.0
      %4832 = vmatpush1.msra.mxu0 %v4797
      %4833 = vmatprep.subr.mxu0 0.0
      %4834 = vmatpush1.msra.mxu0 %v4796
      %4835 = vmatprep.subr.mxu0 0.0
      %4836 = vmatpush1.msra.mxu0 %v4795
      %4837 = vmatprep.subr.mxu0 0.0
      %4838 = vmatpush1.msra.mxu0 %v4794
      %4839 = vmatprep.subr.mxu0 0.0
      %4840 = vmatpush1.msra.mxu0 %v4793
      %4841 = vmatprep.subr.mxu0 0.0
      %4842 = vmatpush2.msra.mxu0 0.0
      %4843 = vmatprep.subr.mxu0 0.0
      %4844 = vmatpush2.msra.mxu0 0.0
      %4845 = vmatprep.subr.mxu0 0.0
      %4846 = vmatpush2.msra.mxu0 0.0
      %4847 = vmatprep.subr.mxu0 0.0
      %4848 = vmatpush2.msra.mxu0 0.0
      %4849 = vmatprep.subr.mxu0 0.0
      %4850 = vmatpush2.msra.mxu0 0.0
      %4851 = vmatprep.subr.mxu0 0.0
      %4852 = vmatpush2.msra.mxu0 0.0
      %4853 = vmatprep.subr.mxu0 0.0
      %4854 = vmatpush2.msra.mxu0 0.0
      %4855 = vmatprep.subr.mxu0 0.0
      %4856 = vmatpush2.msra.mxu0 0.0
      %4857 = vmatprep.subr.mxu0 0.0
      %4858 = vmatpush2.msra.mxu0 0.0
      %4859 = vmatprep.subr.mxu0 0.0
      %4860 = vmatpush2.msra.mxu0 0.0
      %4861 = vmatprep.subr.mxu0 0.0
      %4862 = vmatpush2.msra.mxu0 0.0
      %4863 = vmatprep.subr.mxu0 0.0
      %4864 = vmatpush2.msra.mxu0 0.0
      %4865 = vmatprep.subr.mxu0 0.0
      %4866 = vmatpush2.msra.mxu0 0.0
      %4867 = vmatprep.subr.mxu0 0.0
      %4868 = vmatpush2.msra.mxu0 0.0
      %4869 = vmatprep.subr.mxu0 0.0
      %4870 = vmatpush2.msra.mxu0 0.0
      %4871 = vmatprep.subr.mxu0 0.0
      %4872 = vmatpush2.msra.mxu0 0.0
      %4873 = vmatprep.mubr.f32.mxu0 0.0
      %4874 = vmatmul.mubr.f32.gmra.mxu0 %v4790
      %v4875 = vpop.f32.mrf.mxu0
      %v4876 = vadd.f32 0.0, %v4875
      %v4877 = vpop.f32.mrf.mxu0
      %4878 = vmatprep.mubr.f32.mxu0 0.0
      %4879 = vmatmul.mubr.f32.gmra.mxu0 %v4791
      %v4880 = vpop.f32.mrf.mxu0
      %v4881 = vadd.f32 0.0, %v4880
      %v4882 = vpop.f32.mrf.mxu0
      %4883 = vdwg.mxu0
      %v4884 = vadd.f32 %v4782, %v4876
      %v4885 = vadd.f32 %v4787, %v4881
      %v4886 = vld [vmem:[#allocation4 + $0x9] sm:$0xff]
      %v4887 = vld [vmem:[#allocation4 + $0x11] sm:$0xf]
      %s4888 = scalar_lea.vmem %s7, 384
      %v4889 = vld [vmem:[%s4888] sm:$0xff]
      %v4890 = vld [vmem:[%s4888 + $0x8] sm:$0xff]
      %v4891 = vld [vmem:[%s4888 + $0x10] sm:$0xff]
      %v4892 = vld [vmem:[%s4888 + $0x18] sm:$0xff]
      %v4893 = vld [vmem:[%s4888 + $0x20] sm:$0xff]
      %v4894 = vld [vmem:[%s4888 + $0x28] sm:$0xff]
      %v4895 = vld [vmem:[%s4888 + $0x30] sm:$0xff]
      %v4896 = vld [vmem:[%s4888 + $0x38] sm:$0xff]
      %v4897 = vld [vmem:[%s4888 + $0x40] sm:$0xff]
      %v4898 = vld [vmem:[%s4888 + $0x48] sm:$0xff]
      %v4899 = vld [vmem:[%s4888 + $0x50] sm:$0xff]
      %v4900 = vld [vmem:[%s4888 + $0x58] sm:$0xff]
      %v4901 = vld [vmem:[%s4888 + $0x60] sm:$0xff]
      %v4902 = vld [vmem:[%s4888 + $0x68] sm:$0xff]
      %v4903 = vld [vmem:[%s4888 + $0x70] sm:$0xff]
      %v4904 = vld [vmem:[%s4888 + $0x78] sm:$0xff]
      %4905 = vmatprep.subr.mxu0 0.0
      %4906 = vmatpush1.msra.mxu0 %v4904
      %4907 = vmatprep.subr.mxu0 0.0
      %4908 = vmatpush1.msra.mxu0 %v4903
      %4909 = vmatprep.subr.mxu0 0.0
      %4910 = vmatpush1.msra.mxu0 %v4902
      %4911 = vmatprep.subr.mxu0 0.0
      %4912 = vmatpush1.msra.mxu0 %v4901
      %4913 = vmatprep.subr.mxu0 0.0
      %4914 = vmatpush1.msra.mxu0 %v4900
      %4915 = vmatprep.subr.mxu0 0.0
      %4916 = vmatpush1.msra.mxu0 %v4899
      %4917 = vmatprep.subr.mxu0 0.0
      %4918 = vmatpush1.msra.mxu0 %v4898
      %4919 = vmatprep.subr.mxu0 0.0
      %4920 = vmatpush1.msra.mxu0 %v4897
      %4921 = vmatprep.subr.mxu0 0.0
      %4922 = vmatpush1.msra.mxu0 %v4896
      %4923 = vmatprep.subr.mxu0 0.0
      %4924 = vmatpush1.msra.mxu0 %v4895
      %4925 = vmatprep.subr.mxu0 0.0
      %4926 = vmatpush1.msra.mxu0 %v4894
      %4927 = vmatprep.subr.mxu0 0.0
      %4928 = vmatpush1.msra.mxu0 %v4893
      %4929 = vmatprep.subr.mxu0 0.0
      %4930 = vmatpush1.msra.mxu0 %v4892
      %4931 = vmatprep.subr.mxu0 0.0
      %4932 = vmatpush1.msra.mxu0 %v4891
      %4933 = vmatprep.subr.mxu0 0.0
      %4934 = vmatpush1.msra.mxu0 %v4890
      %4935 = vmatprep.subr.mxu0 0.0
      %4936 = vmatpush1.msra.mxu0 %v4889
      %4937 = vmatprep.subr.mxu0 0.0
      %4938 = vmatpush2.msra.mxu0 0.0
      %4939 = vmatprep.subr.mxu0 0.0
      %4940 = vmatpush2.msra.mxu0 0.0
      %4941 = vmatprep.subr.mxu0 0.0
      %4942 = vmatpush2.msra.mxu0 0.0
      %4943 = vmatprep.subr.mxu0 0.0
      %4944 = vmatpush2.msra.mxu0 0.0
      %4945 = vmatprep.subr.mxu0 0.0
      %4946 = vmatpush2.msra.mxu0 0.0
      %4947 = vmatprep.subr.mxu0 0.0
      %4948 = vmatpush2.msra.mxu0 0.0
      %4949 = vmatprep.subr.mxu0 0.0
      %4950 = vmatpush2.msra.mxu0 0.0
      %4951 = vmatprep.subr.mxu0 0.0
      %4952 = vmatpush2.msra.mxu0 0.0
      %4953 = vmatprep.subr.mxu0 0.0
      %4954 = vmatpush2.msra.mxu0 0.0
      %4955 = vmatprep.subr.mxu0 0.0
      %4956 = vmatpush2.msra.mxu0 0.0
      %4957 = vmatprep.subr.mxu0 0.0
      %4958 = vmatpush2.msra.mxu0 0.0
      %4959 = vmatprep.subr.mxu0 0.0
      %4960 = vmatpush2.msra.mxu0 0.0
      %4961 = vmatprep.subr.mxu0 0.0
      %4962 = vmatpush2.msra.mxu0 0.0
      %4963 = vmatprep.subr.mxu0 0.0
      %4964 = vmatpush2.msra.mxu0 0.0
      %4965 = vmatprep.subr.mxu0 0.0
      %4966 = vmatpush2.msra.mxu0 0.0
      %4967 = vmatprep.subr.mxu0 0.0
      %4968 = vmatpush2.msra.mxu0 0.0
      %4969 = vmatprep.mubr.f32.mxu0 0.0
      %4970 = vmatmul.mubr.f32.gmra.mxu0 %v4886
      %v4971 = vpop.f32.mrf.mxu0
      %v4972 = vadd.f32 0.0, %v4971
      %v4973 = vpop.f32.mrf.mxu0
      %4974 = vmatprep.mubr.f32.mxu0 0.0
      %4975 = vmatmul.mubr.f32.gmra.mxu0 %v4887
      %v4976 = vpop.f32.mrf.mxu0
      %v4977 = vadd.f32 0.0, %v4976
      %v4978 = vpop.f32.mrf.mxu0
      %4979 = vdwg.mxu0
      %v4980 = vadd.f32 %v4884, %v4972
      %v4981 = vadd.f32 %v4885, %v4977
      %v4982 = vld [vmem:[#allocation4 + $0xa] sm:$0xff]
      %v4983 = vld [vmem:[#allocation4 + $0x12] sm:$0xf]
      %s4984 = scalar_lea.vmem %s7, 512
      %v4985 = vld [vmem:[%s4984] sm:$0xff]
      %v4986 = vld [vmem:[%s4984 + $0x8] sm:$0xff]
      %v4987 = vld [vmem:[%s4984 + $0x10] sm:$0xff]
      %v4988 = vld [vmem:[%s4984 + $0x18] sm:$0xff]
      %v4989 = vld [vmem:[%s4984 + $0x20] sm:$0xff]
      %v4990 = vld [vmem:[%s4984 + $0x28] sm:$0xff]
      %v4991 = vld [vmem:[%s4984 + $0x30] sm:$0xff]
      %v4992 = vld [vmem:[%s4984 + $0x38] sm:$0xff]
      %v4993 = vld [vmem:[%s4984 + $0x40] sm:$0xff]
      %v4994 = vld [vmem:[%s4984 + $0x48] sm:$0xff]
      %v4995 = vld [vmem:[%s4984 + $0x50] sm:$0xff]
      %v4996 = vld [vmem:[%s4984 + $0x58] sm:$0xff]
      %v4997 = vld [vmem:[%s4984 + $0x60] sm:$0xff]
      %v4998 = vld [vmem:[%s4984 + $0x68] sm:$0xff]
      %v4999 = vld [vmem:[%s4984 + $0x70] sm:$0xff]
      %v5000 = vld [vmem:[%s4984 + $0x78] sm:$0xff]
      %5001 = vmatprep.subr.mxu0 0.0
      %5002 = vmatpush1.msra.mxu0 %v5000
      %5003 = vmatprep.subr.mxu0 0.0
      %5004 = vmatpush1.msra.mxu0 %v4999
      %5005 = vmatprep.subr.mxu0 0.0
      %5006 = vmatpush1.msra.mxu0 %v4998
      %5007 = vmatprep.subr.mxu0 0.0
      %5008 = vmatpush1.msra.mxu0 %v4997
      %5009 = vmatprep.subr.mxu0 0.0
      %5010 = vmatpush1.msra.mxu0 %v4996
      %5011 = vmatprep.subr.mxu0 0.0
      %5012 = vmatpush1.msra.mxu0 %v4995
      %5013 = vmatprep.subr.mxu0 0.0
      %5014 = vmatpush1.msra.mxu0 %v4994
      %5015 = vmatprep.subr.mxu0 0.0
      %5016 = vmatpush1.msra.mxu0 %v4993
      %5017 = vmatprep.subr.mxu0 0.0
      %5018 = vmatpush1.msra.mxu0 %v4992
      %5019 = vmatprep.subr.mxu0 0.0
      %5020 = vmatpush1.msra.mxu0 %v4991
      %5021 = vmatprep.subr.mxu0 0.0
      %5022 = vmatpush1.msra.mxu0 %v4990
      %5023 = vmatprep.subr.mxu0 0.0
      %5024 = vmatpush1.msra.mxu0 %v4989
      %5025 = vmatprep.subr.mxu0 0.0
      %5026 = vmatpush1.msra.mxu0 %v4988
      %5027 = vmatprep.subr.mxu0 0.0
      %5028 = vmatpush1.msra.mxu0 %v4987
      %5029 = vmatprep.subr.mxu0 0.0
      %5030 = vmatpush1.msra.mxu0 %v4986
      %5031 = vmatprep.subr.mxu0 0.0
      %5032 = vmatpush1.msra.mxu0 %v4985
      %5033 = vmatprep.subr.mxu0 0.0
      %5034 = vmatpush2.msra.mxu0 0.0
      %5035 = vmatprep.subr.mxu0 0.0
      %5036 = vmatpush2.msra.mxu0 0.0
      %5037 = vmatprep.subr.mxu0 0.0
      %5038 = vmatpush2.msra.mxu0 0.0
      %5039 = vmatprep.subr.mxu0 0.0
      %5040 = vmatpush2.msra.mxu0 0.0
      %5041 = vmatprep.subr.mxu0 0.0
      %5042 = vmatpush2.msra.mxu0 0.0
      %5043 = vmatprep.subr.mxu0 0.0
      %5044 = vmatpush2.msra.mxu0 0.0
      %5045 = vmatprep.subr.mxu0 0.0
      %5046 = vmatpush2.msra.mxu0 0.0
      %5047 = vmatprep.subr.mxu0 0.0
      %5048 = vmatpush2.msra.mxu0 0.0
      %5049 = vmatprep.subr.mxu0 0.0
      %5050 = vmatpush2.msra.mxu0 0.0
      %5051 = vmatprep.subr.mxu0 0.0
      %5052 = vmatpush2.msra.mxu0 0.0
      %5053 = vmatprep.subr.mxu0 0.0
      %5054 = vmatpush2.msra.mxu0 0.0
      %5055 = vmatprep.subr.mxu0 0.0
      %5056 = vmatpush2.msra.mxu0 0.0
      %5057 = vmatprep.subr.mxu0 0.0
      %5058 = vmatpush2.msra.mxu0 0.0
      %5059 = vmatprep.subr.mxu0 0.0
      %5060 = vmatpush2.msra.mxu0 0.0
      %5061 = vmatprep.subr.mxu0 0.0
      %5062 = vmatpush2.msra.mxu0 0.0
      %5063 = vmatprep.subr.mxu0 0.0
      %5064 = vmatpush2.msra.mxu0 0.0
      %5065 = vmatprep.mubr.f32.mxu0 0.0
      %5066 = vmatmul.mubr.f32.gmra.mxu0 %v4982
      %v5067 = vpop.f32.mrf.mxu0
      %v5068 = vadd.f32 0.0, %v5067
      %v5069 = vpop.f32.mrf.mxu0
      %5070 = vmatprep.mubr.f32.mxu0 0.0
      %5071 = vmatmul.mubr.f32.gmra.mxu0 %v4983
      %v5072 = vpop.f32.mrf.mxu0
      %v5073 = vadd.f32 0.0, %v5072
      %v5074 = vpop.f32.mrf.mxu0
      %5075 = vdwg.mxu0
      %v5076 = vadd.f32 %v4980, %v5068
      %v5077 = vadd.f32 %v4981, %v5073
      %5078 = vst [vmem:[#allocation6] sm:$0xff] %v5076
      %5079 = vst [vmem:[#allocation6 + $0x8] sm:$0xf] %v5077
      %v5080 = vld [vmem:[#allocation6] ss:$3 sm:$0xf]
      %v5081 = vld [vmem:[%s4578] ss:$3 sm:$0xf]
      %v5082 = vmax.f32 %v5080, %v5081
      %v5083 = vld [vmem:[%s4584] ss:$3 sm:$0xf]
      %v5084 = vmax.f32 %v5082, %v5083
      %v5085 = vld [vmem:[%s8] sm:$0x1]
      %v5087 = vlaneseq
      %v5088 = vshrl.u32 %v5087, 7
      %v5089 = vsub.s32 0, %v5088
      %v5090 = vrot.slane %v5085, %v5089
      %v5092 = vadd.f32 %v5084, %v5090
      %v5093 = vmax.f32 %v5092, 0.0
      %5094 = vst [vmem:[%s330] sm:$0xf] %v5093
      %p5095 = scmp.lt.s32.totalorder %s20, 1
      %s5096 = scalar_select %p5095, %s20, 1
      %s5097 = smul.addr %s5096, 4
      %s5098 = scalar_lea.vmem %s9, %s5097
      // Predicated region
      $region57: #{secure_model_forward.2} parent=55 // pred_check
        %p5099 = pneg %p232
      $region58: #{secure_model_forward.2} parent=55 // pred_check_branch
        %5101 = sbr.rel (%p5099) target = $region60
      $region59: #{secure_model_forward.2} parent=55 // pred_region
        _
      $region60: #{secure_model_forward.2} parent=55 // pred_fallthru
        _
    $region56: #{secure_model_forward.2} parent=5 // pred_fallthru
      _
    %p5102 = scmp.le.s32.totalorder 2, %s15
    // Predicated region
    $region61: #{secure_model_forward.2} parent=5 // pred_check
      %p5103 = pneg %p5102
    $region62: #{secure_model_forward.2} parent=5 // pred_check_branch
      %5105 = sbr.rel (%p5103) target = $region64
    $region63: #{secure_model_forward.2} parent=5 // pred_region
      %s5106 = ssub.s32 %s15, 2
      // Predicated region
      $region65: #{secure_model_forward.2} parent=63 // pred_check
        %p5107 = pneg %p238
      $region66: #{secure_model_forward.2} parent=63 // pred_check_branch
        %5109 = sbr.rel (%p5107) target = $region68
      $region67: #{secure_model_forward.2} parent=63 // pred_region
        %p5110 = scmp.lt.s32.totalorder %s21, 1
        %s5111 = scalar_select %p5110, %s21, 1
        %s5112 = smul.addr %s5111, 4
        %s5113 = scalar_lea.vmem %s9, %s5112
      $region68: #{secure_model_forward.2} parent=63 // pred_fallthru
        _
    $region64: #{secure_model_forward.2} parent=5 // pred_fallthru
      _
  $region6: #{secure_model_forward.2} parent=0 // loop_footer
    %s19 = sadd.s32 1, %s15
  $region7: #{secure_model_forward.2} parent=0 // loop_footer_branch
    %14 = sbr.rel target = $region3
  $region8: #{secure_model_forward.2} parent=0 // loop_exit
    _

</llo_original>
